<compile_context>
chip_gen: v6e
topology: v6e:2x2x1
jax: 0.10.0
libtpu: 0.0.40
codegen_flags: <defaults>
</compile_context>

<pallas_src>
import jax
import jax.numpy as jnp
from jax import lax
from jax.experimental import pallas as pl
from jax.experimental.pallas import tpu as pltpu

NUM_HEADS = 8
EPS = 1e-5


# ------------------------------------------------------------------ kernels
def stats_kernel(x_ref, o_ref):
    """Accumulate per-channel sum (row 0) and sum-of-squares (row 1) over all tokens."""
    @pl.when(pl.program_id(0) == 0)
    def _():
        o_ref[...] = jnp.zeros_like(o_ref)

    x = x_ref[0]                                          # (hw, C) f32
    o_ref[0:1, :] += jnp.sum(x, axis=0, keepdims=True)
    o_ref[1:2, :] += jnp.sum(x * x, axis=0, keepdims=True)


def proj_kernel(x_ref, scale_ref, shift_ref, wqkv_ref, bqkv_ref, qkv_ref):
    """BN1-normalize + fused q/k/v 1x1-conv projection for one batch element."""
    xn = x_ref[0] * scale_ref[...] + shift_ref[...]       # BN folded to scale/shift, (hw, C)
    qkv = jnp.dot(xn.astype(jnp.bfloat16), wqkv_ref[...],
                  preferred_element_type=jnp.float32) + bqkv_ref[...]
    qkv_ref[0] = qkv.astype(jnp.bfloat16)                 # (hw, 3C) bf16


def attn_kernel(qkv_ref, x_ref, wo_ref, bo_ref, o_ref):
    """One (batch, head) grid step.

    qkv_ref : (1, 3, hw, hd) bf16  -- this head's q / k / v (softmax scale pre-folded into q)
    wo_ref  : (1, hd, C)     bf16  -- this head's rows of the out-projection weight
    o_ref   : (1, hw, C)     f32   -- resident accumulator: residual + bo + sum_h oh @ Wo_h
    """
    head = pl.program_id(1)

    @pl.when(head == 0)
    def _():
        o_ref[0] = x_ref[0] + bo_ref[...]                 # residual + out-proj bias

    q = qkv_ref[0, 0]                                     # (hw, hd)
    k = qkv_ref[0, 1]
    v = qkv_ref[0, 2]

    s = lax.dot_general(q, k, (((1,), (1,)), ((), ())),
                        preferred_element_type=jnp.float32)        # (hw, hw)
    s = s - jnp.max(s, axis=-1, keepdims=True)
    p = jnp.exp(s)
    p = p * pl.reciprocal(jnp.sum(p, axis=-1, keepdims=True), approx=True)

    oh = jnp.dot(p.astype(jnp.bfloat16), v,
                 preferred_element_type=jnp.float32)               # (hw, hd)
    # fused out-projection: accumulate this head's contribution through Wo
    o_ref[0] += jnp.dot(oh.astype(jnp.bfloat16), wo_ref[0],
                        preferred_element_type=jnp.float32)


def mlp_kernel(x1_ref, scale_ref, shift_ref, w1_ref, b1_ref, w2_ref, b2_ref, o_ref):
    """BN2-normalize + (1x1 conv -> ReLU -> 1x1 conv) + residual for one token tile."""
    x1 = x1_ref[0]                                        # (TT, C) f32
    x2 = x1 * scale_ref[...] + shift_ref[...]
    h1 = jnp.dot(x2.astype(jnp.bfloat16), w1_ref[...],
                 preferred_element_type=jnp.float32) + b1_ref[...]
    h1 = jnp.maximum(h1, 0.0)
    h2 = jnp.dot(h1.astype(jnp.bfloat16), w2_ref[...],
                 preferred_element_type=jnp.float32) + b2_ref[...]
    o_ref[0] = x1 + h2


# ------------------------------------------------------------------ wrapper
def _channel_stats(x_tok):
    b, hw, c = x_tok.shape
    return pl.pallas_call(
        stats_kernel,
        out_shape=jax.ShapeDtypeStruct((2, c), jnp.float32),
        grid=(b,),
        in_specs=[pl.BlockSpec((1, hw, c), lambda i: (i, 0, 0))],
        out_specs=pl.BlockSpec((2, c), lambda i: (0, 0)),
        compiler_params=pltpu.CompilerParams(dimension_semantics=("arbitrary",)),
    )(x_tok)


def _bn_scale_shift(sums, n_tokens, gamma, beta):
    mean = sums[0] / n_tokens
    var = sums[1] / n_tokens - mean * mean               # biased (train-mode) variance
    rstd = lax.rsqrt(var + EPS)
    scale = gamma * rstd
    shift = beta - mean * scale
    return scale.reshape(1, -1), shift.reshape(1, -1)


def multi_head_attention_block(x_nchw, params):
    """x_nchw: (B, C, H, W) float32.  Returns (B, C, H, W) float32."""
    b, c, h, w = x_nchw.shape
    hw = h * w
    hd = c // NUM_HEADS
    n_tokens = float(b * hw)
    bf16 = jnp.bfloat16

    # NCHW -> (B, H*W, C) token slab (matches .view(b, c, h*w).transpose(-2, -1))
    x_tok = jnp.transpose(x_nchw, (0, 2, 3, 1)).reshape(b, hw, c)

    # ---- weight preprocessing (tiny, once, in the wrapper) ------------------------
    scale_attn = hd ** -0.5
    wqkv = jnp.concatenate([(params["Wq"] * scale_attn).T,     # softmax scale folded into q
                            params["Wk"].T, params["Wv"].T], axis=1).astype(bf16)   # (C, 3C)
    bqkv = jnp.concatenate([params["bq"] * scale_attn,
                            params["bk"], params["bv"]]).reshape(1, 3 * c)
    wo3 = params["Wo"].T.reshape(NUM_HEADS, hd, c).astype(bf16)  # per-head (hd, C) slices
    bo = params["bo"].reshape(1, c)
    w1 = params["W1"].T.astype(bf16)                             # (C, 4C)
    b1 = params["b1"].reshape(1, 4 * c)
    w2 = params["W2"].T.astype(bf16)                             # (4C, C)
    b2 = params["b2"].reshape(1, c)

    # ---- BN1: single-pass batch statistics over all tokens ------------------------
    scale1, shift1 = _bn_scale_shift(_channel_stats(x_tok), n_tokens,
                                     params["g1"], params["be1"])

    # ---- fused q/k/v projection (grid over batch, megacore-parallel) ---------------
    qkv = pl.pallas_call(
        proj_kernel,
        out_shape=jax.ShapeDtypeStruct((b, hw, 3 * c), bf16),
        grid=(b,),
        in_specs=[
            pl.BlockSpec((1, hw, c), lambda i: (i, 0, 0)),
            pl.BlockSpec((1, c), lambda i: (0, 0)),
            pl.BlockSpec((1, c), lambda i: (0, 0)),
            pl.BlockSpec((c, 3 * c), lambda i: (0, 0)),
            pl.BlockSpec((1, 3 * c), lambda i: (0, 0)),
        ],
        out_specs=pl.BlockSpec((1, hw, 3 * c), lambda i: (i, 0, 0)),
        compiler_params=pltpu.CompilerParams(dimension_semantics=("parallel",)),
    )(x_tok, scale1, shift1, wqkv, bqkv)

    # layout plumbing (XLA): head-major (B, heads*3, hw, hd) so each (batch, head) grid
    # step gets its q/k/v as one contiguous block -> no narrow lane slicing in-kernel.
    qkv_heads = jnp.transpose(qkv.reshape(b, hw, 3, NUM_HEADS, hd),
                              (0, 3, 2, 1, 4)).reshape(b, NUM_HEADS * 3, hw, hd)

    # ---- attention: heads = reduction grid axis accumulating the fused out-proj ----
    x1 = pl.pallas_call(
        attn_kernel,
        out_shape=jax.ShapeDtypeStruct((b, hw, c), jnp.float32),
        grid=(b, NUM_HEADS),
        in_specs=[
            pl.BlockSpec((1, 3, hw, hd), lambda i, j: (i, j, 0, 0)),
            pl.BlockSpec((1, hw, c), lambda i, j: (i, 0, 0)),
            pl.BlockSpec((1, hd, c), lambda i, j: (j, 0, 0)),
            pl.BlockSpec((1, c), lambda i, j: (0, 0)),
        ],
        out_specs=pl.BlockSpec((1, hw, c), lambda i, j: (i, 0, 0)),
        compiler_params=pltpu.CompilerParams(
            dimension_semantics=("parallel", "arbitrary")),
    )(qkv_heads, x_tok, wo3, bo)

    # ---- BN2 statistics over x1 -----------------------------------------------------
    scale2, shift2 = _bn_scale_shift(_channel_stats(x1), n_tokens,
                                     params["g2"], params["be2"])

    # ---- MLP + residual, token-tiled so the (tile, 4C) hidden stays bounded ---------
    tt = 256 if hw % 256 == 0 else hw
    y_tok = pl.pallas_call(
        mlp_kernel,
        out_shape=jax.ShapeDtypeStruct((b, hw, c), jnp.float32),
        grid=(b, hw // tt),
        in_specs=[
            pl.BlockSpec((1, tt, c), lambda i, j: (i, j, 0)),
            pl.BlockSpec((1, c), lambda i, j: (0, 0)),
            pl.BlockSpec((1, c), lambda i, j: (0, 0)),
            pl.BlockSpec((c, 4 * c), lambda i, j: (0, 0)),
            pl.BlockSpec((1, 4 * c), lambda i, j: (0, 0)),
            pl.BlockSpec((4 * c, c), lambda i, j: (0, 0)),
            pl.BlockSpec((1, c), lambda i, j: (0, 0)),
        ],
        out_specs=pl.BlockSpec((1, tt, c), lambda i, j: (i, j, 0)),
        compiler_params=pltpu.CompilerParams(
            dimension_semantics=("parallel", "parallel")),
    )(x1, scale2, shift2, w1, b1, w2, b2)

    return jnp.transpose(y_tok.reshape(b, h, w, c), (0, 3, 1, 2))


# ------------------------------------------------------------------ reference & test
def reference_forward(x, p):
    """Pure-JAX NCHW reference mirroring the PyTorch module (train-mode BN)."""
    b, c, h, w = x.shape
    heads, hd = NUM_HEADS, c // NUM_HEADS

    def bn(t, g, beta):
        mu = t.mean(axis=(0, 2, 3), keepdims=True)
        var = ((t - mu) ** 2).mean(axis=(0, 2, 3), keepdims=True)
        return (t - mu) / jnp.sqrt(var + EPS) * g[None, :, None, None] + beta[None, :, None, None]

    def conv1x1(t, W, bias):
        return jnp.einsum('oc,bchw->bohw', W, t) + bias[None, :, None, None]

    residual = x
    xn = bn(x, p["g1"], p["be1"])
    q = conv1x1(xn, p["Wq"], p["bq"]).reshape(b, heads, hd, h * w)
    k = conv1x1(xn, p["Wk"], p["bk"]).reshape(b, heads, hd, h * w)
    v = conv1x1(xn, p["Wv"], p["bv"]).reshape(b, heads, hd, h * w)
    q = jnp.swapaxes(q, -2, -1)
    k = jnp.swapaxes(k, -2, -1)
    v = jnp.swapaxes(v, -2, -1)
    attn = (q @ jnp.swapaxes(k, -2, -1)) * hd ** (-0.5)
    attn = jax.nn.softmax(attn, axis=-1)
    out = attn @ v
    out = jnp.swapaxes(out, -2, -1).reshape(b, c, h, w)
    out = conv1x1(out, p["Wo"], p["bo"])
    x1 = residual + out
    xn2 = bn(x1, p["g2"], p["be2"])
    hid = jax.nn.relu(conv1x1(xn2, p["W1"], p["b1"]))
    out2 = conv1x1(hid, p["W2"], p["b2"])
    return x1 + out2


def init_params(key, channels):
    ks = jax.random.split(key, 12)
    s = 1.0 / jnp.sqrt(channels)
    p = {
        "Wq": jax.random.normal(ks[0], (channels, channels), jnp.float32) * s,
        "bq": jax.random.normal(ks[1], (channels,), jnp.float32) * 0.1,
        "Wk": jax.random.normal(ks[2], (channels, channels), jnp.float32) * s,
        "bk": jax.random.normal(ks[3], (channels,), jnp.float32) * 0.1,
        "Wv": jax.random.normal(ks[4], (channels, channels), jnp.float32) * s,
        "bv": jax.random.normal(ks[5], (channels,), jnp.float32) * 0.1,
        "Wo": jax.random.normal(ks[6], (channels, channels), jnp.float32) * s,
        "bo": jax.random.normal(ks[7], (channels,), jnp.float32) * 0.1,
        "g1": 1.0 + 0.1 * jax.random.normal(ks[8], (channels,), jnp.float32),
        "be1": 0.1 * jax.random.normal(ks[9], (channels,), jnp.float32),
        "g2": 1.0 + 0.1 * jax.random.normal(ks[10], (channels,), jnp.float32),
        "be2": 0.1 * jax.random.normal(ks[11], (channels,), jnp.float32),
    }
    km = jax.random.split(jax.random.fold_in(key, 99), 4)
    p["W1"] = jax.random.normal(km[0], (channels * 4, channels), jnp.float32) * s
    p["b1"] = 0.1 * jax.random.normal(km[1], (channels * 4,), jnp.float32)
    p["W2"] = jax.random.normal(km[2], (channels, channels * 4), jnp.float32) * (1.0 / jnp.sqrt(4 * channels))
    p["b2"] = 0.1 * jax.random.normal(km[3], (channels,), jnp.float32)
    return p


if __name__ == "__main__":
    B, C, H, W = 2, 32, 16, 16      # channels must be divisible by num_heads=8
    key = jax.random.PRNGKey(0)
    kx, kp = jax.random.split(key)
    x = jax.random.normal(kx, (B, C, H, W), jnp.float32)
    params = init_params(kp, C)

    y = jax.jit(multi_head_attention_block)(x, params)
    y = jax.block_until_ready(y)

    y_ref = reference_forward(x, params)
    assert y.shape == (B, C, H, W)
    err = float(jnp.max(jnp.abs(y - y_ref)))
    # bf16 matmul operands with f32 accumulation -> slightly looser tolerance than f32
    assert jnp.allclose(y, y_ref, rtol=3e-2, atol=3e-2), f"max abs err {err}"

    print("KERNEL_OK")
</pallas_src>

<mosaic_0001>
module attributes {stable_mosaic.version = 11 : i64} {
  func.func @stats_kernel(%arg0: i32, %arg1: memref<1x256x32xf32, #tpu.memory_space<vmem>>, %arg2: memref<2x32xf32, #tpu.memory_space<vmem>>) attributes {dimension_semantics = [#tpu.dimension_semantics<arbitrary>], iteration_bounds = array<i64: 2>, scalar_prefetch = 0 : i64, scratch_operands = 0 : i64, tpu.core_type = #tpu.core_type<tc>, window_params = [{transform_indices = @transform_0, window_bounds = array<i64: 1, 256, 32>}, {pipeline_mode = #tpu.pipeline_mode<synchronous>, transform_indices = @transform_1, window_bounds = array<i64: 2, 32>}]} {
    %c0_i32 = arith.constant 0 : i32
    %0 = arith.cmpi eq, %arg0, %c0_i32 : i32
    %1 = arith.extui %0 : i1 to i32
    %c0_i32_0 = arith.constant 0 : i32
    %2 = arith.cmpi ne, %1, %c0_i32_0 : i32
    scf.if %2 {
      %cst_11 = arith.constant 0.000000e+00 : f32
      %16 = vector.broadcast %cst_11 : f32 to vector<2x32xf32>
      %c0_12 = arith.constant 0 : index
      %c0_13 = arith.constant 0 : index
      %17 = vector.load %arg2[%c0_12, %c0_13] : memref<2x32xf32, #tpu.memory_space<vmem>>, vector<2x32xf32>
      tpu.vector_store %arg2[%c0_12, %c0_13], %16 {strides = array<i32>} : memref<2x32xf32, #tpu.memory_space<vmem>>, vector<2x32xf32>,
    } else {
    }
    %c0 = arith.constant 0 : index
    %c0_1 = arith.constant 0 : index
    %c0_2 = arith.constant 0 : index
    %3 = vector.load %arg1[%c0, %c0_1, %c0_2] : memref<1x256x32xf32, #tpu.memory_space<vmem>>, vector<1x256x32xf32>
    %4 = vector.shape_cast %3 : vector<1x256x32xf32> to vector<256x32xf32>
    %c0_3 = arith.constant 0 : index
    %c0_4 = arith.constant 0 : index
    %5 = vector.load %arg2[%c0_3, %c0_4] : memref<2x32xf32, #tpu.memory_space<vmem>>, vector<1x32xf32>
    %cst = arith.constant dense<0.000000e+00> : vector<32xf32>
    %6 = vector.multi_reduction <add>, %4, %cst [0] : vector<256x32xf32> to vector<32xf32>
    %7 = vector.shape_cast %6 : vector<32xf32> to vector<1x32xf32>
    %8 = arith.addf %5, %7 : vector<1x32xf32>
    %c0_5 = arith.constant 0 : index
    %c0_6 = arith.constant 0 : index
    %9 = vector.load %arg2[%c0_5, %c0_6] : memref<2x32xf32, #tpu.memory_space<vmem>>, vector<1x32xf32>
    tpu.vector_store %arg2[%c0_5, %c0_6], %8 {strides = array<i32>} : memref<2x32xf32, #tpu.memory_space<vmem>>, vector<1x32xf32>,
    %c1 = arith.constant 1 : index
    %c0_7 = arith.constant 0 : index
    %10 = vector.load %arg2[%c1, %c0_7] : memref<2x32xf32, #tpu.memory_space<vmem>>, vector<1x32xf32>
    %11 = arith.mulf %4, %4 : vector<256x32xf32>
    %cst_8 = arith.constant dense<0.000000e+00> : vector<32xf32>
    %12 = vector.multi_reduction <add>, %11, %cst_8 [0] : vector<256x32xf32> to vector<32xf32>
    %13 = vector.shape_cast %12 : vector<32xf32> to vector<1x32xf32>
    %14 = arith.addf %10, %13 : vector<1x32xf32>
    %c1_9 = arith.constant 1 : index
    %c0_10 = arith.constant 0 : index
    %15 = vector.load %arg2[%c1_9, %c0_10] : memref<2x32xf32, #tpu.memory_space<vmem>>, vector<1x32xf32>
    tpu.vector_store %arg2[%c1_9, %c0_10], %14 {strides = array<i32>} : memref<2x32xf32, #tpu.memory_space<vmem>>, vector<1x32xf32>,
    return
  }
  func.func @transform_0(%arg0: i32) -> (i32, i32, i32) {
    %c0_i32 = arith.constant 0 : i32
    %c0_i32_0 = arith.constant 0 : i32
    %c0_i32_1 = arith.constant 0 : i32
    return %arg0, %c0_i32, %c0_i32_0 : i32, i32, i32
  }
  func.func @transform_1(%arg0: i32) -> (i32, i32) {
    %c0_i32 = arith.constant 0 : i32
    %c0_i32_0 = arith.constant 0 : i32
    %c0_i32_1 = arith.constant 0 : i32
    return %c0_i32, %c0_i32_0 : i32, i32
  }
}

module attributes {stable_mosaic.version = 11 : i64} {
  func.func @proj_kernel(%arg0: i32, %arg1: memref<1x256x32xf32, #tpu.memory_space<vmem>>, %arg2: memref<1x32xf32, #tpu.memory_space<vmem>>, %arg3: memref<1x32xf32, #tpu.memory_space<vmem>>, %arg4: memref<32x96xbf16, #tpu.memory_space<vmem>>, %arg5: memref<1x96xf32, #tpu.memory_space<vmem>>, %arg6: memref<1x256x96xbf16, #tpu.memory_space<vmem>>) attributes {dimension_semantics = [#tpu.dimension_semantics<parallel>], iteration_bounds = array<i64: 2>, scalar_prefetch = 0 : i64, scratch_operands = 0 : i64, tpu.core_type = #tpu.core_type<tc>, window_params = [{transform_indices = @transform_0, window_bounds = array<i64: 1, 256, 32>}, {pipeline_mode = #tpu.pipeline_mode<synchronous>, transform_indices = @transform_1, window_bounds = array<i64: 1, 32>}, {pipeline_mode = #tpu.pipeline_mode<synchronous>, transform_indices = @transform_2, window_bounds = array<i64: 1, 32>}, {pipeline_mode = #tpu.pipeline_mode<synchronous>, transform_indices = @transform_3, window_bounds = array<i64: 32, 96>}, {pipeline_mode = #tpu.pipeline_mode<synchronous>, transform_indices = @transform_4, window_bounds = array<i64: 1, 96>}, {transform_indices = @transform_5, window_bounds = array<i64: 1, 256, 96>}]} {
    %c0 = arith.constant 0 : index
    %c0_0 = arith.constant 0 : index
    %c0_1 = arith.constant 0 : index
    %0 = vector.load %arg1[%c0, %c0_0, %c0_1] : memref<1x256x32xf32, #tpu.memory_space<vmem>>, vector<1x256x32xf32>
    %1 = vector.shape_cast %0 : vector<1x256x32xf32> to vector<256x32xf32>
    %c0_2 = arith.constant 0 : index
    %c0_3 = arith.constant 0 : index
    %2 = vector.load %arg2[%c0_2, %c0_3] : memref<1x32xf32, #tpu.memory_space<vmem>>, vector<1x32xf32>
    %3 = vector.broadcast %2 : vector<1x32xf32> to vector<256x32xf32>
    %4 = arith.mulf %1, %3 : vector<256x32xf32>
    %c0_4 = arith.constant 0 : index
    %c0_5 = arith.constant 0 : index
    %5 = vector.load %arg3[%c0_4, %c0_5] : memref<1x32xf32, #tpu.memory_space<vmem>>, vector<1x32xf32>
    %6 = vector.broadcast %5 : vector<1x32xf32> to vector<256x32xf32>
    %7 = arith.addf %4, %6 : vector<256x32xf32>
    %8 = arith.truncf %7 : vector<256x32xf32> to vector<256x32xbf16>
    %c0_6 = arith.constant 0 : index
    %c0_7 = arith.constant 0 : index
    %9 = vector.load %arg4[%c0_6, %c0_7] : memref<32x96xbf16, #tpu.memory_space<vmem>>, vector<32x96xbf16>
    %cst = arith.constant dense<0.000000e+00> : vector<256x96xf32>
    %10 = tpu.matmul %8, %9, %cst {dimension_numbers = #tpu.dot_dimension_numbers<[1], [0], [0], [1], [0, 0, 1, 1], [], []>} : vector<256x32xbf16>, vector<32x96xbf16>, vector<256x96xf32> -> vector<256x96xf32>
    %c0_8 = arith.constant 0 : index
    %c0_9 = arith.constant 0 : index
    %11 = vector.load %arg5[%c0_8, %c0_9] : memref<1x96xf32, #tpu.memory_space<vmem>>, vector<1x96xf32>
    %12 = vector.broadcast %11 : vector<1x96xf32> to vector<256x96xf32>
    %13 = arith.addf %10, %12 : vector<256x96xf32>
    %14 = arith.truncf %13 : vector<256x96xf32> to vector<256x96xbf16>
    %c0_10 = arith.constant 0 : index
    %c0_11 = arith.constant 0 : index
    %c0_12 = arith.constant 0 : index
    %15 = vector.load %arg6[%c0_10, %c0_11, %c0_12] : memref<1x256x96xbf16, #tpu.memory_space<vmem>>, vector<1x256x96xbf16>
    %16 = vector.shape_cast %15 : vector<1x256x96xbf16> to vector<256x96xbf16>
    %17 = vector.shape_cast %14 : vector<256x96xbf16> to vector<1x256x96xbf16>
    tpu.vector_store %arg6[%c0_10, %c0_11, %c0_12], %17 {strides = array<i32>} : memref<1x256x96xbf16, #tpu.memory_space<vmem>>, vector<1x256x96xbf16>,
    return
  }
  func.func @transform_0(%arg0: i32) -> (i32, i32, i32) {
    %c0_i32 = arith.constant 0 : i32
    %c0_i32_0 = arith.constant 0 : i32
    %c0_i32_1 = arith.constant 0 : i32
    return %arg0, %c0_i32, %c0_i32_0 : i32, i32, i32
  }
  func.func @transform_1(%arg0: i32) -> (i32, i32) {
    %c0_i32 = arith.constant 0 : i32
    %c0_i32_0 = arith.constant 0 : i32
    %c0_i32_1 = arith.constant 0 : i32
    return %c0_i32, %c0_i32_0 : i32, i32
  }
  func.func @transform_2(%arg0: i32) -> (i32, i32) {
    %c0_i32 = arith.constant 0 : i32
    %c0_i32_0 = arith.constant 0 : i32
    %c0_i32_1 = arith.constant 0 : i32
    return %c0_i32, %c0_i32_0 : i32, i32
  }
  func.func @transform_3(%arg0: i32) -> (i32, i32) {
    %c0_i32 = arith.constant 0 : i32
    %c0_i32_0 = arith.constant 0 : i32
    %c0_i32_1 = arith.constant 0 : i32
    return %c0_i32, %c0_i32_0 : i32, i32
  }
  func.func @transform_4(%arg0: i32) -> (i32, i32) {
    %c0_i32 = arith.constant 0 : i32
    %c0_i32_0 = arith.constant 0 : i32
    %c0_i32_1 = arith.constant 0 : i32
    return %c0_i32, %c0_i32_0 : i32, i32
  }
  func.func @transform_5(%arg0: i32) -> (i32, i32, i32) {
    %c0_i32 = arith.constant 0 : i32
    %c0_i32_0 = arith.constant 0 : i32
    %c0_i32_1 = arith.constant 0 : i32
    return %arg0, %c0_i32, %c0_i32_0 : i32, i32, i32
  }
}

module attributes {stable_mosaic.version = 11 : i64} {
  func.func @attn_kernel(%arg0: i32, %arg1: i32, %arg2: memref<1x3x256x4xbf16, #tpu.memory_space<vmem>>, %arg3: memref<1x256x32xf32, #tpu.memory_space<vmem>>, %arg4: memref<1x4x32xbf16, #tpu.memory_space<vmem>>, %arg5: memref<1x32xf32, #tpu.memory_space<vmem>>, %arg6: memref<1x256x32xf32, #tpu.memory_space<vmem>>) attributes {dimension_semantics = [#tpu.dimension_semantics<parallel>, #tpu.dimension_semantics<arbitrary>], iteration_bounds = array<i64: 2, 8>, scalar_prefetch = 0 : i64, scratch_operands = 0 : i64, tpu.core_type = #tpu.core_type<tc>, window_params = [{transform_indices = @transform_0, window_bounds = array<i64: 1, 3, 256, 4>}, {transform_indices = @transform_1, window_bounds = array<i64: 1, 256, 32>}, {transform_indices = @transform_2, window_bounds = array<i64: 1, 4, 32>}, {pipeline_mode = #tpu.pipeline_mode<synchronous>, transform_indices = @transform_3, window_bounds = array<i64: 1, 32>}, {transform_indices = @transform_4, window_bounds = array<i64: 1, 256, 32>}]} {
    %c0_i32 = arith.constant 0 : i32
    %0 = arith.cmpi eq, %arg1, %c0_i32 : i32
    %1 = arith.extui %0 : i1 to i32
    %c0_i32_0 = arith.constant 0 : i32
    %2 = arith.cmpi ne, %1, %c0_i32_0 : i32
    scf.if %2 {
      %c0_23 = arith.constant 0 : index
      %c0_24 = arith.constant 0 : index
      %c0_25 = arith.constant 0 : index
      %32 = vector.load %arg3[%c0_23, %c0_24, %c0_25] : memref<1x256x32xf32, #tpu.memory_space<vmem>>, vector<1x256x32xf32>
      %33 = vector.shape_cast %32 : vector<1x256x32xf32> to vector<256x32xf32>
      %c0_26 = arith.constant 0 : index
      %c0_27 = arith.constant 0 : index
      %34 = vector.load %arg5[%c0_26, %c0_27] : memref<1x32xf32, #tpu.memory_space<vmem>>, vector<1x32xf32>
      %35 = vector.broadcast %34 : vector<1x32xf32> to vector<256x32xf32>
      %36 = arith.addf %33, %35 : vector<256x32xf32>
      %c0_28 = arith.constant 0 : index
      %c0_29 = arith.constant 0 : index
      %c0_30 = arith.constant 0 : index
      %37 = vector.load %arg6[%c0_28, %c0_29, %c0_30] : memref<1x256x32xf32, #tpu.memory_space<vmem>>, vector<1x256x32xf32>
      %38 = vector.shape_cast %37 : vector<1x256x32xf32> to vector<256x32xf32>
      %39 = vector.shape_cast %36 : vector<256x32xf32> to vector<1x256x32xf32>
      tpu.vector_store %arg6[%c0_28, %c0_29, %c0_30], %39 {strides = array<i32>} : memref<1x256x32xf32, #tpu.memory_space<vmem>>, vector<1x256x32xf32>,
    } else {
    }
    %c0 = arith.constant 0 : index
    %c0_1 = arith.constant 0 : index
    %c0_2 = arith.constant 0 : index
    %c0_3 = arith.constant 0 : index
    %3 = vector.load %arg2[%c0, %c0_1, %c0_2, %c0_3] : memref<1x3x256x4xbf16, #tpu.memory_space<vmem>>, vector<1x1x256x4xbf16>
    %4 = vector.shape_cast %3 : vector<1x1x256x4xbf16> to vector<256x4xbf16>
    %c0_4 = arith.constant 0 : index
    %c1 = arith.constant 1 : index
    %c0_5 = arith.constant 0 : index
    %c0_6 = arith.constant 0 : index
    %5 = vector.load %arg2[%c0_4, %c1, %c0_5, %c0_6] : memref<1x3x256x4xbf16, #tpu.memory_space<vmem>>, vector<1x1x256x4xbf16>
    %6 = vector.shape_cast %5 : vector<1x1x256x4xbf16> to vector<256x4xbf16>
    %c0_7 = arith.constant 0 : index
    %c2 = arith.constant 2 : index
    %c0_8 = arith.constant 0 : index
    %c0_9 = arith.constant 0 : index
    %7 = vector.load %arg2[%c0_7, %c2, %c0_8, %c0_9] : memref<1x3x256x4xbf16, #tpu.memory_space<vmem>>, vector<1x1x256x4xbf16>
    %8 = vector.shape_cast %7 : vector<1x1x256x4xbf16> to vector<256x4xbf16>
    %cst = arith.constant dense<0.000000e+00> : vector<256x256xf32>
    %9 = tpu.matmul %4, %6, %cst {dimension_numbers = #tpu.dot_dimension_numbers<[1], [1], [0], [0], [0, 0, 1, 0], [], []>} : vector<256x4xbf16>, vector<256x4xbf16>, vector<256x256xf32> -> vector<256x256xf32>
    %cst_10 = arith.constant dense<0xFF800000> : vector<256xf32>
    %10 = vector.multi_reduction <maximumf>, %9, %cst_10 [1] : vector<256x256xf32> to vector<256xf32>
    %11 = vector.shape_cast %10 : vector<256xf32> to vector<256x1xf32>
    %12 = vector.broadcast %11 : vector<256x1xf32> to vector<256x256xf32>
    %13 = arith.subf %9, %12 : vector<256x256xf32>
    %14 = math.exp %13 : vector<256x256xf32>
    %cst_11 = arith.constant dense<0.000000e+00> : vector<256xf32>
    %15 = vector.multi_reduction <add>, %14, %cst_11 [1] : vector<256x256xf32> to vector<256xf32>
    %16 = vector.shape_cast %15 : vector<256xf32> to vector<256x1xf32>
    %17 = tpu.reciprocal %16 {approx = true} : vector<256x1xf32> -> vector<256x1xf32>
    %18 = vector.broadcast %17 : vector<256x1xf32> to vector<256x256xf32>
    %19 = arith.mulf %14, %18 : vector<256x256xf32>
    %20 = arith.truncf %19 : vector<256x256xf32> to vector<256x256xbf16>
    %cst_12 = arith.constant dense<0.000000e+00> : vector<256x4xf32>
    %21 = tpu.matmul %20, %8, %cst_12 {dimension_numbers = #tpu.dot_dimension_numbers<[1], [0], [0], [1], [0, 0, 1, 1], [], []>} : vector<256x256xbf16>, vector<256x4xbf16>, vector<256x4xf32> -> vector<256x4xf32>
    %c0_13 = arith.constant 0 : index
    %c0_14 = arith.constant 0 : index
    %c0_15 = arith.constant 0 : index
    %22 = vector.load %arg6[%c0_13, %c0_14, %c0_15] : memref<1x256x32xf32, #tpu.memory_space<vmem>>, vector<1x256x32xf32>
    %23 = vector.shape_cast %22 : vector<1x256x32xf32> to vector<256x32xf32>
    %24 = arith.truncf %21 : vector<256x4xf32> to vector<256x4xbf16>
    %c0_16 = arith.constant 0 : index
    %c0_17 = arith.constant 0 : index
    %c0_18 = arith.constant 0 : index
    %25 = vector.load %arg4[%c0_16, %c0_17, %c0_18] : memref<1x4x32xbf16, #tpu.memory_space<vmem>>, vector<1x4x32xbf16>
    %26 = vector.shape_cast %25 : vector<1x4x32xbf16> to vector<4x32xbf16>
    %cst_19 = arith.constant dense<0.000000e+00> : vector<256x32xf32>
    %27 = tpu.matmul %24, %26, %cst_19 {dimension_numbers = #tpu.dot_dimension_numbers<[1], [0], [0], [1], [0, 0, 1, 1], [], []>} : vector<256x4xbf16>, vector<4x32xbf16>, vector<256x32xf32> -> vector<256x32xf32>
    %28 = arith.addf %23, %27 : vector<256x32xf32>
    %c0_20 = arith.constant 0 : index
    %c0_21 = arith.constant 0 : index
    %c0_22 = arith.constant 0 : index
    %29 = vector.load %arg6[%c0_20, %c0_21, %c0_22] : memref<1x256x32xf32, #tpu.memory_space<vmem>>, vector<1x256x32xf32>
    %30 = vector.shape_cast %29 : vector<1x256x32xf32> to vector<256x32xf32>
    %31 = vector.shape_cast %28 : vector<256x32xf32> to vector<1x256x32xf32>
    tpu.vector_store %arg6[%c0_20, %c0_21, %c0_22], %31 {strides = array<i32>} : memref<1x256x32xf32, #tpu.memory_space<vmem>>, vector<1x256x32xf32>,
    return
  }
  func.func @transform_0(%arg0: i32, %arg1: i32) -> (i32, i32, i32, i32) {
    %c0_i32 = arith.constant 0 : i32
    %c0_i32_0 = arith.constant 0 : i32
    %c0_i32_1 = arith.constant 0 : i32
    return %arg0, %arg1, %c0_i32, %c0_i32_0 : i32, i32, i32, i32
  }
  func.func @transform_1(%arg0: i32, %arg1: i32) -> (i32, i32, i32) {
    %c0_i32 = arith.constant 0 : i32
    %c0_i32_0 = arith.constant 0 : i32
    %c0_i32_1 = arith.constant 0 : i32
    return %arg0, %c0_i32, %c0_i32_0 : i32, i32, i32
  }
  func.func @transform_2(%arg0: i32, %arg1: i32) -> (i32, i32, i32) {
    %c0_i32 = arith.constant 0 : i32
    %c0_i32_0 = arith.constant 0 : i32
    %c0_i32_1 = arith.constant 0 : i32
    return %arg1, %c0_i32, %c0_i32_0 : i32, i32, i32
  }
  func.func @transform_3(%arg0: i32, %arg1: i32) -> (i32, i32) {
    %c0_i32 = arith.constant 0 : i32
    %c0_i32_0 = arith.constant 0 : i32
    %c0_i32_1 = arith.constant 0 : i32
    return %c0_i32, %c0_i32_0 : i32, i32
  }
  func.func @transform_4(%arg0: i32, %arg1: i32) -> (i32, i32, i32) {
    %c0_i32 = arith.constant 0 : i32
    %c0_i32_0 = arith.constant 0 : i32
    %c0_i32_1 = arith.constant 0 : i32
    return %arg0, %c0_i32, %c0_i32_0 : i32, i32, i32
  }
}

module attributes {stable_mosaic.version = 11 : i64} {
  func.func @stats_kernel(%arg0: i32, %arg1: memref<1x256x32xf32, #tpu.memory_space<vmem>>, %arg2: memref<2x32xf32, #tpu.memory_space<vmem>>) attributes {dimension_semantics = [#tpu.dimension_semantics<arbitrary>], iteration_bounds = array<i64: 2>, scalar_prefetch = 0 : i64, scratch_operands = 0 : i64, tpu.core_type = #tpu.core_type<tc>, window_params = [{transform_indices = @transform_0, window_bounds = array<i64: 1, 256, 32>}, {pipeline_mode = #tpu.pipeline_mode<synchronous>, transform_indices = @transform_1, window_bounds = array<i64: 2, 32>}]} {
    %c0_i32 = arith.constant 0 : i32
    %0 = arith.cmpi eq, %arg0, %c0_i32 : i32
    %1 = arith.extui %0 : i1 to i32
    %c0_i32_0 = arith.constant 0 : i32
    %2 = arith.cmpi ne, %1, %c0_i32_0 : i32
    scf.if %2 {
      %cst_11 = arith.constant 0.000000e+00 : f32
      %16 = vector.broadcast %cst_11 : f32 to vector<2x32xf32>
      %c0_12 = arith.constant 0 : index
      %c0_13 = arith.constant 0 : index
      %17 = vector.load %arg2[%c0_12, %c0_13] : memref<2x32xf32, #tpu.memory_space<vmem>>, vector<2x32xf32>
      tpu.vector_store %arg2[%c0_12, %c0_13], %16 {strides = array<i32>} : memref<2x32xf32, #tpu.memory_space<vmem>>, vector<2x32xf32>,
    } else {
    }
    %c0 = arith.constant 0 : index
    %c0_1 = arith.constant 0 : index
    %c0_2 = arith.constant 0 : index
    %3 = vector.load %arg1[%c0, %c0_1, %c0_2] : memref<1x256x32xf32, #tpu.memory_space<vmem>>, vector<1x256x32xf32>
    %4 = vector.shape_cast %3 : vector<1x256x32xf32> to vector<256x32xf32>
    %c0_3 = arith.constant 0 : index
    %c0_4 = arith.constant 0 : index
    %5 = vector.load %arg2[%c0_3, %c0_4] : memref<2x32xf32, #tpu.memory_space<vmem>>, vector<1x32xf32>
    %cst = arith.constant dense<0.000000e+00> : vector<32xf32>
    %6 = vector.multi_reduction <add>, %4, %cst [0] : vector<256x32xf32> to vector<32xf32>
    %7 = vector.shape_cast %6 : vector<32xf32> to vector<1x32xf32>
    %8 = arith.addf %5, %7 : vector<1x32xf32>
    %c0_5 = arith.constant 0 : index
    %c0_6 = arith.constant 0 : index
    %9 = vector.load %arg2[%c0_5, %c0_6] : memref<2x32xf32, #tpu.memory_space<vmem>>, vector<1x32xf32>
    tpu.vector_store %arg2[%c0_5, %c0_6], %8 {strides = array<i32>} : memref<2x32xf32, #tpu.memory_space<vmem>>, vector<1x32xf32>,
    %c1 = arith.constant 1 : index
    %c0_7 = arith.constant 0 : index
    %10 = vector.load %arg2[%c1, %c0_7] : memref<2x32xf32, #tpu.memory_space<vmem>>, vector<1x32xf32>
    %11 = arith.mulf %4, %4 : vector<256x32xf32>
    %cst_8 = arith.constant dense<0.000000e+00> : vector<32xf32>
    %12 = vector.multi_reduction <add>, %11, %cst_8 [0] : vector<256x32xf32> to vector<32xf32>
    %13 = vector.shape_cast %12 : vector<32xf32> to vector<1x32xf32>
    %14 = arith.addf %10, %13 : vector<1x32xf32>
    %c1_9 = arith.constant 1 : index
    %c0_10 = arith.constant 0 : index
    %15 = vector.load %arg2[%c1_9, %c0_10] : memref<2x32xf32, #tpu.memory_space<vmem>>, vector<1x32xf32>
    tpu.vector_store %arg2[%c1_9, %c0_10], %14 {strides = array<i32>} : memref<2x32xf32, #tpu.memory_space<vmem>>, vector<1x32xf32>,
    return
  }
  func.func @transform_0(%arg0: i32) -> (i32, i32, i32) {
    %c0_i32 = arith.constant 0 : i32
    %c0_i32_0 = arith.constant 0 : i32
    %c0_i32_1 = arith.constant 0 : i32
    return %arg0, %c0_i32, %c0_i32_0 : i32, i32, i32
  }
  func.func @transform_1(%arg0: i32) -> (i32, i32) {
    %c0_i32 = arith.constant 0 : i32
    %c0_i32_0 = arith.constant 0 : i32
    %c0_i32_1 = arith.constant 0 : i32
    return %c0_i32, %c0_i32_0 : i32, i32
  }
}

module attributes {stable_mosaic.version = 11 : i64} {
  func.func @mlp_kernel(%arg0: i32, %arg1: i32, %arg2: memref<1x256x32xf32, #tpu.memory_space<vmem>>, %arg3: memref<1x32xf32, #tpu.memory_space<vmem>>, %arg4: memref<1x32xf32, #tpu.memory_space<vmem>>, %arg5: memref<32x128xbf16, #tpu.memory_space<vmem>>, %arg6: memref<1x128xf32, #tpu.memory_space<vmem>>, %arg7: memref<128x32xbf16, #tpu.memory_space<vmem>>, %arg8: memref<1x32xf32, #tpu.memory_space<vmem>>, %arg9: memref<1x256x32xf32, #tpu.memory_space<vmem>>) attributes {dimension_semantics = [#tpu.dimension_semantics<parallel>, #tpu.dimension_semantics<parallel>], iteration_bounds = array<i64: 2, 1>, scalar_prefetch = 0 : i64, scratch_operands = 0 : i64, tpu.core_type = #tpu.core_type<tc>, window_params = [{transform_indices = @transform_0, window_bounds = array<i64: 1, 256, 32>}, {pipeline_mode = #tpu.pipeline_mode<synchronous>, transform_indices = @transform_1, window_bounds = array<i64: 1, 32>}, {pipeline_mode = #tpu.pipeline_mode<synchronous>, transform_indices = @transform_2, window_bounds = array<i64: 1, 32>}, {pipeline_mode = #tpu.pipeline_mode<synchronous>, transform_indices = @transform_3, window_bounds = array<i64: 32, 128>}, {pipeline_mode = #tpu.pipeline_mode<synchronous>, transform_indices = @transform_4, window_bounds = array<i64: 1, 128>}, {pipeline_mode = #tpu.pipeline_mode<synchronous>, transform_indices = @transform_5, window_bounds = array<i64: 128, 32>}, {pipeline_mode = #tpu.pipeline_mode<synchronous>, transform_indices = @transform_6, window_bounds = array<i64: 1, 32>}, {transform_indices = @transform_7, window_bounds = array<i64: 1, 256, 32>}]} {
    %c0 = arith.constant 0 : index
    %c0_0 = arith.constant 0 : index
    %c0_1 = arith.constant 0 : index
    %0 = vector.load %arg2[%c0, %c0_0, %c0_1] : memref<1x256x32xf32, #tpu.memory_space<vmem>>, vector<1x256x32xf32>
    %1 = vector.shape_cast %0 : vector<1x256x32xf32> to vector<256x32xf32>
    %c0_2 = arith.constant 0 : index
    %c0_3 = arith.constant 0 : index
    %2 = vector.load %arg3[%c0_2, %c0_3] : memref<1x32xf32, #tpu.memory_space<vmem>>, vector<1x32xf32>
    %3 = vector.broadcast %2 : vector<1x32xf32> to vector<256x32xf32>
    %4 = arith.mulf %1, %3 : vector<256x32xf32>
    %c0_4 = arith.constant 0 : index
    %c0_5 = arith.constant 0 : index
    %5 = vector.load %arg4[%c0_4, %c0_5] : memref<1x32xf32, #tpu.memory_space<vmem>>, vector<1x32xf32>
    %6 = vector.broadcast %5 : vector<1x32xf32> to vector<256x32xf32>
    %7 = arith.addf %4, %6 : vector<256x32xf32>
    %8 = arith.truncf %7 : vector<256x32xf32> to vector<256x32xbf16>
    %c0_6 = arith.constant 0 : index
    %c0_7 = arith.constant 0 : index
    %9 = vector.load %arg5[%c0_6, %c0_7] : memref<32x128xbf16, #tpu.memory_space<vmem>>, vector<32x128xbf16>
    %cst = arith.constant dense<0.000000e+00> : vector<256x128xf32>
    %10 = tpu.matmul %8, %9, %cst {dimension_numbers = #tpu.dot_dimension_numbers<[1], [0], [0], [1], [0, 0, 1, 1], [], []>} : vector<256x32xbf16>, vector<32x128xbf16>, vector<256x128xf32> -> vector<256x128xf32>
    %c0_8 = arith.constant 0 : index
    %c0_9 = arith.constant 0 : index
    %11 = vector.load %arg6[%c0_8, %c0_9] : memref<1x128xf32, #tpu.memory_space<vmem>>, vector<1x128xf32>
    %12 = vector.broadcast %11 : vector<1x128xf32> to vector<256x128xf32>
    %13 = arith.addf %10, %12 : vector<256x128xf32>
    %cst_10 = arith.constant 0.000000e+00 : f32
    %14 = vector.broadcast %cst_10 : f32 to vector<256x128xf32>
    %15 = arith.maximumf %13, %14 : vector<256x128xf32>
    %16 = arith.truncf %15 : vector<256x128xf32> to vector<256x128xbf16>
    %c0_11 = arith.constant 0 : index
    %c0_12 = arith.constant 0 : index
    %17 = vector.load %arg7[%c0_11, %c0_12] : memref<128x32xbf16, #tpu.memory_space<vmem>>, vector<128x32xbf16>
    %cst_13 = arith.constant dense<0.000000e+00> : vector<256x32xf32>
    %18 = tpu.matmul %16, %17, %cst_13 {dimension_numbers = #tpu.dot_dimension_numbers<[1], [0], [0], [1], [0, 0, 1, 1], [], []>} : vector<256x128xbf16>, vector<128x32xbf16>, vector<256x32xf32> -> vector<256x32xf32>
    %c0_14 = arith.constant 0 : index
    %c0_15 = arith.constant 0 : index
    %19 = vector.load %arg8[%c0_14, %c0_15] : memref<1x32xf32, #tpu.memory_space<vmem>>, vector<1x32xf32>
    %20 = vector.broadcast %19 : vector<1x32xf32> to vector<256x32xf32>
    %21 = arith.addf %18, %20 : vector<256x32xf32>
    %22 = arith.addf %1, %21 : vector<256x32xf32>
    %c0_16 = arith.constant 0 : index
    %c0_17 = arith.constant 0 : index
    %c0_18 = arith.constant 0 : index
    %23 = vector.load %arg9[%c0_16, %c0_17, %c0_18] : memref<1x256x32xf32, #tpu.memory_space<vmem>>, vector<1x256x32xf32>
    %24 = vector.shape_cast %23 : vector<1x256x32xf32> to vector<256x32xf32>
    %25 = vector.shape_cast %22 : vector<256x32xf32> to vector<1x256x32xf32>
    tpu.vector_store %arg9[%c0_16, %c0_17, %c0_18], %25 {strides = array<i32>} : memref<1x256x32xf32, #tpu.memory_space<vmem>>, vector<1x256x32xf32>,
    return
  }
  func.func @transform_0(%arg0: i32, %arg1: i32) -> (i32, i32, i32) {
    %c0_i32 = arith.constant 0 : i32
    %c0_i32_0 = arith.constant 0 : i32
    return %arg0, %arg1, %c0_i32 : i32, i32, i32
  }
  func.func @transform_1(%arg0: i32, %arg1: i32) -> (i32, i32) {
    %c0_i32 = arith.constant 0 : i32
    %c0_i32_0 = arith.constant 0 : i32
    %c0_i32_1 = arith.constant 0 : i32
    return %c0_i32, %c0_i32_0 : i32, i32
  }
  func.func @transform_2(%arg0: i32, %arg1: i32) -> (i32, i32) {
    %c0_i32 = arith.constant 0 : i32
    %c0_i32_0 = arith.constant 0 : i32
    %c0_i32_1 = arith.constant 0 : i32
    return %c0_i32, %c0_i32_0 : i32, i32
  }
  func.func @transform_3(%arg0: i32, %arg1: i32) -> (i32, i32) {
    %c0_i32 = arith.constant 0 : i32
    %c0_i32_0 = arith.constant 0 : i32
    %c0_i32_1 = arith.constant 0 : i32
    return %c0_i32, %c0_i32_0 : i32, i32
  }
  func.func @transform_4(%arg0: i32, %arg1: i32) -> (i32, i32) {
    %c0_i32 = arith.constant 0 : i32
    %c0_i32_0 = arith.constant 0 : i32
    %c0_i32_1 = arith.constant 0 : i32
    return %c0_i32, %c0_i32_0 : i32, i32
  }
  func.func @transform_5(%arg0: i32, %arg1: i32) -> (i32, i32) {
    %c0_i32 = arith.constant 0 : i32
    %c0_i32_0 = arith.constant 0 : i32
    %c0_i32_1 = arith.constant 0 : i32
    return %c0_i32, %c0_i32_0 : i32, i32
  }
  func.func @transform_6(%arg0: i32, %arg1: i32) -> (i32, i32) {
    %c0_i32 = arith.constant 0 : i32
    %c0_i32_0 = arith.constant 0 : i32
    %c0_i32_1 = arith.constant 0 : i32
    return %c0_i32, %c0_i32_0 : i32, i32
  }
  func.func @transform_7(%arg0: i32, %arg1: i32) -> (i32, i32, i32) {
    %c0_i32 = arith.constant 0 : i32
    %c0_i32_0 = arith.constant 0 : i32
    return %arg0, %arg1, %c0_i32 : i32, i32, i32
  }
}

</mosaic_0001>

<llo_original>
// kernel: multi_head_attention_block.5
$region0: #{multi_head_attention_block.5}
  #allocation0 [shape = 'u32[]', space=smem, size = 0x4, offset = 0x4, fixed_abs, tag = 'smem constant byte address 0x4 - core index']
  #allocation1 [shape = 'u32[144,128]{1,0:T(1,128)}', space=vmem, size = 0x12000, scoped, tag = 'internal scratch']
  %s0 = inlined_call_operand.hbm [shape: f32[2,256,32], index: 0, kind: input, shape index: {}]
  %s1 = inlined_call_operand.vmem [shape: f32[2,32], index: 1, kind: output, shape index: {}]
  %s2 = sld [smem:[#allocation0]]
  $region45: #{multi_head_attention_block.5} parent=0
    _
  %s4 = ssub.s32 1, %s2
  %s5 = scalar_select 0, %s4, %s2
  $region1: #{multi_head_attention_block.5} parent=0
    #allocation2 [shape = 'u8[262144]{0}', space=vmem, size = 0x40000, scoped, tag = 'input window, operand 0']
    #allocation3 [shape = 's32[2]{0}', space=sflag, size = 0x8, scoped, tag = 'scoped memory for multi_head_attention_block.5']
    %6 = vsyncpa [#allocation3], 0
    %s7 = scalar_lea.sflag [#allocation3], 1
    %8 = vsyncpa %s7, 0
    loop: start=0, step=1, limit=4
    $region2: #{multi_head_attention_block.5} parent=1 // loop_pre_header
      _
    $region3: #{multi_head_attention_block.5} parent=1 // loop_header
      %s10 = sphi 0, %s14
      %p11 = scmp.ge.s32.totalorder %s10, 4
      %s20 = sphi 0, %s22
      %s23 = sphi 0, %s20
      %s24 = sphi 0, %s23
      %s40 = sphi 0, %s24
      %s44 = sphi 0, %s44
      %s46 = sphi 0, %s44
      %s47 = sphi 0, %s46
      %s61 = sphi 0, %s47
    $region4: #{multi_head_attention_block.5} parent=1 // loop_header_branch
      %13 = sbr.rel (%p11) target = $region8
    $region5: #{multi_head_attention_block.5} parent=1 // loop_body
      %s15 = ssub.s32 %s10, 1
      %s16 = ssub.s32 %s10, 2
      %s17 = sadd.s32 %s10, 1
      %s18 = ssub.s32 %s10, %s17
      %p19 = scmp.eq.s32.totalorder %s18, 0
      %s21 = sadd.s32 %s20, 1
      %s22 = scalar_select %p19, %s20, %s21
      %p25 = pneg %p19
      %p26 = scmp.eq.s32.totalorder %s10, 1
      %p27 = por %p25, %p26
      %p28 = scmp.ne.s32.totalorder %s20, %s23
      %p29 = scmp.eq.s32.totalorder %s10, 0
      %p30 = por %p28, %p29
      %p31 = scmp.ne.s32.totalorder %s20, %s23
      %p32 = scmp.eq.s32.totalorder %s15, 1
      %p33 = por %p31, %p32
      %p34 = scmp.ne.s32.totalorder %s23, %s24
      %p35 = scmp.eq.s32.totalorder %s15, 0
      %p36 = por %p34, %p35
      %p37 = scmp.ne.s32.totalorder %s23, %s24
      %p38 = scmp.eq.s32.totalorder %s16, 1
      %p39 = por %p37, %p38
      %p41 = scmp.ne.s32.totalorder %s24, %s40
      %p42 = scmp.eq.s32.totalorder %s16, 0
      %p43 = por %p41, %p42
      %s45 = sadd.s32 %s44, 1
      %p48 = scmp.eq.s32.totalorder %s10, 1
      %p49 = scmp.ne.s32.totalorder %s44, %s46
      %p50 = scmp.eq.s32.totalorder %s10, 0
      %p51 = por %p49, %p50
      %p52 = scmp.ne.s32.totalorder %s44, %s46
      %p53 = scmp.eq.s32.totalorder %s15, 1
      %p54 = por %p52, %p53
      %p55 = scmp.ne.s32.totalorder %s46, %s47
      %p56 = scmp.eq.s32.totalorder %s15, 0
      %p57 = por %p55, %p56
      %p58 = scmp.ne.s32.totalorder %s46, %s47
      %p59 = scmp.eq.s32.totalorder %s16, 1
      %p60 = por %p58, %p59
      %p62 = scmp.ne.s32.totalorder %s47, %s61
      %p63 = scmp.eq.s32.totalorder %s16, 0
      %p64 = por %p62, %p63
      %p65 = scmp.le.s32.totalorder 1, %s10
      %p66 = scmp.lt.s32.totalorder %s10, 3
      %p67 = pnand %p65, %p66
      %p68 = pneg %p67
      // Predicated region
      $region9: #{multi_head_attention_block.5} parent=5 // pred_check
        _
      $region10: #{multi_head_attention_block.5} parent=5 // pred_check_branch
        %70 = sbr.rel (%p67) target = $region12
      $region11: #{multi_head_attention_block.5} parent=5 // pred_region
        %s71 = ssub.s32 %s10, 1
      $region12: #{multi_head_attention_block.5} parent=5 // pred_fallthru
        _
      %p72 = scmp.lt.s32.totalorder %s10, 2
      // Predicated region
      $region13: #{multi_head_attention_block.5} parent=5 // pred_check
        %p73 = pneg %p72
      $region14: #{multi_head_attention_block.5} parent=5 // pred_check_branch
        %75 = sbr.rel (%p73) target = $region16
      $region15: #{multi_head_attention_block.5} parent=5 // pred_region
        // Predicated region
        $region17: #{multi_head_attention_block.5} parent=15 // pred_check
          %p76 = pneg %p30
        $region18: #{multi_head_attention_block.5} parent=15 // pred_check_branch
          %78 = sbr.rel (%p76) target = $region20
        $region19: #{multi_head_attention_block.5} parent=15 // pred_region
          %s79 = sand.u32 %s20, 1
          %s80 = scalar_lea.sflag [#allocation3], %s79
          %s81 = sand.u32 %s20, 1
          %s82 = smul.addr %s81, 256
          %s83 = scalar_lea.vmem [#allocation2], %s82
          %s85 = ssub.s32 4096, 4096
          %86 = vsyncadd %s80, %s85
          %s87 = smul.addr %s10, 32
          %s88 = smul.addr %s87, 128
          %s89 = scalar_lea.hbm %s0, %s88
          %s90 = sshll.u32 %s83, 4
          %s91 = int_to_ptr.vmem [resolvable:$true] %s90
          %96 = dma.hbm_to_vmem [thread:$0]  %s89, 4096, %s91, %s80, 128, 128, 8
        $region20: #{multi_head_attention_block.5} parent=15 // pred_fallthru
          _
      $region16: #{multi_head_attention_block.5} parent=5 // pred_fallthru
        _
      %p97 = scmp.le.s32.totalorder 1, %s10
      %p98 = scmp.lt.s32.totalorder %s10, 3
      %p99 = pnand %p97, %p98
      %p100 = pneg %p99
      // Predicated region
      $region21: #{multi_head_attention_block.5} parent=5 // pred_check
        _
      $region22: #{multi_head_attention_block.5} parent=5 // pred_check_branch
        %102 = sbr.rel (%p99) target = $region24
      $region23: #{multi_head_attention_block.5} parent=5 // pred_region
        %s103 = ssub.s32 %s10, 1
        %s104 = sand.u32 %s23, 1
        %s105 = scalar_lea.sflag [#allocation3], %s104
        %s106 = sand.u32 %s23, 1
        %s107 = smul.addr %s106, 256
        %s108 = scalar_lea.vmem [#allocation2], %s107
        // Predicated region
        $region25: #{multi_head_attention_block.5} parent=23 // pred_check
          %p109 = pneg %p36
        $region26: #{multi_head_attention_block.5} parent=23 // pred_check_branch
          %111 = sbr.rel (%p109) target = $region28
        $region27: #{multi_head_attention_block.5} parent=23 // pred_region
          %112 = dma.done %s105, 4096
        $region28: #{multi_head_attention_block.5} parent=23 // pred_fallthru
          _
        %s113 = sand.u32 %s23, 1
        %s114 = scalar_lea.sflag [#allocation3], %s113
        %s115 = sand.u32 %s23, 1
        %s116 = smul.addr %s115, 256
        %s117 = scalar_lea.vmem [#allocation2], %s116
        %p118 = pneg %p36
        %p119 = pneg %p33
        %p120 = pneg %p57
        %p121 = pneg %p54
        %p122 = scmp.eq.s32.totalorder %s15, 0
        // Predicated region
        $region29: #{multi_head_attention_block.5} parent=23 // pred_check
          %p123 = pneg %p122
        $region30: #{multi_head_attention_block.5} parent=23 // pred_check_branch
          %125 = sbr.rel (%p123) target = $region32
        $region31: #{multi_head_attention_block.5} parent=23 // pred_region
          %vm126 = vcmask 254976
          %127 = vst.msk [vmem:[%s1] sm:$0x3] %vm126, 0.0
        $region32: #{multi_head_attention_block.5} parent=23 // pred_fallthru
          _
        %v128 = vld [vmem:[%s108] sm:$0xff]
        %v129 = vld [vmem:[%s108 + $0x8] sm:$0xff]
        %v130 = vld [vmem:[%s108 + $0x10] sm:$0xff]
        %v131 = vld [vmem:[%s108 + $0x18] sm:$0xff]
        %v132 = vld [vmem:[%s108 + $0x20] sm:$0xff]
        %v133 = vld [vmem:[%s108 + $0x28] sm:$0xff]
        %v134 = vld [vmem:[%s108 + $0x30] sm:$0xff]
        %v135 = vld [vmem:[%s108 + $0x38] sm:$0xff]
        %v136 = vld [vmem:[%s108 + $0x40] sm:$0xff]
        %v137 = vld [vmem:[%s108 + $0x48] sm:$0xff]
        %v138 = vld [vmem:[%s108 + $0x50] sm:$0xff]
        %v139 = vld [vmem:[%s108 + $0x58] sm:$0xff]
        %v140 = vld [vmem:[%s108 + $0x60] sm:$0xff]
        %v141 = vld [vmem:[%s108 + $0x68] sm:$0xff]
        %v142 = vld [vmem:[%s108 + $0x70] sm:$0xff]
        %v143 = vld [vmem:[%s108 + $0x78] sm:$0xff]
        %v144 = vld [vmem:[%s108 + $0x80] sm:$0xff]
        %v145 = vld [vmem:[%s108 + $0x88] sm:$0xff]
        %v146 = vld [vmem:[%s108 + $0x90] sm:$0xff]
        %v147 = vld [vmem:[%s108 + $0x98] sm:$0xff]
        %v148 = vld [vmem:[%s108 + $0xa0] sm:$0xff]
        %v149 = vld [vmem:[%s108 + $0xa8] sm:$0xff]
        %v150 = vld [vmem:[%s108 + $0xb0] sm:$0xff]
        %v151 = vld [vmem:[%s108 + $0xb8] sm:$0xff]
        %v152 = vld [vmem:[%s108 + $0xc0] sm:$0xff]
        %v153 = vld [vmem:[%s108 + $0xc8] sm:$0xff]
        %v154 = vld [vmem:[%s108 + $0xd0] sm:$0xff]
        %v155 = vld [vmem:[%s108 + $0xd8] sm:$0xff]
        %v156 = vld [vmem:[%s108 + $0xe0] sm:$0xff]
        %v157 = vld [vmem:[%s108 + $0xe8] sm:$0xff]
        %v158 = vld [vmem:[%s108 + $0xf0] sm:$0xff]
        %v159 = vld [vmem:[%s108 + $0xf8] sm:$0xff]
        %v160 = vld [vmem:[%s1] sm:$0x1]
        %vm161 = vcmask 261120
        %v162 = vsel %vm161, %v128, 0.0
        %v163 = vsel %vm161, %v129, 0.0
        %v164 = vadd.f32 %v162, %v163
        %v165 = vsel %vm161, %v130, 0.0
        %v166 = vadd.f32 %v164, %v165
        %v167 = vsel %vm161, %v131, 0.0
        %v168 = vadd.f32 %v166, %v167
        %v169 = vsel %vm161, %v132, 0.0
        %v170 = vadd.f32 %v168, %v169
        %v171 = vsel %vm161, %v133, 0.0
        %v172 = vadd.f32 %v170, %v171
        %v173 = vsel %vm161, %v134, 0.0
        %v174 = vadd.f32 %v172, %v173
        %v175 = vsel %vm161, %v135, 0.0
        %v176 = vadd.f32 %v174, %v175
        %v177 = vsel %vm161, %v136, 0.0
        %v178 = vadd.f32 %v176, %v177
        %v179 = vsel %vm161, %v137, 0.0
        %v180 = vadd.f32 %v178, %v179
        %v181 = vsel %vm161, %v138, 0.0
        %v182 = vadd.f32 %v180, %v181
        %v183 = vsel %vm161, %v139, 0.0
        %v184 = vadd.f32 %v182, %v183
        %v185 = vsel %vm161, %v140, 0.0
        %v186 = vadd.f32 %v184, %v185
        %v187 = vsel %vm161, %v141, 0.0
        %v188 = vadd.f32 %v186, %v187
        %v189 = vsel %vm161, %v142, 0.0
        %v190 = vadd.f32 %v188, %v189
        %v191 = vsel %vm161, %v143, 0.0
        %v192 = vadd.f32 %v190, %v191
        %v193 = vsel %vm161, %v144, 0.0
        %v194 = vadd.f32 %v192, %v193
        %v195 = vsel %vm161, %v145, 0.0
        %v196 = vadd.f32 %v194, %v195
        %v197 = vsel %vm161, %v146, 0.0
        %v198 = vadd.f32 %v196, %v197
        %v199 = vsel %vm161, %v147, 0.0
        %v200 = vadd.f32 %v198, %v199
        %v201 = vsel %vm161, %v148, 0.0
        %v202 = vadd.f32 %v200, %v201
        %v203 = vsel %vm161, %v149, 0.0
        %v204 = vadd.f32 %v202, %v203
        %v205 = vsel %vm161, %v150, 0.0
        %v206 = vadd.f32 %v204, %v205
        %v207 = vsel %vm161, %v151, 0.0
        %v208 = vadd.f32 %v206, %v207
        %v209 = vsel %vm161, %v152, 0.0
        %v210 = vadd.f32 %v208, %v209
        %v211 = vsel %vm161, %v153, 0.0
        %v212 = vadd.f32 %v210, %v211
        %v213 = vsel %vm161, %v154, 0.0
        %v214 = vadd.f32 %v212, %v213
        %v215 = vsel %vm161, %v155, 0.0
        %v216 = vadd.f32 %v214, %v215
        %v217 = vsel %vm161, %v156, 0.0
        %v218 = vadd.f32 %v216, %v217
        %v219 = vsel %vm161, %v157, 0.0
        %v220 = vadd.f32 %v218, %v219
        %v221 = vsel %vm161, %v158, 0.0
        %v222 = vadd.f32 %v220, %v221
        %v223 = vsel %vm161, %v159, 0.0
        %v224 = vadd.f32 %v222, %v223
        %v225 = vrot.slane %v224, 4
        %v226 = vadd.f32 %v224, %v225
        %v227 = vrot.slane %v226, 2
        %v228 = vadd.f32 %v226, %v227
        %v229 = vrot.slane %v228, 1
        %v230 = vadd.f32 %v228, %v229
        %v231 = vadd.f32 %v160, %v230
        %vm232 = vcmask 253952
        %233 = vst.msk [vmem:[%s1] sm:$0x1] %vm232, %v231
        %v234 = vld [vmem:[%s1 + $0x1] sm:$0x1]
        %v235 = vmul.f32 %v128, %v128
        %v236 = vmul.f32 %v129, %v129
        %v237 = vmul.f32 %v130, %v130
        %v238 = vmul.f32 %v131, %v131
        %v239 = vmul.f32 %v132, %v132
        %v240 = vmul.f32 %v133, %v133
        %v241 = vmul.f32 %v134, %v134
        %v242 = vmul.f32 %v135, %v135
        %v243 = vmul.f32 %v136, %v136
        %v244 = vmul.f32 %v137, %v137
        %v245 = vmul.f32 %v138, %v138
        %v246 = vmul.f32 %v139, %v139
        %v247 = vmul.f32 %v140, %v140
        %v248 = vmul.f32 %v141, %v141
        %v249 = vmul.f32 %v142, %v142
        %v250 = vmul.f32 %v143, %v143
        %v251 = vmul.f32 %v144, %v144
        %v252 = vmul.f32 %v145, %v145
        %v253 = vmul.f32 %v146, %v146
        %v254 = vmul.f32 %v147, %v147
        %v255 = vmul.f32 %v148, %v148
        %v256 = vmul.f32 %v149, %v149
        %v257 = vmul.f32 %v150, %v150
        %v258 = vmul.f32 %v151, %v151
        %v259 = vmul.f32 %v152, %v152
        %v260 = vmul.f32 %v153, %v153
        %v261 = vmul.f32 %v154, %v154
        %v262 = vmul.f32 %v155, %v155
        %v263 = vmul.f32 %v156, %v156
        %v264 = vmul.f32 %v157, %v157
        %v265 = vmul.f32 %v158, %v158
        %v266 = vmul.f32 %v159, %v159
        %v267 = vsel %vm161, %v235, 0.0
        %v268 = vsel %vm161, %v236, 0.0
        %v269 = vadd.f32 %v267, %v268
        %v270 = vsel %vm161, %v237, 0.0
        %v271 = vadd.f32 %v269, %v270
        %v272 = vsel %vm161, %v238, 0.0
        %v273 = vadd.f32 %v271, %v272
        %v274 = vsel %vm161, %v239, 0.0
        %v275 = vadd.f32 %v273, %v274
        %v276 = vsel %vm161, %v240, 0.0
        %v277 = vadd.f32 %v275, %v276
        %v278 = vsel %vm161, %v241, 0.0
        %v279 = vadd.f32 %v277, %v278
        %v280 = vsel %vm161, %v242, 0.0
        %v281 = vadd.f32 %v279, %v280
        %v282 = vsel %vm161, %v243, 0.0
        %v283 = vadd.f32 %v281, %v282
        %v284 = vsel %vm161, %v244, 0.0
        %v285 = vadd.f32 %v283, %v284
        %v286 = vsel %vm161, %v245, 0.0
        %v287 = vadd.f32 %v285, %v286
        %v288 = vsel %vm161, %v246, 0.0
        %v289 = vadd.f32 %v287, %v288
        %v290 = vsel %vm161, %v247, 0.0
        %v291 = vadd.f32 %v289, %v290
        %v292 = vsel %vm161, %v248, 0.0
        %v293 = vadd.f32 %v291, %v292
        %v294 = vsel %vm161, %v249, 0.0
        %v295 = vadd.f32 %v293, %v294
        %v296 = vsel %vm161, %v250, 0.0
        %v297 = vadd.f32 %v295, %v296
        %v298 = vsel %vm161, %v251, 0.0
        %v299 = vadd.f32 %v297, %v298
        %v300 = vsel %vm161, %v252, 0.0
        %v301 = vadd.f32 %v299, %v300
        %v302 = vsel %vm161, %v253, 0.0
        %v303 = vadd.f32 %v301, %v302
        %v304 = vsel %vm161, %v254, 0.0
        %v305 = vadd.f32 %v303, %v304
        %v306 = vsel %vm161, %v255, 0.0
        %v307 = vadd.f32 %v305, %v306
        %v308 = vsel %vm161, %v256, 0.0
        %v309 = vadd.f32 %v307, %v308
        %v310 = vsel %vm161, %v257, 0.0
        %v311 = vadd.f32 %v309, %v310
        %v312 = vsel %vm161, %v258, 0.0
        %v313 = vadd.f32 %v311, %v312
        %v314 = vsel %vm161, %v259, 0.0
        %v315 = vadd.f32 %v313, %v314
        %v316 = vsel %vm161, %v260, 0.0
        %v317 = vadd.f32 %v315, %v316
        %v318 = vsel %vm161, %v261, 0.0
        %v319 = vadd.f32 %v317, %v318
        %v320 = vsel %vm161, %v262, 0.0
        %v321 = vadd.f32 %v319, %v320
        %v322 = vsel %vm161, %v263, 0.0
        %v323 = vadd.f32 %v321, %v322
        %v324 = vsel %vm161, %v264, 0.0
        %v325 = vadd.f32 %v323, %v324
        %v326 = vsel %vm161, %v265, 0.0
        %v327 = vadd.f32 %v325, %v326
        %v328 = vsel %vm161, %v266, 0.0
        %v329 = vadd.f32 %v327, %v328
        %v330 = vrot.slane %v329, 4
        %v331 = vadd.f32 %v329, %v330
        %v332 = vrot.slane %v331, 2
        %v333 = vadd.f32 %v331, %v332
        %v334 = vrot.slane %v333, 1
        %v335 = vadd.f32 %v333, %v334
        %v336 = vadd.f32 %v234, %v335
        %337 = vst.msk [vmem:[%s1 + $0x1] sm:$0x1] %vm232, %v336
        // Predicated region
        $region33: #{multi_head_attention_block.5} parent=23 // pred_check
          %p338 = pneg %p54
        $region34: #{multi_head_attention_block.5} parent=23 // pred_check_branch
          %340 = sbr.rel (%p338) target = $region36
        $region35: #{multi_head_attention_block.5} parent=23 // pred_region
          _
        $region36: #{multi_head_attention_block.5} parent=23 // pred_fallthru
          _
        // Predicated region
        $region37: #{multi_head_attention_block.5} parent=23 // pred_check
          %p341 = pneg %p54
        $region38: #{multi_head_attention_block.5} parent=23 // pred_check_branch
          %343 = sbr.rel (%p341) target = $region40
        $region39: #{multi_head_attention_block.5} parent=23 // pred_region
          _
        $region40: #{multi_head_attention_block.5} parent=23 // pred_fallthru
          _
      $region24: #{multi_head_attention_block.5} parent=5 // pred_fallthru
        _
      %p344 = scmp.le.s32.totalorder 2, %s10
      // Predicated region
      $region41: #{multi_head_attention_block.5} parent=5 // pred_check
        %p345 = pneg %p344
      $region42: #{multi_head_attention_block.5} parent=5 // pred_check_branch
        %347 = sbr.rel (%p345) target = $region44
      $region43: #{multi_head_attention_block.5} parent=5 // pred_region
        %s348 = ssub.s32 %s10, 2
      $region44: #{multi_head_attention_block.5} parent=5 // pred_fallthru
        _
    $region6: #{multi_head_attention_block.5} parent=1 // loop_footer
      %s14 = sadd.s32 1, %s10
    $region7: #{multi_head_attention_block.5} parent=1 // loop_footer_branch
      %9 = sbr.rel target = $region3
    $region8: #{multi_head_attention_block.5} parent=1 // loop_exit
      _
    %349 = vsyncpa [#allocation3], 1
    %s350 = scalar_lea.sflag [#allocation3], 1
    %351 = vsyncpa %s350, 1

// kernel: multi_head_attention_block.6
$region0: #{multi_head_attention_block.6}
  #allocation0 [shape = 'u32[]', space=smem, size = 0x4, offset = 0x4, fixed_abs, tag = 'smem constant byte address 0x4 - core index']
  #allocation1 [shape = 'u32[144,128]{1,0:T(1,128)}', space=vmem, size = 0x12000, scoped, tag = 'internal scratch']
  %s0 = inlined_call_operand.hbm [shape: f32[2,256,32], index: 0, kind: input, shape index: {}]
  %s1 = inlined_call_operand.vmem [shape: f32[1,32], index: 1, kind: input, shape index: {}]
  %s2 = inlined_call_operand.vmem [shape: f32[1,32], index: 2, kind: input, shape index: {}]
  %s3 = inlined_call_operand.vmem [shape: bf16[32,96], index: 3, kind: input, shape index: {}]
  %s4 = inlined_call_operand.vmem [shape: f32[1,96], index: 4, kind: input, shape index: {}]
  %s5 = inlined_call_operand.vmem [shape: bf16[2,256,96], index: 5, kind: output, shape index: {}]
  %s6 = sld [smem:[#allocation0]]
  $region57: #{multi_head_attention_block.6} parent=0
    _
  %s8 = ssub.s32 1, %s6
  %s9 = scalar_select 0, %s8, %s6
  $region1: #{multi_head_attention_block.6} parent=0
    #allocation2 [shape = 'u8[262144]{0}', space=vmem, size = 0x40000, scoped, tag = 'input window, operand 0']
    #allocation3 [shape = 's32[2]{0}', space=sflag, size = 0x8, scoped, tag = 'scoped memory for multi_head_attention_block.6']
    %10 = vsyncpa [#allocation3], 0
    %s11 = scalar_lea.sflag [#allocation3], 1
    %12 = vsyncpa %s11, 0
    loop: start=0, step=1, limit=4
    $region2: #{multi_head_attention_block.6} parent=1 // loop_pre_header
      _
    $region3: #{multi_head_attention_block.6} parent=1 // loop_header
      %s14 = sphi 0, %s18
      %p15 = scmp.ge.s32.totalorder %s14, 4
      %s24 = sphi 0, %s26
      %s27 = sphi 0, %s24
      %s28 = sphi 0, %s27
      %s44 = sphi 0, %s28
      %s48 = sphi 0, %s48
      %s50 = sphi 0, %s48
      %s51 = sphi 0, %s50
      %s65 = sphi 0, %s51
      %s69 = sphi 0, %s69
      %s71 = sphi 0, %s69
      %s72 = sphi 0, %s71
      %s86 = sphi 0, %s72
      %s90 = sphi 0, %s90
      %s92 = sphi 0, %s90
      %s93 = sphi 0, %s92
      %s107 = sphi 0, %s93
      %s111 = sphi 0, %s111
      %s113 = sphi 0, %s111
      %s114 = sphi 0, %s113
      %s128 = sphi 0, %s114
      %s134 = sphi 0, %s136
      %s137 = sphi 0, %s134
      %s138 = sphi 0, %s137
      %s154 = sphi 0, %s138
    $region4: #{multi_head_attention_block.6} parent=1 // loop_header_branch
      %17 = sbr.rel (%p15) target = $region8
    $region5: #{multi_head_attention_block.6} parent=1 // loop_body
      %s19 = ssub.s32 %s14, 1
      %s20 = ssub.s32 %s14, 2
      %s21 = sadd.s32 %s14, 1
      %s22 = ssub.s32 %s14, %s21
      %p23 = scmp.eq.s32.totalorder %s22, 0
      %s25 = sadd.s32 %s24, 1
      %s26 = scalar_select %p23, %s24, %s25
      %p29 = pneg %p23
      %p30 = scmp.eq.s32.totalorder %s14, 1
      %p31 = por %p29, %p30
      %p32 = scmp.ne.s32.totalorder %s24, %s27
      %p33 = scmp.eq.s32.totalorder %s14, 0
      %p34 = por %p32, %p33
      %p35 = scmp.ne.s32.totalorder %s24, %s27
      %p36 = scmp.eq.s32.totalorder %s19, 1
      %p37 = por %p35, %p36
      %p38 = scmp.ne.s32.totalorder %s27, %s28
      %p39 = scmp.eq.s32.totalorder %s19, 0
      %p40 = por %p38, %p39
      %p41 = scmp.ne.s32.totalorder %s27, %s28
      %p42 = scmp.eq.s32.totalorder %s20, 1
      %p43 = por %p41, %p42
      %p45 = scmp.ne.s32.totalorder %s28, %s44
      %p46 = scmp.eq.s32.totalorder %s20, 0
      %p47 = por %p45, %p46
      %s49 = sadd.s32 %s48, 1
      %p52 = scmp.eq.s32.totalorder %s14, 1
      %p53 = scmp.ne.s32.totalorder %s48, %s50
      %p54 = scmp.eq.s32.totalorder %s14, 0
      %p55 = por %p53, %p54
      %p56 = scmp.ne.s32.totalorder %s48, %s50
      %p57 = scmp.eq.s32.totalorder %s19, 1
      %p58 = por %p56, %p57
      %p59 = scmp.ne.s32.totalorder %s50, %s51
      %p60 = scmp.eq.s32.totalorder %s19, 0
      %p61 = por %p59, %p60
      %p62 = scmp.ne.s32.totalorder %s50, %s51
      %p63 = scmp.eq.s32.totalorder %s20, 1
      %p64 = por %p62, %p63
      %p66 = scmp.ne.s32.totalorder %s51, %s65
      %p67 = scmp.eq.s32.totalorder %s20, 0
      %p68 = por %p66, %p67
      %s70 = sadd.s32 %s69, 1
      %p73 = scmp.eq.s32.totalorder %s14, 1
      %p74 = scmp.ne.s32.totalorder %s69, %s71
      %p75 = scmp.eq.s32.totalorder %s14, 0
      %p76 = por %p74, %p75
      %p77 = scmp.ne.s32.totalorder %s69, %s71
      %p78 = scmp.eq.s32.totalorder %s19, 1
      %p79 = por %p77, %p78
      %p80 = scmp.ne.s32.totalorder %s71, %s72
      %p81 = scmp.eq.s32.totalorder %s19, 0
      %p82 = por %p80, %p81
      %p83 = scmp.ne.s32.totalorder %s71, %s72
      %p84 = scmp.eq.s32.totalorder %s20, 1
      %p85 = por %p83, %p84
      %p87 = scmp.ne.s32.totalorder %s72, %s86
      %p88 = scmp.eq.s32.totalorder %s20, 0
      %p89 = por %p87, %p88
      %s91 = sadd.s32 %s90, 1
      %p94 = scmp.eq.s32.totalorder %s14, 1
      %p95 = scmp.ne.s32.totalorder %s90, %s92
      %p96 = scmp.eq.s32.totalorder %s14, 0
      %p97 = por %p95, %p96
      %p98 = scmp.ne.s32.totalorder %s90, %s92
      %p99 = scmp.eq.s32.totalorder %s19, 1
      %p100 = por %p98, %p99
      %p101 = scmp.ne.s32.totalorder %s92, %s93
      %p102 = scmp.eq.s32.totalorder %s19, 0
      %p103 = por %p101, %p102
      %p104 = scmp.ne.s32.totalorder %s92, %s93
      %p105 = scmp.eq.s32.totalorder %s20, 1
      %p106 = por %p104, %p105
      %p108 = scmp.ne.s32.totalorder %s93, %s107
      %p109 = scmp.eq.s32.totalorder %s20, 0
      %p110 = por %p108, %p109
      %s112 = sadd.s32 %s111, 1
      %p115 = scmp.eq.s32.totalorder %s14, 1
      %p116 = scmp.ne.s32.totalorder %s111, %s113
      %p117 = scmp.eq.s32.totalorder %s14, 0
      %p118 = por %p116, %p117
      %p119 = scmp.ne.s32.totalorder %s111, %s113
      %p120 = scmp.eq.s32.totalorder %s19, 1
      %p121 = por %p119, %p120
      %p122 = scmp.ne.s32.totalorder %s113, %s114
      %p123 = scmp.eq.s32.totalorder %s19, 0
      %p124 = por %p122, %p123
      %p125 = scmp.ne.s32.totalorder %s113, %s114
      %p126 = scmp.eq.s32.totalorder %s20, 1
      %p127 = por %p125, %p126
      %p129 = scmp.ne.s32.totalorder %s114, %s128
      %p130 = scmp.eq.s32.totalorder %s20, 0
      %p131 = por %p129, %p130
      %s132 = ssub.s32 %s14, %s21
      %p133 = scmp.eq.s32.totalorder %s132, 0
      %s135 = sadd.s32 %s134, 1
      %s136 = scalar_select %p133, %s134, %s135
      %p139 = pneg %p133
      %p140 = scmp.eq.s32.totalorder %s14, 1
      %p141 = por %p139, %p140
      %p142 = scmp.ne.s32.totalorder %s134, %s137
      %p143 = scmp.eq.s32.totalorder %s14, 0
      %p144 = por %p142, %p143
      %p145 = scmp.ne.s32.totalorder %s134, %s137
      %p146 = scmp.eq.s32.totalorder %s19, 1
      %p147 = por %p145, %p146
      %p148 = scmp.ne.s32.totalorder %s137, %s138
      %p149 = scmp.eq.s32.totalorder %s19, 0
      %p150 = por %p148, %p149
      %p151 = scmp.ne.s32.totalorder %s137, %s138
      %p152 = scmp.eq.s32.totalorder %s20, 1
      %p153 = por %p151, %p152
      %p155 = scmp.ne.s32.totalorder %s138, %s154
      %p156 = scmp.eq.s32.totalorder %s20, 0
      %p157 = por %p155, %p156
      %p158 = scmp.le.s32.totalorder 1, %s14
      %p159 = scmp.lt.s32.totalorder %s14, 3
      %p160 = pnand %p158, %p159
      %p161 = pneg %p160
      // Predicated region
      $region9: #{multi_head_attention_block.6} parent=5 // pred_check
        _
      $region10: #{multi_head_attention_block.6} parent=5 // pred_check_branch
        %163 = sbr.rel (%p160) target = $region12
      $region11: #{multi_head_attention_block.6} parent=5 // pred_region
        %s164 = ssub.s32 %s14, 1
        // Predicated region
        $region13: #{multi_head_attention_block.6} parent=11 // pred_check
          %p165 = pneg %p61
        $region14: #{multi_head_attention_block.6} parent=11 // pred_check_branch
          %167 = sbr.rel (%p165) target = $region16
        $region15: #{multi_head_attention_block.6} parent=11 // pred_region
          _
        $region16: #{multi_head_attention_block.6} parent=11 // pred_fallthru
          _
        // Predicated region
        $region17: #{multi_head_attention_block.6} parent=11 // pred_check
          %p168 = pneg %p82
        $region18: #{multi_head_attention_block.6} parent=11 // pred_check_branch
          %170 = sbr.rel (%p168) target = $region20
        $region19: #{multi_head_attention_block.6} parent=11 // pred_region
          _
        $region20: #{multi_head_attention_block.6} parent=11 // pred_fallthru
          _
        // Predicated region
        $region21: #{multi_head_attention_block.6} parent=11 // pred_check
          %p171 = pneg %p103
        $region22: #{multi_head_attention_block.6} parent=11 // pred_check_branch
          %173 = sbr.rel (%p171) target = $region24
        $region23: #{multi_head_attention_block.6} parent=11 // pred_region
          _
        $region24: #{multi_head_attention_block.6} parent=11 // pred_fallthru
          _
        // Predicated region
        $region25: #{multi_head_attention_block.6} parent=11 // pred_check
          %p174 = pneg %p124
        $region26: #{multi_head_attention_block.6} parent=11 // pred_check_branch
          %176 = sbr.rel (%p174) target = $region28
        $region27: #{multi_head_attention_block.6} parent=11 // pred_region
          _
        $region28: #{multi_head_attention_block.6} parent=11 // pred_fallthru
          _
      $region12: #{multi_head_attention_block.6} parent=5 // pred_fallthru
        _
      %p177 = scmp.lt.s32.totalorder %s14, 2
      // Predicated region
      $region29: #{multi_head_attention_block.6} parent=5 // pred_check
        %p178 = pneg %p177
      $region30: #{multi_head_attention_block.6} parent=5 // pred_check_branch
        %180 = sbr.rel (%p178) target = $region32
      $region31: #{multi_head_attention_block.6} parent=5 // pred_region
        // Predicated region
        $region33: #{multi_head_attention_block.6} parent=31 // pred_check
          %p181 = pneg %p34
        $region34: #{multi_head_attention_block.6} parent=31 // pred_check_branch
          %183 = sbr.rel (%p181) target = $region36
        $region35: #{multi_head_attention_block.6} parent=31 // pred_region
          %s184 = sand.u32 %s24, 1
          %s185 = scalar_lea.sflag [#allocation3], %s184
          %s186 = sand.u32 %s24, 1
          %s187 = smul.addr %s186, 256
          %s188 = scalar_lea.vmem [#allocation2], %s187
          %s190 = ssub.s32 4096, 4096
          %191 = vsyncadd %s185, %s190
          %s192 = smul.addr %s14, 32
          %s193 = smul.addr %s192, 128
          %s194 = scalar_lea.hbm %s0, %s193
          %s195 = sshll.u32 %s188, 4
          %s196 = int_to_ptr.vmem [resolvable:$true] %s195
          %201 = dma.hbm_to_vmem [thread:$0]  %s194, 4096, %s196, %s185, 128, 128, 8
        $region36: #{multi_head_attention_block.6} parent=31 // pred_fallthru
          _
      $region32: #{multi_head_attention_block.6} parent=5 // pred_fallthru
        _
      %p202 = scmp.le.s32.totalorder 1, %s14
      %p203 = scmp.lt.s32.totalorder %s14, 3
      %p204 = pnand %p202, %p203
      %p205 = pneg %p204
      // Predicated region
      $region37: #{multi_head_attention_block.6} parent=5 // pred_check
        _
      $region38: #{multi_head_attention_block.6} parent=5 // pred_check_branch
        %207 = sbr.rel (%p204) target = $region40
      $region39: #{multi_head_attention_block.6} parent=5 // pred_region
        %s208 = ssub.s32 %s14, 1
        %s209 = sand.u32 %s27, 1
        %s210 = scalar_lea.sflag [#allocation3], %s209
        %s211 = sand.u32 %s27, 1
        %s212 = smul.addr %s211, 256
        %s213 = scalar_lea.vmem [#allocation2], %s212
        // Predicated region
        $region41: #{multi_head_attention_block.6} parent=39 // pred_check
          %p214 = pneg %p40
        $region42: #{multi_head_attention_block.6} parent=39 // pred_check_branch
          %216 = sbr.rel (%p214) target = $region44
        $region43: #{multi_head_attention_block.6} parent=39 // pred_region
          %217 = dma.done %s210, 4096
        $region44: #{multi_head_attention_block.6} parent=39 // pred_fallthru
          _
        %s218 = sand.u32 %s27, 1
        %s219 = scalar_lea.sflag [#allocation3], %s218
        %s220 = sand.u32 %s27, 1
        %s221 = smul.addr %s220, 256
        %s222 = scalar_lea.vmem [#allocation2], %s221
        %p223 = pneg %p40
        %p224 = pneg %p37
        %p225 = pneg %p61
        %p226 = pneg %p58
        %p227 = pneg %p82
        %p228 = pneg %p79
        %p229 = pneg %p103
        %p230 = pneg %p100
        %p231 = pneg %p124
        %p232 = pneg %p121
        %p233 = pneg %p150
        %p234 = pneg %p147
        %p235 = scmp.lt.s32.totalorder %s19, 1
        %s236 = scalar_select %p235, %s19, 1
        %s237 = smul.addr %s236, 32
        %s238 = smul.addr %s237, 4
        %s239 = scalar_lea.vmem %s5, %s238
        %p240 = scmp.lt.s32.totalorder %s19, 1
        %s241 = scalar_select %p240, %s19, 1
        %s242 = smul.addr %s241, 32
        %s243 = smul.addr %s242, 4
        %s244 = scalar_lea.vmem %s5, %s243
        %v246 = vld [vmem:[%s213] sm:$0xff]
        %v247 = vld [vmem:[%s213 + $0x8] sm:$0xff]
        %v248 = vld [vmem:[%s213 + $0x10] sm:$0xff]
        %v249 = vld [vmem:[%s213 + $0x18] sm:$0xff]
        %v250 = vld [vmem:[%s213 + $0x20] sm:$0xff]
        %v251 = vld [vmem:[%s213 + $0x28] sm:$0xff]
        %v252 = vld [vmem:[%s213 + $0x30] sm:$0xff]
        %v253 = vld [vmem:[%s213 + $0x38] sm:$0xff]
        %v254 = vld [vmem:[%s213 + $0x40] sm:$0xff]
        %v255 = vld [vmem:[%s213 + $0x48] sm:$0xff]
        %v256 = vld [vmem:[%s213 + $0x50] sm:$0xff]
        %v257 = vld [vmem:[%s213 + $0x58] sm:$0xff]
        %v258 = vld [vmem:[%s213 + $0x60] sm:$0xff]
        %v259 = vld [vmem:[%s213 + $0x68] sm:$0xff]
        %v260 = vld [vmem:[%s213 + $0x70] sm:$0xff]
        %v261 = vld [vmem:[%s213 + $0x78] sm:$0xff]
        %v262 = vld [vmem:[%s213 + $0x80] sm:$0xff]
        %v263 = vld [vmem:[%s213 + $0x88] sm:$0xff]
        %v264 = vld [vmem:[%s213 + $0x90] sm:$0xff]
        %v265 = vld [vmem:[%s213 + $0x98] sm:$0xff]
        %v266 = vld [vmem:[%s213 + $0xa0] sm:$0xff]
        %v267 = vld [vmem:[%s213 + $0xa8] sm:$0xff]
        %v268 = vld [vmem:[%s213 + $0xb0] sm:$0xff]
        %v269 = vld [vmem:[%s213 + $0xb8] sm:$0xff]
        %v270 = vld [vmem:[%s213 + $0xc0] sm:$0xff]
        %v271 = vld [vmem:[%s213 + $0xc8] sm:$0xff]
        %v272 = vld [vmem:[%s213 + $0xd0] sm:$0xff]
        %v273 = vld [vmem:[%s213 + $0xd8] sm:$0xff]
        %v274 = vld [vmem:[%s213 + $0xe0] sm:$0xff]
        %v275 = vld [vmem:[%s213 + $0xe8] sm:$0xff]
        %v276 = vld [vmem:[%s213 + $0xf0] sm:$0xff]
        %v277 = vld [vmem:[%s213 + $0xf8] sm:$0xff]
        %v278 = vld [vmem:[%s1] sm:$0x1]
        %v280 = vlaneseq
        %v281 = vshrl.u32 %v280, 7
        %v282 = vsub.s32 0, %v281
        %v283 = vrot.slane %v278, %v282
        %v285 = vmul.f32 %v246, %v283
        %v286 = vmul.f32 %v247, %v283
        %v287 = vmul.f32 %v248, %v283
        %v288 = vmul.f32 %v249, %v283
        %v289 = vmul.f32 %v250, %v283
        %v290 = vmul.f32 %v251, %v283
        %v291 = vmul.f32 %v252, %v283
        %v292 = vmul.f32 %v253, %v283
        %v293 = vmul.f32 %v254, %v283
        %v294 = vmul.f32 %v255, %v283
        %v295 = vmul.f32 %v256, %v283
        %v296 = vmul.f32 %v257, %v283
        %v297 = vmul.f32 %v258, %v283
        %v298 = vmul.f32 %v259, %v283
        %v299 = vmul.f32 %v260, %v283
        %v300 = vmul.f32 %v261, %v283
        %v301 = vmul.f32 %v262, %v283
        %v302 = vmul.f32 %v263, %v283
        %v303 = vmul.f32 %v264, %v283
        %v304 = vmul.f32 %v265, %v283
        %v305 = vmul.f32 %v266, %v283
        %v306 = vmul.f32 %v267, %v283
        %v307 = vmul.f32 %v268, %v283
        %v308 = vmul.f32 %v269, %v283
        %v309 = vmul.f32 %v270, %v283
        %v310 = vmul.f32 %v271, %v283
        %v311 = vmul.f32 %v272, %v283
        %v312 = vmul.f32 %v273, %v283
        %v313 = vmul.f32 %v274, %v283
        %v314 = vmul.f32 %v275, %v283
        %v315 = vmul.f32 %v276, %v283
        %v316 = vmul.f32 %v277, %v283
        %v317 = vld [vmem:[%s2] sm:$0x1]
        %v319 = vlaneseq
        %v320 = vshrl.u32 %v319, 7
        %v321 = vsub.s32 0, %v320
        %v322 = vrot.slane %v317, %v321
        %v324 = vadd.f32 %v285, %v322
        %v325 = vadd.f32 %v286, %v322
        %v326 = vadd.f32 %v287, %v322
        %v327 = vadd.f32 %v288, %v322
        %v328 = vadd.f32 %v289, %v322
        %v329 = vadd.f32 %v290, %v322
        %v330 = vadd.f32 %v291, %v322
        %v331 = vadd.f32 %v292, %v322
        %v332 = vadd.f32 %v293, %v322
        %v333 = vadd.f32 %v294, %v322
        %v334 = vadd.f32 %v295, %v322
        %v335 = vadd.f32 %v296, %v322
        %v336 = vadd.f32 %v297, %v322
        %v337 = vadd.f32 %v298, %v322
        %v338 = vadd.f32 %v299, %v322
        %v339 = vadd.f32 %v300, %v322
        %v340 = vadd.f32 %v301, %v322
        %v341 = vadd.f32 %v302, %v322
        %v342 = vadd.f32 %v303, %v322
        %v343 = vadd.f32 %v304, %v322
        %v344 = vadd.f32 %v305, %v322
        %v345 = vadd.f32 %v306, %v322
        %v346 = vadd.f32 %v307, %v322
        %v347 = vadd.f32 %v308, %v322
        %v348 = vadd.f32 %v309, %v322
        %v349 = vadd.f32 %v310, %v322
        %v350 = vadd.f32 %v311, %v322
        %v351 = vadd.f32 %v312, %v322
        %v352 = vadd.f32 %v313, %v322
        %v353 = vadd.f32 %v314, %v322
        %v354 = vadd.f32 %v315, %v322
        %v355 = vadd.f32 %v316, %v322
        %v356 = vpack.c.bf16 %v325, %v324
        %v357 = vpack.c.bf16 %v327, %v326
        %v358 = vpack.c.bf16 %v329, %v328
        %v359 = vpack.c.bf16 %v331, %v330
        %v360 = vpack.c.bf16 %v333, %v332
        %v361 = vpack.c.bf16 %v335, %v334
        %v362 = vpack.c.bf16 %v337, %v336
        %v363 = vpack.c.bf16 %v339, %v338
        %v364 = vpack.c.bf16 %v341, %v340
        %v365 = vpack.c.bf16 %v343, %v342
        %v366 = vpack.c.bf16 %v345, %v344
        %v367 = vpack.c.bf16 %v347, %v346
        %v368 = vpack.c.bf16 %v349, %v348
        %v369 = vpack.c.bf16 %v351, %v350
        %v370 = vpack.c.bf16 %v353, %v352
        %v371 = vpack.c.bf16 %v355, %v354
        %v372 = vld [vmem:[%s3] sm:$0xf]
        %v373 = vld [vmem:[%s3 + $0x4] sm:$0xf]
        %v374 = vld [vmem:[%s3 + $0x8] sm:$0xf]
        %v375 = vld [vmem:[%s3 + $0xc] sm:$0xf]
        %v376 = vld [vmem:[%s4] sm:$0x1]
        %v378 = vlaneseq
        %v379 = vshrl.u32 %v378, 7
        %v380 = vsub.s32 0, %v379
        %v381 = vrot.slane %v376, %v380
        %v387 = vunpack.c.l.b16 %v372
        %v388 = vunpack.c.l.b16 %v373
        %v389 = vunpack.c.l.b16 %v374
        %v390 = vunpack.c.l.b16 %v375
        %v391 = vpack.c.b16 %v388, %v387
        %v392 = vpack.c.b16 %v390, %v389
        %vm395 = vcmask 261120
        %v397 = vsel %vm395, %v356, 0
        %v400 = vsel %vm395, %v357, 0
        %v403 = vsel %vm395, %v358, 0
        %v406 = vsel %vm395, %v359, 0
        %v409 = vsel %vm395, %v360, 0
        %v412 = vsel %vm395, %v361, 0
        %v415 = vsel %vm395, %v362, 0
        %v418 = vsel %vm395, %v363, 0
        %v421 = vsel %vm395, %v364, 0
        %v424 = vsel %vm395, %v365, 0
        %v427 = vsel %vm395, %v366, 0
        %v430 = vsel %vm395, %v367, 0
        %v433 = vsel %vm395, %v368, 0
        %v436 = vsel %vm395, %v369, 0
        %v439 = vsel %vm395, %v370, 0
        %v442 = vsel %vm395, %v371, 0
        %444 = vmatprep.subr.bf16.mxu0 0
        %445 = vmatpush1.bf16.msra.mxu0 0
        %446 = vmatprep.subr.bf16.mxu0 0
        %447 = vmatpush1.bf16.msra.mxu0 0
        %448 = vmatprep.subr.bf16.mxu0 0
        %449 = vmatpush1.bf16.msra.mxu0 0
        %450 = vmatprep.subr.bf16.mxu0 0
        %451 = vmatpush1.bf16.msra.mxu0 0
        %452 = vmatprep.subr.bf16.mxu0 0
        %453 = vmatpush1.bf16.msra.mxu0 0
        %454 = vmatprep.subr.bf16.mxu0 0
        %455 = vmatpush1.bf16.msra.mxu0 0
        %456 = vmatprep.subr.bf16.mxu0 0
        %457 = vmatpush1.bf16.msra.mxu0 %v392
        %458 = vmatprep.subr.bf16.mxu0 0
        %459 = vmatpush1.bf16.msra.mxu0 %v391
        %460 = vmatprep.subr.bf16.mxu0 0
        %461 = vmatpush2.bf16.msra.mxu0 0
        %462 = vmatprep.subr.bf16.mxu0 0
        %463 = vmatpush2.bf16.msra.mxu0 0
        %464 = vmatprep.subr.bf16.mxu0 0
        %465 = vmatpush2.bf16.msra.mxu0 0
        %466 = vmatprep.subr.bf16.mxu0 0
        %467 = vmatpush2.bf16.msra.mxu0 0
        %468 = vmatprep.subr.bf16.mxu0 0
        %469 = vmatpush2.bf16.msra.mxu0 0
        %470 = vmatprep.subr.bf16.mxu0 0
        %471 = vmatpush2.bf16.msra.mxu0 0
        %472 = vmatprep.subr.bf16.mxu0 0
        %473 = vmatpush2.bf16.msra.mxu0 0
        %474 = vmatprep.subr.bf16.mxu0 0
        %475 = vmatpush2.bf16.msra.mxu0 0
        %476 = vmatprep.mubr.bf16.mxu0 0
        %477 = vmatmul.mubr.bf16.gmra.mxu0 %v397
        %v478 = vpop.f32.mrf.mxu0
        %v479 = vadd.f32 %v381, %v478
        %v480 = vpop.f32.mrf.mxu0
        %v481 = vpop.f32.mrf.mxu0
        %v482 = vadd.f32 %v381, %v481
        %v483 = vpop.f32.mrf.mxu0
        %484 = vmatprep.mubr.bf16.mxu0 0
        %485 = vmatmul.mubr.bf16.gmra.mxu0 %v400
        %v486 = vpop.f32.mrf.mxu0
        %v487 = vadd.f32 %v381, %v486
        %v488 = vpop.f32.mrf.mxu0
        %v489 = vpop.f32.mrf.mxu0
        %v490 = vadd.f32 %v381, %v489
        %v491 = vpop.f32.mrf.mxu0
        %492 = vmatprep.mubr.bf16.mxu0 0
        %493 = vmatmul.mubr.bf16.gmra.mxu0 %v403
        %v494 = vpop.f32.mrf.mxu0
        %v495 = vadd.f32 %v381, %v494
        %v496 = vpop.f32.mrf.mxu0
        %v497 = vpop.f32.mrf.mxu0
        %v498 = vadd.f32 %v381, %v497
        %v499 = vpop.f32.mrf.mxu0
        %500 = vmatprep.mubr.bf16.mxu0 0
        %501 = vmatmul.mubr.bf16.gmra.mxu0 %v406
        %v502 = vpop.f32.mrf.mxu0
        %v503 = vadd.f32 %v381, %v502
        %v504 = vpop.f32.mrf.mxu0
        %v505 = vpop.f32.mrf.mxu0
        %v506 = vadd.f32 %v381, %v505
        %v507 = vpop.f32.mrf.mxu0
        %508 = vmatprep.mubr.bf16.mxu0 0
        %509 = vmatmul.mubr.bf16.gmra.mxu0 %v409
        %v510 = vpop.f32.mrf.mxu0
        %v511 = vadd.f32 %v381, %v510
        %v512 = vpop.f32.mrf.mxu0
        %v513 = vpop.f32.mrf.mxu0
        %v514 = vadd.f32 %v381, %v513
        %v515 = vpop.f32.mrf.mxu0
        %516 = vmatprep.mubr.bf16.mxu0 0
        %517 = vmatmul.mubr.bf16.gmra.mxu0 %v412
        %v518 = vpop.f32.mrf.mxu0
        %v519 = vadd.f32 %v381, %v518
        %v520 = vpop.f32.mrf.mxu0
        %v521 = vpop.f32.mrf.mxu0
        %v522 = vadd.f32 %v381, %v521
        %v523 = vpop.f32.mrf.mxu0
        %524 = vmatprep.mubr.bf16.mxu0 0
        %525 = vmatmul.mubr.bf16.gmra.mxu0 %v415
        %v526 = vpop.f32.mrf.mxu0
        %v527 = vadd.f32 %v381, %v526
        %v528 = vpop.f32.mrf.mxu0
        %v529 = vpop.f32.mrf.mxu0
        %v530 = vadd.f32 %v381, %v529
        %v531 = vpop.f32.mrf.mxu0
        %532 = vmatprep.mubr.bf16.mxu0 0
        %533 = vmatmul.mubr.bf16.gmra.mxu0 %v418
        %v534 = vpop.f32.mrf.mxu0
        %v535 = vadd.f32 %v381, %v534
        %v536 = vpop.f32.mrf.mxu0
        %v537 = vpop.f32.mrf.mxu0
        %v538 = vadd.f32 %v381, %v537
        %v539 = vpop.f32.mrf.mxu0
        %540 = vmatprep.mubr.bf16.mxu0 0
        %541 = vmatmul.mubr.bf16.gmra.mxu0 %v421
        %v542 = vpop.f32.mrf.mxu0
        %v543 = vadd.f32 %v381, %v542
        %v544 = vpop.f32.mrf.mxu0
        %v545 = vpop.f32.mrf.mxu0
        %v546 = vadd.f32 %v381, %v545
        %v547 = vpop.f32.mrf.mxu0
        %548 = vmatprep.mubr.bf16.mxu0 0
        %549 = vmatmul.mubr.bf16.gmra.mxu0 %v424
        %v550 = vpop.f32.mrf.mxu0
        %v551 = vadd.f32 %v381, %v550
        %v552 = vpop.f32.mrf.mxu0
        %v553 = vpop.f32.mrf.mxu0
        %v554 = vadd.f32 %v381, %v553
        %v555 = vpop.f32.mrf.mxu0
        %556 = vmatprep.mubr.bf16.mxu0 0
        %557 = vmatmul.mubr.bf16.gmra.mxu0 %v427
        %v558 = vpop.f32.mrf.mxu0
        %v559 = vadd.f32 %v381, %v558
        %v560 = vpop.f32.mrf.mxu0
        %v561 = vpop.f32.mrf.mxu0
        %v562 = vadd.f32 %v381, %v561
        %v563 = vpop.f32.mrf.mxu0
        %564 = vmatprep.mubr.bf16.mxu0 0
        %565 = vmatmul.mubr.bf16.gmra.mxu0 %v430
        %v566 = vpop.f32.mrf.mxu0
        %v567 = vadd.f32 %v381, %v566
        %v568 = vpop.f32.mrf.mxu0
        %v569 = vpop.f32.mrf.mxu0
        %v570 = vadd.f32 %v381, %v569
        %v571 = vpop.f32.mrf.mxu0
        %572 = vmatprep.mubr.bf16.mxu0 0
        %573 = vmatmul.mubr.bf16.gmra.mxu0 %v433
        %v574 = vpop.f32.mrf.mxu0
        %v575 = vadd.f32 %v381, %v574
        %v576 = vpop.f32.mrf.mxu0
        %v577 = vpop.f32.mrf.mxu0
        %v578 = vadd.f32 %v381, %v577
        %v579 = vpop.f32.mrf.mxu0
        %580 = vmatprep.mubr.bf16.mxu0 0
        %581 = vmatmul.mubr.bf16.gmra.mxu0 %v436
        %v582 = vpop.f32.mrf.mxu0
        %v583 = vadd.f32 %v381, %v582
        %v584 = vpop.f32.mrf.mxu0
        %v585 = vpop.f32.mrf.mxu0
        %v586 = vadd.f32 %v381, %v585
        %v587 = vpop.f32.mrf.mxu0
        %588 = vmatprep.mubr.bf16.mxu0 0
        %589 = vmatmul.mubr.bf16.gmra.mxu0 %v439
        %v590 = vpop.f32.mrf.mxu0
        %v591 = vadd.f32 %v381, %v590
        %v592 = vpop.f32.mrf.mxu0
        %v593 = vpop.f32.mrf.mxu0
        %v594 = vadd.f32 %v381, %v593
        %v595 = vpop.f32.mrf.mxu0
        %596 = vmatprep.mubr.bf16.mxu0 0
        %597 = vmatmul.mubr.bf16.gmra.mxu0 %v442
        %v598 = vpop.f32.mrf.mxu0
        %v599 = vadd.f32 %v381, %v598
        %v600 = vpop.f32.mrf.mxu0
        %v601 = vpop.f32.mrf.mxu0
        %v602 = vadd.f32 %v381, %v601
        %v603 = vpop.f32.mrf.mxu0
        %604 = vdwg.mxu0
        %v605 = vpack.c.bf16 %v482, %v479
        %v606 = vpack.c.bf16 %v490, %v487
        %v607 = vpack.c.bf16 %v498, %v495
        %v608 = vpack.c.bf16 %v506, %v503
        %v609 = vpack.c.bf16 %v514, %v511
        %v610 = vpack.c.bf16 %v522, %v519
        %v611 = vpack.c.bf16 %v530, %v527
        %v612 = vpack.c.bf16 %v538, %v535
        %v613 = vpack.c.bf16 %v546, %v543
        %v614 = vpack.c.bf16 %v554, %v551
        %v615 = vpack.c.bf16 %v562, %v559
        %v616 = vpack.c.bf16 %v570, %v567
        %v617 = vpack.c.bf16 %v578, %v575
        %v618 = vpack.c.bf16 %v586, %v583
        %v619 = vpack.c.bf16 %v594, %v591
        %v620 = vpack.c.bf16 %v602, %v599
        %v637 = vunpack.c.l.b16 %v605
        %v638 = vunpack.c.h.b16 %v605
        %v639 = vunpack.c.l.b16 %v606
        %v640 = vunpack.c.h.b16 %v606
        %v641 = vunpack.c.l.b16 %v607
        %v642 = vunpack.c.h.b16 %v607
        %v643 = vunpack.c.l.b16 %v608
        %v644 = vunpack.c.h.b16 %v608
        %v645 = vunpack.c.l.b16 %v609
        %v646 = vunpack.c.h.b16 %v609
        %v647 = vunpack.c.l.b16 %v610
        %v648 = vunpack.c.h.b16 %v610
        %v649 = vunpack.c.l.b16 %v611
        %v650 = vunpack.c.h.b16 %v611
        %v651 = vunpack.c.l.b16 %v612
        %v652 = vunpack.c.h.b16 %v612
        %v653 = vunpack.c.l.b16 %v613
        %v654 = vunpack.c.h.b16 %v613
        %v655 = vunpack.c.l.b16 %v614
        %v656 = vunpack.c.h.b16 %v614
        %v657 = vunpack.c.l.b16 %v615
        %v658 = vunpack.c.h.b16 %v615
        %v659 = vunpack.c.l.b16 %v616
        %v660 = vunpack.c.h.b16 %v616
        %v661 = vunpack.c.l.b16 %v617
        %v662 = vunpack.c.h.b16 %v617
        %v663 = vunpack.c.l.b16 %v618
        %v664 = vunpack.c.h.b16 %v618
        %v665 = vunpack.c.l.b16 %v619
        %v666 = vunpack.c.h.b16 %v619
        %v667 = vunpack.c.l.b16 %v620
        %v668 = vunpack.c.h.b16 %v620
        %v669 = vpack.c.b16 %v637, %v637
        %v670 = vpack.c.b16 %v638, %v638
        %v671 = vpack.c.b16 %v639, %v639
        %v672 = vpack.c.b16 %v640, %v640
        %v673 = vpack.c.b16 %v641, %v641
        %v674 = vpack.c.b16 %v642, %v642
        %v675 = vpack.c.b16 %v643, %v643
        %v676 = vpack.c.b16 %v644, %v644
        %v677 = vpack.c.b16 %v645, %v645
        %v678 = vpack.c.b16 %v646, %v646
        %v679 = vpack.c.b16 %v647, %v647
        %v680 = vpack.c.b16 %v648, %v648
        %v681 = vpack.c.b16 %v649, %v649
        %v682 = vpack.c.b16 %v650, %v650
        %v683 = vpack.c.b16 %v651, %v651
        %v684 = vpack.c.b16 %v652, %v652
        %v685 = vpack.c.b16 %v653, %v653
        %v686 = vpack.c.b16 %v654, %v654
        %v687 = vpack.c.b16 %v655, %v655
        %v688 = vpack.c.b16 %v656, %v656
        %v689 = vpack.c.b16 %v657, %v657
        %v690 = vpack.c.b16 %v658, %v658
        %v691 = vpack.c.b16 %v659, %v659
        %v692 = vpack.c.b16 %v660, %v660
        %v693 = vpack.c.b16 %v661, %v661
        %v694 = vpack.c.b16 %v662, %v662
        %v695 = vpack.c.b16 %v663, %v663
        %v696 = vpack.c.b16 %v664, %v664
        %v697 = vpack.c.b16 %v665, %v665
        %v698 = vpack.c.b16 %v666, %v666
        %v699 = vpack.c.b16 %v667, %v667
        %v700 = vpack.c.b16 %v668, %v668
        %vm733 = vcmask 781312
        %734 = vst.msk [vmem:[%s244] sm:$0xf] %vm733, %v669
        %735 = vst.msk [vmem:[%s244 + $0x4] sm:$0xf] %vm733, %v670
        %736 = vst.msk [vmem:[%s244 + $0x8] sm:$0xf] %vm733, %v671
        %737 = vst.msk [vmem:[%s244 + $0xc] sm:$0xf] %vm733, %v672
        %738 = vst.msk [vmem:[%s244 + $0x10] sm:$0xf] %vm733, %v673
        %739 = vst.msk [vmem:[%s244 + $0x14] sm:$0xf] %vm733, %v674
        %740 = vst.msk [vmem:[%s244 + $0x18] sm:$0xf] %vm733, %v675
        %741 = vst.msk [vmem:[%s244 + $0x1c] sm:$0xf] %vm733, %v676
        %742 = vst.msk [vmem:[%s244 + $0x20] sm:$0xf] %vm733, %v677
        %743 = vst.msk [vmem:[%s244 + $0x24] sm:$0xf] %vm733, %v678
        %744 = vst.msk [vmem:[%s244 + $0x28] sm:$0xf] %vm733, %v679
        %745 = vst.msk [vmem:[%s244 + $0x2c] sm:$0xf] %vm733, %v680
        %746 = vst.msk [vmem:[%s244 + $0x30] sm:$0xf] %vm733, %v681
        %747 = vst.msk [vmem:[%s244 + $0x34] sm:$0xf] %vm733, %v682
        %748 = vst.msk [vmem:[%s244 + $0x38] sm:$0xf] %vm733, %v683
        %749 = vst.msk [vmem:[%s244 + $0x3c] sm:$0xf] %vm733, %v684
        %750 = vst.msk [vmem:[%s244 + $0x40] sm:$0xf] %vm733, %v685
        %751 = vst.msk [vmem:[%s244 + $0x44] sm:$0xf] %vm733, %v686
        %752 = vst.msk [vmem:[%s244 + $0x48] sm:$0xf] %vm733, %v687
        %753 = vst.msk [vmem:[%s244 + $0x4c] sm:$0xf] %vm733, %v688
        %754 = vst.msk [vmem:[%s244 + $0x50] sm:$0xf] %vm733, %v689
        %755 = vst.msk [vmem:[%s244 + $0x54] sm:$0xf] %vm733, %v690
        %756 = vst.msk [vmem:[%s244 + $0x58] sm:$0xf] %vm733, %v691
        %757 = vst.msk [vmem:[%s244 + $0x5c] sm:$0xf] %vm733, %v692
        %758 = vst.msk [vmem:[%s244 + $0x60] sm:$0xf] %vm733, %v693
        %759 = vst.msk [vmem:[%s244 + $0x64] sm:$0xf] %vm733, %v694
        %760 = vst.msk [vmem:[%s244 + $0x68] sm:$0xf] %vm733, %v695
        %761 = vst.msk [vmem:[%s244 + $0x6c] sm:$0xf] %vm733, %v696
        %762 = vst.msk [vmem:[%s244 + $0x70] sm:$0xf] %vm733, %v697
        %763 = vst.msk [vmem:[%s244 + $0x74] sm:$0xf] %vm733, %v698
        %764 = vst.msk [vmem:[%s244 + $0x78] sm:$0xf] %vm733, %v699
        %765 = vst.msk [vmem:[%s244 + $0x7c] sm:$0xf] %vm733, %v700
        %p766 = scmp.lt.s32.totalorder %s19, 1
        %s767 = scalar_select %p766, %s19, 1
        %s768 = smul.addr %s767, 32
        %s769 = smul.addr %s768, 4
        %s770 = scalar_lea.vmem %s5, %s769
        // Predicated region
        $region45: #{multi_head_attention_block.6} parent=39 // pred_check
          %p771 = pneg %p147
        $region46: #{multi_head_attention_block.6} parent=39 // pred_check_branch
          %773 = sbr.rel (%p771) target = $region48
        $region47: #{multi_head_attention_block.6} parent=39 // pred_region
          _
        $region48: #{multi_head_attention_block.6} parent=39 // pred_fallthru
          _
      $region40: #{multi_head_attention_block.6} parent=5 // pred_fallthru
        _
      %p774 = scmp.le.s32.totalorder 2, %s14
      // Predicated region
      $region49: #{multi_head_attention_block.6} parent=5 // pred_check
        %p775 = pneg %p774
      $region50: #{multi_head_attention_block.6} parent=5 // pred_check_branch
        %777 = sbr.rel (%p775) target = $region52
      $region51: #{multi_head_attention_block.6} parent=5 // pred_region
        %s778 = ssub.s32 %s14, 2
        // Predicated region
        $region53: #{multi_head_attention_block.6} parent=51 // pred_check
          %p779 = pneg %p153
        $region54: #{multi_head_attention_block.6} parent=51 // pred_check_branch
          %781 = sbr.rel (%p779) target = $region56
        $region55: #{multi_head_attention_block.6} parent=51 // pred_region
          %p782 = scmp.lt.s32.totalorder %s20, 1
          %s783 = scalar_select %p782, %s20, 1
          %s784 = smul.addr %s783, 32
          %s785 = smul.addr %s784, 4
          %s786 = scalar_lea.vmem %s5, %s785
        $region56: #{multi_head_attention_block.6} parent=51 // pred_fallthru
          _
      $region52: #{multi_head_attention_block.6} parent=5 // pred_fallthru
        _
    $region6: #{multi_head_attention_block.6} parent=1 // loop_footer
      %s18 = sadd.s32 1, %s14
    $region7: #{multi_head_attention_block.6} parent=1 // loop_footer_branch
      %13 = sbr.rel target = $region3
    $region8: #{multi_head_attention_block.6} parent=1 // loop_exit
      _
    %787 = vsyncpa [#allocation3], 1
    %s788 = scalar_lea.sflag [#allocation3], 1
    %789 = vsyncpa %s788, 1

// kernel: multi_head_attention_block.8
$region0: #{multi_head_attention_block.8}
  #allocation0 [shape = 'u32[]', space=smem, size = 0x4, offset = 0x4, fixed_abs, tag = 'smem constant byte address 0x4 - core index']
  #allocation1 [shape = 'u32[144,128]{1,0:T(1,128)}', space=vmem, size = 0x12000, scoped, tag = 'internal scratch']
  %s0 = inlined_call_operand.vmem [shape: f32[2,256,32], index: 0, kind: input, shape index: {}]
  %s1 = inlined_call_operand.vmem [shape: f32[2,32], index: 1, kind: output, shape index: {}]
  %s2 = sld [smem:[#allocation0]]
  $region41: #{multi_head_attention_block.8} parent=0
    _
  %s4 = ssub.s32 1, %s2
  %s5 = scalar_select 0, %s4, %s2
  loop: start=0, step=1, limit=4
  $region2: #{multi_head_attention_block.8} parent=0 // loop_pre_header
    _
  $region3: #{multi_head_attention_block.8} parent=0 // loop_header
    %s7 = sphi 0, %s11
    %p8 = scmp.ge.s32.totalorder %s7, 4
    %s17 = sphi 0, %s19
    %s20 = sphi 0, %s17
    %s21 = sphi 0, %s20
    %s37 = sphi 0, %s21
    %s41 = sphi 0, %s41
    %s43 = sphi 0, %s41
    %s44 = sphi 0, %s43
    %s58 = sphi 0, %s44
  $region4: #{multi_head_attention_block.8} parent=0 // loop_header_branch
    %10 = sbr.rel (%p8) target = $region8
  $region5: #{multi_head_attention_block.8} parent=0 // loop_body
    %s12 = ssub.s32 %s7, 1
    %s13 = ssub.s32 %s7, 2
    %s14 = sadd.s32 %s7, 1
    %s15 = ssub.s32 %s7, %s14
    %p16 = scmp.eq.s32.totalorder %s15, 0
    %s18 = sadd.s32 %s17, 1
    %s19 = scalar_select %p16, %s17, %s18
    %p22 = pneg %p16
    %p23 = scmp.eq.s32.totalorder %s7, 1
    %p24 = por %p22, %p23
    %p25 = scmp.ne.s32.totalorder %s17, %s20
    %p26 = scmp.eq.s32.totalorder %s7, 0
    %p27 = por %p25, %p26
    %p28 = scmp.ne.s32.totalorder %s17, %s20
    %p29 = scmp.eq.s32.totalorder %s12, 1
    %p30 = por %p28, %p29
    %p31 = scmp.ne.s32.totalorder %s20, %s21
    %p32 = scmp.eq.s32.totalorder %s12, 0
    %p33 = por %p31, %p32
    %p34 = scmp.ne.s32.totalorder %s20, %s21
    %p35 = scmp.eq.s32.totalorder %s13, 1
    %p36 = por %p34, %p35
    %p38 = scmp.ne.s32.totalorder %s21, %s37
    %p39 = scmp.eq.s32.totalorder %s13, 0
    %p40 = por %p38, %p39
    %s42 = sadd.s32 %s41, 1
    %p45 = scmp.eq.s32.totalorder %s7, 1
    %p46 = scmp.ne.s32.totalorder %s41, %s43
    %p47 = scmp.eq.s32.totalorder %s7, 0
    %p48 = por %p46, %p47
    %p49 = scmp.ne.s32.totalorder %s41, %s43
    %p50 = scmp.eq.s32.totalorder %s12, 1
    %p51 = por %p49, %p50
    %p52 = scmp.ne.s32.totalorder %s43, %s44
    %p53 = scmp.eq.s32.totalorder %s12, 0
    %p54 = por %p52, %p53
    %p55 = scmp.ne.s32.totalorder %s43, %s44
    %p56 = scmp.eq.s32.totalorder %s13, 1
    %p57 = por %p55, %p56
    %p59 = scmp.ne.s32.totalorder %s44, %s58
    %p60 = scmp.eq.s32.totalorder %s13, 0
    %p61 = por %p59, %p60
    %p62 = scmp.le.s32.totalorder 1, %s7
    %p63 = scmp.lt.s32.totalorder %s7, 3
    %p64 = pnand %p62, %p63
    %p65 = pneg %p64
    // Predicated region
    $region9: #{multi_head_attention_block.8} parent=5 // pred_check
      _
    $region10: #{multi_head_attention_block.8} parent=5 // pred_check_branch
      %67 = sbr.rel (%p64) target = $region12
    $region11: #{multi_head_attention_block.8} parent=5 // pred_region
      %s68 = ssub.s32 %s7, 1
    $region12: #{multi_head_attention_block.8} parent=5 // pred_fallthru
      _
    %p69 = scmp.lt.s32.totalorder %s7, 2
    // Predicated region
    $region13: #{multi_head_attention_block.8} parent=5 // pred_check
      %p70 = pneg %p69
    $region14: #{multi_head_attention_block.8} parent=5 // pred_check_branch
      %72 = sbr.rel (%p70) target = $region16
    $region15: #{multi_head_attention_block.8} parent=5 // pred_region
      // Predicated region
      $region17: #{multi_head_attention_block.8} parent=15 // pred_check
        %p73 = pneg %p27
      $region18: #{multi_head_attention_block.8} parent=15 // pred_check_branch
        %75 = sbr.rel (%p73) target = $region20
      $region19: #{multi_head_attention_block.8} parent=15 // pred_region
        %p76 = scmp.lt.s32.totalorder %s7, 1
        %s77 = scalar_select %p76, %s7, 1
        %s78 = smul.addr %s77, 32
        %s79 = smul.addr %s78, 8
        %s80 = scalar_lea.vmem %s0, %s79
      $region20: #{multi_head_attention_block.8} parent=15 // pred_fallthru
        _
    $region16: #{multi_head_attention_block.8} parent=5 // pred_fallthru
      _
    %p81 = scmp.le.s32.totalorder 1, %s7
    %p82 = scmp.lt.s32.totalorder %s7, 3
    %p83 = pnand %p81, %p82
    %p84 = pneg %p83
    // Predicated region
    $region21: #{multi_head_attention_block.8} parent=5 // pred_check
      _
    $region22: #{multi_head_attention_block.8} parent=5 // pred_check_branch
      %86 = sbr.rel (%p83) target = $region24
    $region23: #{multi_head_attention_block.8} parent=5 // pred_region
      %s87 = ssub.s32 %s7, 1
      %p88 = scmp.lt.s32.totalorder %s12, 1
      %s89 = scalar_select %p88, %s12, 1
      %s90 = smul.addr %s89, 32
      %s91 = smul.addr %s90, 8
      %s92 = scalar_lea.vmem %s0, %s91
      %p93 = pneg %p33
      %p94 = pneg %p30
      %p95 = pneg %p54
      %p96 = pneg %p51
      %p97 = scmp.lt.s32.totalorder %s12, 1
      %s98 = scalar_select %p97, %s12, 1
      %s99 = smul.addr %s98, 32
      %s100 = smul.addr %s99, 8
      %s101 = scalar_lea.vmem %s0, %s100
      %p102 = scmp.eq.s32.totalorder %s12, 0
      // Predicated region
      $region25: #{multi_head_attention_block.8} parent=23 // pred_check
        %p103 = pneg %p102
      $region26: #{multi_head_attention_block.8} parent=23 // pred_check_branch
        %105 = sbr.rel (%p103) target = $region28
      $region27: #{multi_head_attention_block.8} parent=23 // pred_region
        %vm106 = vcmask 254976
        %107 = vst.msk [vmem:[%s1] sm:$0x3] %vm106, 0.0
      $region28: #{multi_head_attention_block.8} parent=23 // pred_fallthru
        _
      %v108 = vld [vmem:[%s101] sm:$0xff]
      %v109 = vld [vmem:[%s101 + $0x8] sm:$0xff]
      %v110 = vld [vmem:[%s101 + $0x10] sm:$0xff]
      %v111 = vld [vmem:[%s101 + $0x18] sm:$0xff]
      %v112 = vld [vmem:[%s101 + $0x20] sm:$0xff]
      %v113 = vld [vmem:[%s101 + $0x28] sm:$0xff]
      %v114 = vld [vmem:[%s101 + $0x30] sm:$0xff]
      %v115 = vld [vmem:[%s101 + $0x38] sm:$0xff]
      %v116 = vld [vmem:[%s101 + $0x40] sm:$0xff]
      %v117 = vld [vmem:[%s101 + $0x48] sm:$0xff]
      %v118 = vld [vmem:[%s101 + $0x50] sm:$0xff]
      %v119 = vld [vmem:[%s101 + $0x58] sm:$0xff]
      %v120 = vld [vmem:[%s101 + $0x60] sm:$0xff]
      %v121 = vld [vmem:[%s101 + $0x68] sm:$0xff]
      %v122 = vld [vmem:[%s101 + $0x70] sm:$0xff]
      %v123 = vld [vmem:[%s101 + $0x78] sm:$0xff]
      %v124 = vld [vmem:[%s101 + $0x80] sm:$0xff]
      %v125 = vld [vmem:[%s101 + $0x88] sm:$0xff]
      %v126 = vld [vmem:[%s101 + $0x90] sm:$0xff]
      %v127 = vld [vmem:[%s101 + $0x98] sm:$0xff]
      %v128 = vld [vmem:[%s101 + $0xa0] sm:$0xff]
      %v129 = vld [vmem:[%s101 + $0xa8] sm:$0xff]
      %v130 = vld [vmem:[%s101 + $0xb0] sm:$0xff]
      %v131 = vld [vmem:[%s101 + $0xb8] sm:$0xff]
      %v132 = vld [vmem:[%s101 + $0xc0] sm:$0xff]
      %v133 = vld [vmem:[%s101 + $0xc8] sm:$0xff]
      %v134 = vld [vmem:[%s101 + $0xd0] sm:$0xff]
      %v135 = vld [vmem:[%s101 + $0xd8] sm:$0xff]
      %v136 = vld [vmem:[%s101 + $0xe0] sm:$0xff]
      %v137 = vld [vmem:[%s101 + $0xe8] sm:$0xff]
      %v138 = vld [vmem:[%s101 + $0xf0] sm:$0xff]
      %v139 = vld [vmem:[%s101 + $0xf8] sm:$0xff]
      %v140 = vld [vmem:[%s1] sm:$0x1]
      %vm141 = vcmask 261120
      %v142 = vsel %vm141, %v108, 0.0
      %v143 = vsel %vm141, %v109, 0.0
      %v144 = vadd.f32 %v142, %v143
      %v145 = vsel %vm141, %v110, 0.0
      %v146 = vadd.f32 %v144, %v145
      %v147 = vsel %vm141, %v111, 0.0
      %v148 = vadd.f32 %v146, %v147
      %v149 = vsel %vm141, %v112, 0.0
      %v150 = vadd.f32 %v148, %v149
      %v151 = vsel %vm141, %v113, 0.0
      %v152 = vadd.f32 %v150, %v151
      %v153 = vsel %vm141, %v114, 0.0
      %v154 = vadd.f32 %v152, %v153
      %v155 = vsel %vm141, %v115, 0.0
      %v156 = vadd.f32 %v154, %v155
      %v157 = vsel %vm141, %v116, 0.0
      %v158 = vadd.f32 %v156, %v157
      %v159 = vsel %vm141, %v117, 0.0
      %v160 = vadd.f32 %v158, %v159
      %v161 = vsel %vm141, %v118, 0.0
      %v162 = vadd.f32 %v160, %v161
      %v163 = vsel %vm141, %v119, 0.0
      %v164 = vadd.f32 %v162, %v163
      %v165 = vsel %vm141, %v120, 0.0
      %v166 = vadd.f32 %v164, %v165
      %v167 = vsel %vm141, %v121, 0.0
      %v168 = vadd.f32 %v166, %v167
      %v169 = vsel %vm141, %v122, 0.0
      %v170 = vadd.f32 %v168, %v169
      %v171 = vsel %vm141, %v123, 0.0
      %v172 = vadd.f32 %v170, %v171
      %v173 = vsel %vm141, %v124, 0.0
      %v174 = vadd.f32 %v172, %v173
      %v175 = vsel %vm141, %v125, 0.0
      %v176 = vadd.f32 %v174, %v175
      %v177 = vsel %vm141, %v126, 0.0
      %v178 = vadd.f32 %v176, %v177
      %v179 = vsel %vm141, %v127, 0.0
      %v180 = vadd.f32 %v178, %v179
      %v181 = vsel %vm141, %v128, 0.0
      %v182 = vadd.f32 %v180, %v181
      %v183 = vsel %vm141, %v129, 0.0
      %v184 = vadd.f32 %v182, %v183
      %v185 = vsel %vm141, %v130, 0.0
      %v186 = vadd.f32 %v184, %v185
      %v187 = vsel %vm141, %v131, 0.0
      %v188 = vadd.f32 %v186, %v187
      %v189 = vsel %vm141, %v132, 0.0
      %v190 = vadd.f32 %v188, %v189
      %v191 = vsel %vm141, %v133, 0.0
      %v192 = vadd.f32 %v190, %v191
      %v193 = vsel %vm141, %v134, 0.0
      %v194 = vadd.f32 %v192, %v193
      %v195 = vsel %vm141, %v135, 0.0
      %v196 = vadd.f32 %v194, %v195
      %v197 = vsel %vm141, %v136, 0.0
      %v198 = vadd.f32 %v196, %v197
      %v199 = vsel %vm141, %v137, 0.0
      %v200 = vadd.f32 %v198, %v199
      %v201 = vsel %vm141, %v138, 0.0
      %v202 = vadd.f32 %v200, %v201
      %v203 = vsel %vm141, %v139, 0.0
      %v204 = vadd.f32 %v202, %v203
      %v205 = vrot.slane %v204, 4
      %v206 = vadd.f32 %v204, %v205
      %v207 = vrot.slane %v206, 2
      %v208 = vadd.f32 %v206, %v207
      %v209 = vrot.slane %v208, 1
      %v210 = vadd.f32 %v208, %v209
      %v211 = vadd.f32 %v140, %v210
      %vm212 = vcmask 253952
      %213 = vst.msk [vmem:[%s1] sm:$0x1] %vm212, %v211
      %v214 = vld [vmem:[%s1 + $0x1] sm:$0x1]
      %v215 = vmul.f32 %v108, %v108
      %v216 = vmul.f32 %v109, %v109
      %v217 = vmul.f32 %v110, %v110
      %v218 = vmul.f32 %v111, %v111
      %v219 = vmul.f32 %v112, %v112
      %v220 = vmul.f32 %v113, %v113
      %v221 = vmul.f32 %v114, %v114
      %v222 = vmul.f32 %v115, %v115
      %v223 = vmul.f32 %v116, %v116
      %v224 = vmul.f32 %v117, %v117
      %v225 = vmul.f32 %v118, %v118
      %v226 = vmul.f32 %v119, %v119
      %v227 = vmul.f32 %v120, %v120
      %v228 = vmul.f32 %v121, %v121
      %v229 = vmul.f32 %v122, %v122
      %v230 = vmul.f32 %v123, %v123
      %v231 = vmul.f32 %v124, %v124
      %v232 = vmul.f32 %v125, %v125
      %v233 = vmul.f32 %v126, %v126
      %v234 = vmul.f32 %v127, %v127
      %v235 = vmul.f32 %v128, %v128
      %v236 = vmul.f32 %v129, %v129
      %v237 = vmul.f32 %v130, %v130
      %v238 = vmul.f32 %v131, %v131
      %v239 = vmul.f32 %v132, %v132
      %v240 = vmul.f32 %v133, %v133
      %v241 = vmul.f32 %v134, %v134
      %v242 = vmul.f32 %v135, %v135
      %v243 = vmul.f32 %v136, %v136
      %v244 = vmul.f32 %v137, %v137
      %v245 = vmul.f32 %v138, %v138
      %v246 = vmul.f32 %v139, %v139
      %v247 = vsel %vm141, %v215, 0.0
      %v248 = vsel %vm141, %v216, 0.0
      %v249 = vadd.f32 %v247, %v248
      %v250 = vsel %vm141, %v217, 0.0
      %v251 = vadd.f32 %v249, %v250
      %v252 = vsel %vm141, %v218, 0.0
      %v253 = vadd.f32 %v251, %v252
      %v254 = vsel %vm141, %v219, 0.0
      %v255 = vadd.f32 %v253, %v254
      %v256 = vsel %vm141, %v220, 0.0
      %v257 = vadd.f32 %v255, %v256
      %v258 = vsel %vm141, %v221, 0.0
      %v259 = vadd.f32 %v257, %v258
      %v260 = vsel %vm141, %v222, 0.0
      %v261 = vadd.f32 %v259, %v260
      %v262 = vsel %vm141, %v223, 0.0
      %v263 = vadd.f32 %v261, %v262
      %v264 = vsel %vm141, %v224, 0.0
      %v265 = vadd.f32 %v263, %v264
      %v266 = vsel %vm141, %v225, 0.0
      %v267 = vadd.f32 %v265, %v266
      %v268 = vsel %vm141, %v226, 0.0
      %v269 = vadd.f32 %v267, %v268
      %v270 = vsel %vm141, %v227, 0.0
      %v271 = vadd.f32 %v269, %v270
      %v272 = vsel %vm141, %v228, 0.0
      %v273 = vadd.f32 %v271, %v272
      %v274 = vsel %vm141, %v229, 0.0
      %v275 = vadd.f32 %v273, %v274
      %v276 = vsel %vm141, %v230, 0.0
      %v277 = vadd.f32 %v275, %v276
      %v278 = vsel %vm141, %v231, 0.0
      %v279 = vadd.f32 %v277, %v278
      %v280 = vsel %vm141, %v232, 0.0
      %v281 = vadd.f32 %v279, %v280
      %v282 = vsel %vm141, %v233, 0.0
      %v283 = vadd.f32 %v281, %v282
      %v284 = vsel %vm141, %v234, 0.0
      %v285 = vadd.f32 %v283, %v284
      %v286 = vsel %vm141, %v235, 0.0
      %v287 = vadd.f32 %v285, %v286
      %v288 = vsel %vm141, %v236, 0.0
      %v289 = vadd.f32 %v287, %v288
      %v290 = vsel %vm141, %v237, 0.0
      %v291 = vadd.f32 %v289, %v290
      %v292 = vsel %vm141, %v238, 0.0
      %v293 = vadd.f32 %v291, %v292
      %v294 = vsel %vm141, %v239, 0.0
      %v295 = vadd.f32 %v293, %v294
      %v296 = vsel %vm141, %v240, 0.0
      %v297 = vadd.f32 %v295, %v296
      %v298 = vsel %vm141, %v241, 0.0
      %v299 = vadd.f32 %v297, %v298
      %v300 = vsel %vm141, %v242, 0.0
      %v301 = vadd.f32 %v299, %v300
      %v302 = vsel %vm141, %v243, 0.0
      %v303 = vadd.f32 %v301, %v302
      %v304 = vsel %vm141, %v244, 0.0
      %v305 = vadd.f32 %v303, %v304
      %v306 = vsel %vm141, %v245, 0.0
      %v307 = vadd.f32 %v305, %v306
      %v308 = vsel %vm141, %v246, 0.0
      %v309 = vadd.f32 %v307, %v308
      %v310 = vrot.slane %v309, 4
      %v311 = vadd.f32 %v309, %v310
      %v312 = vrot.slane %v311, 2
      %v313 = vadd.f32 %v311, %v312
      %v314 = vrot.slane %v313, 1
      %v315 = vadd.f32 %v313, %v314
      %v316 = vadd.f32 %v214, %v315
      %317 = vst.msk [vmem:[%s1 + $0x1] sm:$0x1] %vm212, %v316
      // Predicated region
      $region29: #{multi_head_attention_block.8} parent=23 // pred_check
        %p318 = pneg %p51
      $region30: #{multi_head_attention_block.8} parent=23 // pred_check_branch
        %320 = sbr.rel (%p318) target = $region32
      $region31: #{multi_head_attention_block.8} parent=23 // pred_region
        _
      $region32: #{multi_head_attention_block.8} parent=23 // pred_fallthru
        _
      // Predicated region
      $region33: #{multi_head_attention_block.8} parent=23 // pred_check
        %p321 = pneg %p51
      $region34: #{multi_head_attention_block.8} parent=23 // pred_check_branch
        %323 = sbr.rel (%p321) target = $region36
      $region35: #{multi_head_attention_block.8} parent=23 // pred_region
        _
      $region36: #{multi_head_attention_block.8} parent=23 // pred_fallthru
        _
    $region24: #{multi_head_attention_block.8} parent=5 // pred_fallthru
      _
    %p324 = scmp.le.s32.totalorder 2, %s7
    // Predicated region
    $region37: #{multi_head_attention_block.8} parent=5 // pred_check
      %p325 = pneg %p324
    $region38: #{multi_head_attention_block.8} parent=5 // pred_check_branch
      %327 = sbr.rel (%p325) target = $region40
    $region39: #{multi_head_attention_block.8} parent=5 // pred_region
      %s328 = ssub.s32 %s7, 2
    $region40: #{multi_head_attention_block.8} parent=5 // pred_fallthru
      _
  $region6: #{multi_head_attention_block.8} parent=0 // loop_footer
    %s11 = sadd.s32 1, %s7
  $region7: #{multi_head_attention_block.8} parent=0 // loop_footer_branch
    %6 = sbr.rel target = $region3
  $region8: #{multi_head_attention_block.8} parent=0 // loop_exit
    _

// kernel: multi_head_attention_block.7
$region0: #{multi_head_attention_block.7}
  #allocation0 [shape = 'u32[]', space=smem, size = 0x4, offset = 0x4, fixed_abs, tag = 'smem constant byte address 0x4 - core index']
  #allocation1 [shape = 'u32[144,128]{1,0:T(1,128)}', space=vmem, size = 0x12000, scoped, tag = 'internal scratch']
  %s0 = inlined_call_operand.vmem [shape: bf16[2,24,256,4], index: 0, kind: input, shape index: {}]
  %s1 = inlined_call_operand.vmem [shape: f32[2,256,32], index: 1, kind: input, shape index: {}]
  %s2 = inlined_call_operand.vmem [shape: bf16[8,4,32], index: 2, kind: input, shape index: {}]
  %s3 = inlined_call_operand.vmem [shape: f32[1,32], index: 3, kind: input, shape index: {}]
  %s4 = inlined_call_operand.vmem [shape: f32[2,256,32], index: 4, kind: output, shape index: {}]
  %s5 = sld [smem:[#allocation0]]
  $region53: #{multi_head_attention_block.7} parent=0
    _
  %s7 = ssub.s32 1, %s5
  %s8 = scalar_select 0, %s7, %s5
  loop: start=0, step=1, limit=18
  $region2: #{multi_head_attention_block.7} parent=0 // loop_pre_header
    _
  $region3: #{multi_head_attention_block.7} parent=0 // loop_header
    %s10 = sphi 0, %s14
    %p11 = scmp.ge.s32.totalorder %s10, 18
    %s17 = sphi 0, %s29
    %s18 = sphi 0, %s25
    %s19 = sphi 0, %s17
    %s20 = sphi 0, %s18
    %s21 = sphi 0, %s19
    %s22 = sphi 0, %s20
    %s34 = sphi 0, %s36
    %s37 = sphi 0, %s34
    %s38 = sphi 0, %s37
    %s54 = sphi 0, %s38
    %s60 = sphi 0, %s62
    %s63 = sphi 0, %s60
    %s64 = sphi 0, %s63
    %s80 = sphi 0, %s64
    %s86 = sphi 0, %s88
    %s89 = sphi 0, %s86
    %s90 = sphi 0, %s89
    %s106 = sphi 0, %s90
    %s110 = sphi 0, %s110
    %s112 = sphi 0, %s110
    %s113 = sphi 0, %s112
    %s127 = sphi 0, %s113
    %s133 = sphi 0, %s135
    %s136 = sphi 0, %s133
    %s137 = sphi 0, %s136
    %s153 = sphi 0, %s137
  $region4: #{multi_head_attention_block.7} parent=0 // loop_header_branch
    %13 = sbr.rel (%p11) target = $region8
  $region5: #{multi_head_attention_block.7} parent=0 // loop_body
    %s15 = ssub.s32 %s10, 1
    %s16 = ssub.s32 %s10, 2
    %s23 = sadd.s32 1, %s18
    %p24 = scmp.ge.s32.totalorder %s23, 8
    %s25 = scalar_select %p24, 0, %s23
    %s26 = sadd.s32 1, %s17
    %s27 = scalar_select %p24, %s26, %s17
    %p28 = scmp.ge.s32.totalorder %s27, 2
    %s29 = scalar_select %p28, 0, %s27
    %s30 = ssub.s32 %s17, %s29
    %s31 = ssub.s32 %s18, %s25
    %s32 = sor.u32 %s30, %s31
    %p33 = scmp.eq.s32.totalorder %s32, 0
    %s35 = sadd.s32 %s34, 1
    %s36 = scalar_select %p33, %s34, %s35
    %p39 = pneg %p33
    %p40 = scmp.eq.s32.totalorder %s10, 15
    %p41 = por %p39, %p40
    %p42 = scmp.ne.s32.totalorder %s34, %s37
    %p43 = scmp.eq.s32.totalorder %s10, 0
    %p44 = por %p42, %p43
    %p45 = scmp.ne.s32.totalorder %s34, %s37
    %p46 = scmp.eq.s32.totalorder %s15, 15
    %p47 = por %p45, %p46
    %p48 = scmp.ne.s32.totalorder %s37, %s38
    %p49 = scmp.eq.s32.totalorder %s15, 0
    %p50 = por %p48, %p49
    %p51 = scmp.ne.s32.totalorder %s37, %s38
    %p52 = scmp.eq.s32.totalorder %s16, 15
    %p53 = por %p51, %p52
    %p55 = scmp.ne.s32.totalorder %s38, %s54
    %p56 = scmp.eq.s32.totalorder %s16, 0
    %p57 = por %p55, %p56
    %s58 = ssub.s32 %s17, %s29
    %p59 = scmp.eq.s32.totalorder %s58, 0
    %s61 = sadd.s32 %s60, 1
    %s62 = scalar_select %p59, %s60, %s61
    %p65 = pneg %p59
    %p66 = scmp.eq.s32.totalorder %s10, 15
    %p67 = por %p65, %p66
    %p68 = scmp.ne.s32.totalorder %s60, %s63
    %p69 = scmp.eq.s32.totalorder %s10, 0
    %p70 = por %p68, %p69
    %p71 = scmp.ne.s32.totalorder %s60, %s63
    %p72 = scmp.eq.s32.totalorder %s15, 15
    %p73 = por %p71, %p72
    %p74 = scmp.ne.s32.totalorder %s63, %s64
    %p75 = scmp.eq.s32.totalorder %s15, 0
    %p76 = por %p74, %p75
    %p77 = scmp.ne.s32.totalorder %s63, %s64
    %p78 = scmp.eq.s32.totalorder %s16, 15
    %p79 = por %p77, %p78
    %p81 = scmp.ne.s32.totalorder %s64, %s80
    %p82 = scmp.eq.s32.totalorder %s16, 0
    %p83 = por %p81, %p82
    %s84 = ssub.s32 %s18, %s25
    %p85 = scmp.eq.s32.totalorder %s84, 0
    %s87 = sadd.s32 %s86, 1
    %s88 = scalar_select %p85, %s86, %s87
    %p91 = pneg %p85
    %p92 = scmp.eq.s32.totalorder %s10, 15
    %p93 = por %p91, %p92
    %p94 = scmp.ne.s32.totalorder %s86, %s89
    %p95 = scmp.eq.s32.totalorder %s10, 0
    %p96 = por %p94, %p95
    %p97 = scmp.ne.s32.totalorder %s86, %s89
    %p98 = scmp.eq.s32.totalorder %s15, 15
    %p99 = por %p97, %p98
    %p100 = scmp.ne.s32.totalorder %s89, %s90
    %p101 = scmp.eq.s32.totalorder %s15, 0
    %p102 = por %p100, %p101
    %p103 = scmp.ne.s32.totalorder %s89, %s90
    %p104 = scmp.eq.s32.totalorder %s16, 15
    %p105 = por %p103, %p104
    %p107 = scmp.ne.s32.totalorder %s90, %s106
    %p108 = scmp.eq.s32.totalorder %s16, 0
    %p109 = por %p107, %p108
    %s111 = sadd.s32 %s110, 1
    %p114 = scmp.eq.s32.totalorder %s10, 15
    %p115 = scmp.ne.s32.totalorder %s110, %s112
    %p116 = scmp.eq.s32.totalorder %s10, 0
    %p117 = por %p115, %p116
    %p118 = scmp.ne.s32.totalorder %s110, %s112
    %p119 = scmp.eq.s32.totalorder %s15, 15
    %p120 = por %p118, %p119
    %p121 = scmp.ne.s32.totalorder %s112, %s113
    %p122 = scmp.eq.s32.totalorder %s15, 0
    %p123 = por %p121, %p122
    %p124 = scmp.ne.s32.totalorder %s112, %s113
    %p125 = scmp.eq.s32.totalorder %s16, 15
    %p126 = por %p124, %p125
    %p128 = scmp.ne.s32.totalorder %s113, %s127
    %p129 = scmp.eq.s32.totalorder %s16, 0
    %p130 = por %p128, %p129
    %s131 = ssub.s32 %s17, %s29
    %p132 = scmp.eq.s32.totalorder %s131, 0
    %s134 = sadd.s32 %s133, 1
    %s135 = scalar_select %p132, %s133, %s134
    %p138 = pneg %p132
    %p139 = scmp.eq.s32.totalorder %s10, 15
    %p140 = por %p138, %p139
    %p141 = scmp.ne.s32.totalorder %s133, %s136
    %p142 = scmp.eq.s32.totalorder %s10, 0
    %p143 = por %p141, %p142
    %p144 = scmp.ne.s32.totalorder %s133, %s136
    %p145 = scmp.eq.s32.totalorder %s15, 15
    %p146 = por %p144, %p145
    %p147 = scmp.ne.s32.totalorder %s136, %s137
    %p148 = scmp.eq.s32.totalorder %s15, 0
    %p149 = por %p147, %p148
    %p150 = scmp.ne.s32.totalorder %s136, %s137
    %p151 = scmp.eq.s32.totalorder %s16, 15
    %p152 = por %p150, %p151
    %p154 = scmp.ne.s32.totalorder %s137, %s153
    %p155 = scmp.eq.s32.totalorder %s16, 0
    %p156 = por %p154, %p155
    %p157 = scmp.le.s32.totalorder 1, %s10
    %p158 = scmp.lt.s32.totalorder %s10, 17
    %p159 = pnand %p157, %p158
    %p160 = pneg %p159
    // Predicated region
    $region9: #{multi_head_attention_block.7} parent=5 // pred_check
      _
    $region10: #{multi_head_attention_block.7} parent=5 // pred_check_branch
      %162 = sbr.rel (%p159) target = $region12
    $region11: #{multi_head_attention_block.7} parent=5 // pred_region
      %s163 = ssub.s32 %s10, 1
      // Predicated region
      $region13: #{multi_head_attention_block.7} parent=11 // pred_check
        %p164 = pneg %p123
      $region14: #{multi_head_attention_block.7} parent=11 // pred_check_branch
        %166 = sbr.rel (%p164) target = $region16
      $region15: #{multi_head_attention_block.7} parent=11 // pred_region
        _
      $region16: #{multi_head_attention_block.7} parent=11 // pred_fallthru
        _
    $region12: #{multi_head_attention_block.7} parent=5 // pred_fallthru
      _
    %p167 = scmp.lt.s32.totalorder %s10, 16
    // Predicated region
    $region17: #{multi_head_attention_block.7} parent=5 // pred_check
      %p168 = pneg %p167
    $region18: #{multi_head_attention_block.7} parent=5 // pred_check_branch
      %170 = sbr.rel (%p168) target = $region20
    $region19: #{multi_head_attention_block.7} parent=5 // pred_region
      // Predicated region
      $region21: #{multi_head_attention_block.7} parent=19 // pred_check
        %p171 = pneg %p44
      $region22: #{multi_head_attention_block.7} parent=19 // pred_check_branch
        %173 = sbr.rel (%p171) target = $region24
      $region23: #{multi_head_attention_block.7} parent=19 // pred_region
        %s174 = smul.u32 3, %s18
        %p175 = scmp.lt.s32.totalorder %s17, 1
        %s176 = scalar_select %p175, %s17, 1
        %p177 = scmp.lt.s32.totalorder %s174, 23
        %s178 = scalar_select %p177, %s174, 23
        %s179 = smul.addr %s178, 32
        %s180 = smul.addr %s176, 768
        %s181 = sadd.s32 %s179, %s180
        %s182 = smul.addr %s181, 4
        %s183 = scalar_lea.vmem %s0, %s182
        %s184 = smul.u32 3, %s18
      $region24: #{multi_head_attention_block.7} parent=19 // pred_fallthru
        _
      // Predicated region
      $region25: #{multi_head_attention_block.7} parent=19 // pred_check
        %p185 = pneg %p70
      $region26: #{multi_head_attention_block.7} parent=19 // pred_check_branch
        %187 = sbr.rel (%p185) target = $region28
      $region27: #{multi_head_attention_block.7} parent=19 // pred_region
        %p188 = scmp.lt.s32.totalorder %s17, 1
        %s189 = scalar_select %p188, %s17, 1
        %s190 = smul.addr %s189, 32
        %s191 = smul.addr %s190, 8
        %s192 = scalar_lea.vmem %s1, %s191
      $region28: #{multi_head_attention_block.7} parent=19 // pred_fallthru
        _
      // Predicated region
      $region29: #{multi_head_attention_block.7} parent=19 // pred_check
        %p193 = pneg %p96
      $region30: #{multi_head_attention_block.7} parent=19 // pred_check_branch
        %195 = sbr.rel (%p193) target = $region32
      $region31: #{multi_head_attention_block.7} parent=19 // pred_region
        %p196 = scmp.lt.s32.totalorder %s18, 7
        %s197 = scalar_select %p196, %s18, 7
        %s198 = smul.addr %s197, 2
        %s199 = scalar_lea.vmem %s2, %s198
      $region32: #{multi_head_attention_block.7} parent=19 // pred_fallthru
        _
    $region20: #{multi_head_attention_block.7} parent=5 // pred_fallthru
      _
    %p200 = scmp.le.s32.totalorder 1, %s10
    %p201 = scmp.lt.s32.totalorder %s10, 17
    %p202 = pnand %p200, %p201
    %p203 = pneg %p202
    // Predicated region
    $region33: #{multi_head_attention_block.7} parent=5 // pred_check
      _
    $region34: #{multi_head_attention_block.7} parent=5 // pred_check_branch
      %205 = sbr.rel (%p202) target = $region36
    $region35: #{multi_head_attention_block.7} parent=5 // pred_region
      %s206 = ssub.s32 %s10, 1
      %s207 = smul.u32 3, %s20
      %p208 = scmp.lt.s32.totalorder %s19, 1
      %s209 = scalar_select %p208, %s19, 1
      %p210 = scmp.lt.s32.totalorder %s207, 23
      %s211 = scalar_select %p210, %s207, 23
      %s212 = smul.addr %s211, 32
      %s213 = smul.addr %s209, 768
      %s214 = sadd.s32 %s212, %s213
      %s215 = smul.addr %s214, 4
      %s216 = scalar_lea.vmem %s0, %s215
      %p217 = pneg %p50
      %p218 = pneg %p47
      %p219 = scmp.lt.s32.totalorder %s19, 1
      %s220 = scalar_select %p219, %s19, 1
      %s221 = smul.addr %s220, 32
      %s222 = smul.addr %s221, 8
      %s223 = scalar_lea.vmem %s1, %s222
      %p224 = pneg %p76
      %p225 = pneg %p73
      %p226 = scmp.lt.s32.totalorder %s20, 7
      %s227 = scalar_select %p226, %s20, 7
      %s228 = smul.addr %s227, 2
      %s229 = scalar_lea.vmem %s2, %s228
      %p230 = pneg %p102
      %p231 = pneg %p99
      %p232 = pneg %p123
      %p233 = pneg %p120
      %p234 = pneg %p149
      %p235 = pneg %p146
      %p236 = scmp.lt.s32.totalorder %s19, 1
      %s237 = scalar_select %p236, %s19, 1
      %s238 = smul.addr %s237, 32
      %s239 = smul.addr %s238, 8
      %s240 = scalar_lea.vmem %s4, %s239
      %s241 = smul.u32 3, %s20
      %p242 = scmp.lt.s32.totalorder %s19, 1
      %s243 = scalar_select %p242, %s19, 1
      %p244 = scmp.lt.s32.totalorder %s241, 23
      %s245 = scalar_select %p244, %s241, 23
      %s246 = smul.addr %s245, 32
      %s247 = smul.addr %s243, 768
      %s248 = sadd.s32 %s246, %s247
      %s249 = smul.addr %s248, 4
      %s250 = scalar_lea.vmem %s0, %s249
      %s251 = smul.u32 3, %s20
      %p252 = scmp.lt.s32.totalorder %s19, 1
      %s253 = scalar_select %p252, %s19, 1
      %s254 = smul.addr %s253, 32
      %s255 = smul.addr %s254, 8
      %s256 = scalar_lea.vmem %s1, %s255
      %p257 = scmp.lt.s32.totalorder %s20, 7
      %s258 = scalar_select %p257, %s20, 7
      %s259 = smul.addr %s258, 2
      %s260 = scalar_lea.vmem %s2, %s259
      %p261 = scmp.lt.s32.totalorder %s19, 1
      %s262 = scalar_select %p261, %s19, 1
      %s263 = smul.addr %s262, 32
      %s264 = smul.addr %s263, 8
      %s265 = scalar_lea.vmem %s4, %s264
      %p267 = scmp.eq.s32.totalorder %s20, 0
      // Predicated region
      $region37: #{multi_head_attention_block.7} parent=35 // pred_check
        %p268 = pneg %p267
      $region38: #{multi_head_attention_block.7} parent=35 // pred_check_branch
        %270 = sbr.rel (%p268) target = $region40
      $region39: #{multi_head_attention_block.7} parent=35 // pred_region
        %v271 = vld [vmem:[%s256] sm:$0xff]
        %v272 = vld [vmem:[%s256 + $0x8] sm:$0xff]
        %v273 = vld [vmem:[%s256 + $0x10] sm:$0xff]
        %v274 = vld [vmem:[%s256 + $0x18] sm:$0xff]
        %v275 = vld [vmem:[%s256 + $0x20] sm:$0xff]
        %v276 = vld [vmem:[%s256 + $0x28] sm:$0xff]
        %v277 = vld [vmem:[%s256 + $0x30] sm:$0xff]
        %v278 = vld [vmem:[%s256 + $0x38] sm:$0xff]
        %v279 = vld [vmem:[%s256 + $0x40] sm:$0xff]
        %v280 = vld [vmem:[%s256 + $0x48] sm:$0xff]
        %v281 = vld [vmem:[%s256 + $0x50] sm:$0xff]
        %v282 = vld [vmem:[%s256 + $0x58] sm:$0xff]
        %v283 = vld [vmem:[%s256 + $0x60] sm:$0xff]
        %v284 = vld [vmem:[%s256 + $0x68] sm:$0xff]
        %v285 = vld [vmem:[%s256 + $0x70] sm:$0xff]
        %v286 = vld [vmem:[%s256 + $0x78] sm:$0xff]
        %v287 = vld [vmem:[%s256 + $0x80] sm:$0xff]
        %v288 = vld [vmem:[%s256 + $0x88] sm:$0xff]
        %v289 = vld [vmem:[%s256 + $0x90] sm:$0xff]
        %v290 = vld [vmem:[%s256 + $0x98] sm:$0xff]
        %v291 = vld [vmem:[%s256 + $0xa0] sm:$0xff]
        %v292 = vld [vmem:[%s256 + $0xa8] sm:$0xff]
        %v293 = vld [vmem:[%s256 + $0xb0] sm:$0xff]
        %v294 = vld [vmem:[%s256 + $0xb8] sm:$0xff]
        %v295 = vld [vmem:[%s256 + $0xc0] sm:$0xff]
        %v296 = vld [vmem:[%s256 + $0xc8] sm:$0xff]
        %v297 = vld [vmem:[%s256 + $0xd0] sm:$0xff]
        %v298 = vld [vmem:[%s256 + $0xd8] sm:$0xff]
        %v299 = vld [vmem:[%s256 + $0xe0] sm:$0xff]
        %v300 = vld [vmem:[%s256 + $0xe8] sm:$0xff]
        %v301 = vld [vmem:[%s256 + $0xf0] sm:$0xff]
        %v302 = vld [vmem:[%s256 + $0xf8] sm:$0xff]
        %v303 = vld [vmem:[%s3] sm:$0x1]
        %v305 = vlaneseq
        %v306 = vshrl.u32 %v305, 7
        %v307 = vsub.s32 0, %v306
        %v308 = vrot.slane %v303, %v307
        %v310 = vadd.f32 %v271, %v308
        %v311 = vadd.f32 %v272, %v308
        %v312 = vadd.f32 %v273, %v308
        %v313 = vadd.f32 %v274, %v308
        %v314 = vadd.f32 %v275, %v308
        %v315 = vadd.f32 %v276, %v308
        %v316 = vadd.f32 %v277, %v308
        %v317 = vadd.f32 %v278, %v308
        %v318 = vadd.f32 %v279, %v308
        %v319 = vadd.f32 %v280, %v308
        %v320 = vadd.f32 %v281, %v308
        %v321 = vadd.f32 %v282, %v308
        %v322 = vadd.f32 %v283, %v308
        %v323 = vadd.f32 %v284, %v308
        %v324 = vadd.f32 %v285, %v308
        %v325 = vadd.f32 %v286, %v308
        %v326 = vadd.f32 %v287, %v308
        %v327 = vadd.f32 %v288, %v308
        %v328 = vadd.f32 %v289, %v308
        %v329 = vadd.f32 %v290, %v308
        %v330 = vadd.f32 %v291, %v308
        %v331 = vadd.f32 %v292, %v308
        %v332 = vadd.f32 %v293, %v308
        %v333 = vadd.f32 %v294, %v308
        %v334 = vadd.f32 %v295, %v308
        %v335 = vadd.f32 %v296, %v308
        %v336 = vadd.f32 %v297, %v308
        %v337 = vadd.f32 %v298, %v308
        %v338 = vadd.f32 %v299, %v308
        %v339 = vadd.f32 %v300, %v308
        %v340 = vadd.f32 %v301, %v308
        %v341 = vadd.f32 %v302, %v308
        %vm342 = vcmask 261120
        %343 = vst.msk [vmem:[%s265] sm:$0xff] %vm342, %v310
        %344 = vst.msk [vmem:[%s265 + $0x8] sm:$0xff] %vm342, %v311
        %345 = vst.msk [vmem:[%s265 + $0x10] sm:$0xff] %vm342, %v312
        %346 = vst.msk [vmem:[%s265 + $0x18] sm:$0xff] %vm342, %v313
        %347 = vst.msk [vmem:[%s265 + $0x20] sm:$0xff] %vm342, %v314
        %348 = vst.msk [vmem:[%s265 + $0x28] sm:$0xff] %vm342, %v315
        %349 = vst.msk [vmem:[%s265 + $0x30] sm:$0xff] %vm342, %v316
        %350 = vst.msk [vmem:[%s265 + $0x38] sm:$0xff] %vm342, %v317
        %351 = vst.msk [vmem:[%s265 + $0x40] sm:$0xff] %vm342, %v318
        %352 = vst.msk [vmem:[%s265 + $0x48] sm:$0xff] %vm342, %v319
        %353 = vst.msk [vmem:[%s265 + $0x50] sm:$0xff] %vm342, %v320
        %354 = vst.msk [vmem:[%s265 + $0x58] sm:$0xff] %vm342, %v321
        %355 = vst.msk [vmem:[%s265 + $0x60] sm:$0xff] %vm342, %v322
        %356 = vst.msk [vmem:[%s265 + $0x68] sm:$0xff] %vm342, %v323
        %357 = vst.msk [vmem:[%s265 + $0x70] sm:$0xff] %vm342, %v324
        %358 = vst.msk [vmem:[%s265 + $0x78] sm:$0xff] %vm342, %v325
        %359 = vst.msk [vmem:[%s265 + $0x80] sm:$0xff] %vm342, %v326
        %360 = vst.msk [vmem:[%s265 + $0x88] sm:$0xff] %vm342, %v327
        %361 = vst.msk [vmem:[%s265 + $0x90] sm:$0xff] %vm342, %v328
        %362 = vst.msk [vmem:[%s265 + $0x98] sm:$0xff] %vm342, %v329
        %363 = vst.msk [vmem:[%s265 + $0xa0] sm:$0xff] %vm342, %v330
        %364 = vst.msk [vmem:[%s265 + $0xa8] sm:$0xff] %vm342, %v331
        %365 = vst.msk [vmem:[%s265 + $0xb0] sm:$0xff] %vm342, %v332
        %366 = vst.msk [vmem:[%s265 + $0xb8] sm:$0xff] %vm342, %v333
        %367 = vst.msk [vmem:[%s265 + $0xc0] sm:$0xff] %vm342, %v334
        %368 = vst.msk [vmem:[%s265 + $0xc8] sm:$0xff] %vm342, %v335
        %369 = vst.msk [vmem:[%s265 + $0xd0] sm:$0xff] %vm342, %v336
        %370 = vst.msk [vmem:[%s265 + $0xd8] sm:$0xff] %vm342, %v337
        %371 = vst.msk [vmem:[%s265 + $0xe0] sm:$0xff] %vm342, %v338
        %372 = vst.msk [vmem:[%s265 + $0xe8] sm:$0xff] %vm342, %v339
        %373 = vst.msk [vmem:[%s265 + $0xf0] sm:$0xff] %vm342, %v340
        %374 = vst.msk [vmem:[%s265 + $0xf8] sm:$0xff] %vm342, %v341
      $region40: #{multi_head_attention_block.7} parent=35 // pred_fallthru
        _
      %v375 = vld [vmem:[%s250] sm:$0xf]
      %v376 = vld [vmem:[%s250 + $0x4] sm:$0xf]
      %v377 = vld [vmem:[%s250 + $0x8] sm:$0xf]
      %v378 = vld [vmem:[%s250 + $0xc] sm:$0xf]
      %v379 = vld [vmem:[%s250 + $0x10] sm:$0xf]
      %v380 = vld [vmem:[%s250 + $0x14] sm:$0xf]
      %v381 = vld [vmem:[%s250 + $0x18] sm:$0xf]
      %v382 = vld [vmem:[%s250 + $0x1c] sm:$0xf]
      %v383 = vld [vmem:[%s250 + $0x20] sm:$0xf]
      %v384 = vld [vmem:[%s250 + $0x24] sm:$0xf]
      %v385 = vld [vmem:[%s250 + $0x28] sm:$0xf]
      %v386 = vld [vmem:[%s250 + $0x2c] sm:$0xf]
      %v387 = vld [vmem:[%s250 + $0x30] sm:$0xf]
      %v388 = vld [vmem:[%s250 + $0x34] sm:$0xf]
      %v389 = vld [vmem:[%s250 + $0x38] sm:$0xf]
      %v390 = vld [vmem:[%s250 + $0x3c] sm:$0xf]
      %v391 = vld [vmem:[%s250 + $0x40] sm:$0xf]
      %v392 = vld [vmem:[%s250 + $0x44] sm:$0xf]
      %v393 = vld [vmem:[%s250 + $0x48] sm:$0xf]
      %v394 = vld [vmem:[%s250 + $0x4c] sm:$0xf]
      %v395 = vld [vmem:[%s250 + $0x50] sm:$0xf]
      %v396 = vld [vmem:[%s250 + $0x54] sm:$0xf]
      %v397 = vld [vmem:[%s250 + $0x58] sm:$0xf]
      %v398 = vld [vmem:[%s250 + $0x5c] sm:$0xf]
      %v399 = vld [vmem:[%s250 + $0x60] sm:$0xf]
      %v400 = vld [vmem:[%s250 + $0x64] sm:$0xf]
      %v401 = vld [vmem:[%s250 + $0x68] sm:$0xf]
      %v402 = vld [vmem:[%s250 + $0x6c] sm:$0xf]
      %v403 = vld [vmem:[%s250 + $0x70] sm:$0xf]
      %v404 = vld [vmem:[%s250 + $0x74] sm:$0xf]
      %v405 = vld [vmem:[%s250 + $0x78] sm:$0xf]
      %v406 = vld [vmem:[%s250 + $0x7c] sm:$0xf]
      %s407 = scalar_lea.vmem %s250, 128
      %v408 = vld [vmem:[%s407] sm:$0xf]
      %v409 = vld [vmem:[%s407 + $0x4] sm:$0xf]
      %v410 = vld [vmem:[%s407 + $0x8] sm:$0xf]
      %v411 = vld [vmem:[%s407 + $0xc] sm:$0xf]
      %v412 = vld [vmem:[%s407 + $0x10] sm:$0xf]
      %v413 = vld [vmem:[%s407 + $0x14] sm:$0xf]
      %v414 = vld [vmem:[%s407 + $0x18] sm:$0xf]
      %v415 = vld [vmem:[%s407 + $0x1c] sm:$0xf]
      %v416 = vld [vmem:[%s407 + $0x20] sm:$0xf]
      %v417 = vld [vmem:[%s407 + $0x24] sm:$0xf]
      %v418 = vld [vmem:[%s407 + $0x28] sm:$0xf]
      %v419 = vld [vmem:[%s407 + $0x2c] sm:$0xf]
      %v420 = vld [vmem:[%s407 + $0x30] sm:$0xf]
      %v421 = vld [vmem:[%s407 + $0x34] sm:$0xf]
      %v422 = vld [vmem:[%s407 + $0x38] sm:$0xf]
      %v423 = vld [vmem:[%s407 + $0x3c] sm:$0xf]
      %v424 = vld [vmem:[%s407 + $0x40] sm:$0xf]
      %v425 = vld [vmem:[%s407 + $0x44] sm:$0xf]
      %v426 = vld [vmem:[%s407 + $0x48] sm:$0xf]
      %v427 = vld [vmem:[%s407 + $0x4c] sm:$0xf]
      %v428 = vld [vmem:[%s407 + $0x50] sm:$0xf]
      %v429 = vld [vmem:[%s407 + $0x54] sm:$0xf]
      %v430 = vld [vmem:[%s407 + $0x58] sm:$0xf]
      %v431 = vld [vmem:[%s407 + $0x5c] sm:$0xf]
      %v432 = vld [vmem:[%s407 + $0x60] sm:$0xf]
      %v433 = vld [vmem:[%s407 + $0x64] sm:$0xf]
      %v434 = vld [vmem:[%s407 + $0x68] sm:$0xf]
      %v435 = vld [vmem:[%s407 + $0x6c] sm:$0xf]
      %v436 = vld [vmem:[%s407 + $0x70] sm:$0xf]
      %v437 = vld [vmem:[%s407 + $0x74] sm:$0xf]
      %v438 = vld [vmem:[%s407 + $0x78] sm:$0xf]
      %v439 = vld [vmem:[%s407 + $0x7c] sm:$0xf]
      %s440 = scalar_lea.vmem %s250, 256
      %v441 = vld [vmem:[%s440] sm:$0xf]
      %v442 = vld [vmem:[%s440 + $0x4] sm:$0xf]
      %v443 = vld [vmem:[%s440 + $0x8] sm:$0xf]
      %v444 = vld [vmem:[%s440 + $0xc] sm:$0xf]
      %v445 = vld [vmem:[%s440 + $0x10] sm:$0xf]
      %v446 = vld [vmem:[%s440 + $0x14] sm:$0xf]
      %v447 = vld [vmem:[%s440 + $0x18] sm:$0xf]
      %v448 = vld [vmem:[%s440 + $0x1c] sm:$0xf]
      %v449 = vld [vmem:[%s440 + $0x20] sm:$0xf]
      %v450 = vld [vmem:[%s440 + $0x24] sm:$0xf]
      %v451 = vld [vmem:[%s440 + $0x28] sm:$0xf]
      %v452 = vld [vmem:[%s440 + $0x2c] sm:$0xf]
      %v453 = vld [vmem:[%s440 + $0x30] sm:$0xf]
      %v454 = vld [vmem:[%s440 + $0x34] sm:$0xf]
      %v455 = vld [vmem:[%s440 + $0x38] sm:$0xf]
      %v456 = vld [vmem:[%s440 + $0x3c] sm:$0xf]
      %v457 = vld [vmem:[%s440 + $0x40] sm:$0xf]
      %v458 = vld [vmem:[%s440 + $0x44] sm:$0xf]
      %v459 = vld [vmem:[%s440 + $0x48] sm:$0xf]
      %v460 = vld [vmem:[%s440 + $0x4c] sm:$0xf]
      %v461 = vld [vmem:[%s440 + $0x50] sm:$0xf]
      %v462 = vld [vmem:[%s440 + $0x54] sm:$0xf]
      %v463 = vld [vmem:[%s440 + $0x58] sm:$0xf]
      %v464 = vld [vmem:[%s440 + $0x5c] sm:$0xf]
      %v465 = vld [vmem:[%s440 + $0x60] sm:$0xf]
      %v466 = vld [vmem:[%s440 + $0x64] sm:$0xf]
      %v467 = vld [vmem:[%s440 + $0x68] sm:$0xf]
      %v468 = vld [vmem:[%s440 + $0x6c] sm:$0xf]
      %v469 = vld [vmem:[%s440 + $0x70] sm:$0xf]
      %v470 = vld [vmem:[%s440 + $0x74] sm:$0xf]
      %v471 = vld [vmem:[%s440 + $0x78] sm:$0xf]
      %v472 = vld [vmem:[%s440 + $0x7c] sm:$0xf]
      %v505 = vunpack.c.l.b16 %v375
      %v506 = vunpack.c.l.b16 %v376
      %v507 = vunpack.c.l.b16 %v377
      %v508 = vunpack.c.l.b16 %v378
      %v509 = vunpack.c.l.b16 %v379
      %v510 = vunpack.c.l.b16 %v380
      %v511 = vunpack.c.l.b16 %v381
      %v512 = vunpack.c.l.b16 %v382
      %v513 = vunpack.c.l.b16 %v383
      %v514 = vunpack.c.l.b16 %v384
      %v515 = vunpack.c.l.b16 %v385
      %v516 = vunpack.c.l.b16 %v386
      %v517 = vunpack.c.l.b16 %v387
      %v518 = vunpack.c.l.b16 %v388
      %v519 = vunpack.c.l.b16 %v389
      %v520 = vunpack.c.l.b16 %v390
      %v521 = vunpack.c.l.b16 %v391
      %v522 = vunpack.c.l.b16 %v392
      %v523 = vunpack.c.l.b16 %v393
      %v524 = vunpack.c.l.b16 %v394
      %v525 = vunpack.c.l.b16 %v395
      %v526 = vunpack.c.l.b16 %v396
      %v527 = vunpack.c.l.b16 %v397
      %v528 = vunpack.c.l.b16 %v398
      %v529 = vunpack.c.l.b16 %v399
      %v530 = vunpack.c.l.b16 %v400
      %v531 = vunpack.c.l.b16 %v401
      %v532 = vunpack.c.l.b16 %v402
      %v533 = vunpack.c.l.b16 %v403
      %v534 = vunpack.c.l.b16 %v404
      %v535 = vunpack.c.l.b16 %v405
      %v536 = vunpack.c.l.b16 %v406
      %v537 = vpack.c.b16 %v506, %v505
      %v538 = vpack.c.b16 %v508, %v507
      %v539 = vpack.c.b16 %v510, %v509
      %v540 = vpack.c.b16 %v512, %v511
      %v541 = vpack.c.b16 %v514, %v513
      %v542 = vpack.c.b16 %v516, %v515
      %v543 = vpack.c.b16 %v518, %v517
      %v544 = vpack.c.b16 %v520, %v519
      %v545 = vpack.c.b16 %v522, %v521
      %v546 = vpack.c.b16 %v524, %v523
      %v547 = vpack.c.b16 %v526, %v525
      %v548 = vpack.c.b16 %v528, %v527
      %v549 = vpack.c.b16 %v530, %v529
      %v550 = vpack.c.b16 %v532, %v531
      %v551 = vpack.c.b16 %v534, %v533
      %v552 = vpack.c.b16 %v536, %v535
      %v585 = vunpack.c.l.b16 %v408
      %v586 = vunpack.c.l.b16 %v409
      %v587 = vunpack.c.l.b16 %v410
      %v588 = vunpack.c.l.b16 %v411
      %v589 = vunpack.c.l.b16 %v412
      %v590 = vunpack.c.l.b16 %v413
      %v591 = vunpack.c.l.b16 %v414
      %v592 = vunpack.c.l.b16 %v415
      %v593 = vunpack.c.l.b16 %v416
      %v594 = vunpack.c.l.b16 %v417
      %v595 = vunpack.c.l.b16 %v418
      %v596 = vunpack.c.l.b16 %v419
      %v597 = vunpack.c.l.b16 %v420
      %v598 = vunpack.c.l.b16 %v421
      %v599 = vunpack.c.l.b16 %v422
      %v600 = vunpack.c.l.b16 %v423
      %v601 = vunpack.c.l.b16 %v424
      %v602 = vunpack.c.l.b16 %v425
      %v603 = vunpack.c.l.b16 %v426
      %v604 = vunpack.c.l.b16 %v427
      %v605 = vunpack.c.l.b16 %v428
      %v606 = vunpack.c.l.b16 %v429
      %v607 = vunpack.c.l.b16 %v430
      %v608 = vunpack.c.l.b16 %v431
      %v609 = vunpack.c.l.b16 %v432
      %v610 = vunpack.c.l.b16 %v433
      %v611 = vunpack.c.l.b16 %v434
      %v612 = vunpack.c.l.b16 %v435
      %v613 = vunpack.c.l.b16 %v436
      %v614 = vunpack.c.l.b16 %v437
      %v615 = vunpack.c.l.b16 %v438
      %v616 = vunpack.c.l.b16 %v439
      %v617 = vpack.c.b16 %v586, %v585
      %v618 = vpack.c.b16 %v588, %v587
      %v619 = vpack.c.b16 %v590, %v589
      %v620 = vpack.c.b16 %v592, %v591
      %v621 = vpack.c.b16 %v594, %v593
      %v622 = vpack.c.b16 %v596, %v595
      %v623 = vpack.c.b16 %v598, %v597
      %v624 = vpack.c.b16 %v600, %v599
      %v625 = vpack.c.b16 %v602, %v601
      %v626 = vpack.c.b16 %v604, %v603
      %v627 = vpack.c.b16 %v606, %v605
      %v628 = vpack.c.b16 %v608, %v607
      %v629 = vpack.c.b16 %v610, %v609
      %v630 = vpack.c.b16 %v612, %v611
      %v631 = vpack.c.b16 %v614, %v613
      %v632 = vpack.c.b16 %v616, %v615
      %vm633 = vcmask 31744
      %v635 = vsel %vm633, %v537, 0
      %v638 = vsel %vm633, %v538, 0
      %v641 = vsel %vm633, %v539, 0
      %v644 = vsel %vm633, %v540, 0
      %v647 = vsel %vm633, %v541, 0
      %v650 = vsel %vm633, %v542, 0
      %v653 = vsel %vm633, %v543, 0
      %v656 = vsel %vm633, %v544, 0
      %v659 = vsel %vm633, %v545, 0
      %v662 = vsel %vm633, %v546, 0
      %v665 = vsel %vm633, %v547, 0
      %v668 = vsel %vm633, %v548, 0
      %v671 = vsel %vm633, %v549, 0
      %v674 = vsel %vm633, %v550, 0
      %v677 = vsel %vm633, %v551, 0
      %v680 = vsel %vm633, %v552, 0
      %v683 = vsel %vm633, %v617, 0
      %v686 = vsel %vm633, %v618, 0
      %v689 = vsel %vm633, %v619, 0
      %v692 = vsel %vm633, %v620, 0
      %v695 = vsel %vm633, %v621, 0
      %v698 = vsel %vm633, %v622, 0
      %v701 = vsel %vm633, %v623, 0
      %v704 = vsel %vm633, %v624, 0
      %v707 = vsel %vm633, %v625, 0
      %v710 = vsel %vm633, %v626, 0
      %v713 = vsel %vm633, %v627, 0
      %v716 = vsel %vm633, %v628, 0
      %v719 = vsel %vm633, %v629, 0
      %v722 = vsel %vm633, %v630, 0
      %v725 = vsel %vm633, %v631, 0
      %v728 = vsel %vm633, %v632, 0
      %730 = vmatprep.subr.bf16.mxu0 0
      %731 = vmatpush1.bf16.xpose.msra.mxu0 %v704
      %732 = vmatprep.subr.bf16.mxu0 0
      %733 = vmatpush1.bf16.xpose.msra.mxu0 %v701
      %734 = vmatprep.subr.bf16.mxu0 0
      %735 = vmatpush1.bf16.xpose.msra.mxu0 %v698
      %736 = vmatprep.subr.bf16.mxu0 0
      %737 = vmatpush1.bf16.xpose.msra.mxu0 %v695
      %738 = vmatprep.subr.bf16.mxu0 0
      %739 = vmatpush1.bf16.xpose.msra.mxu0 %v692
      %740 = vmatprep.subr.bf16.mxu0 0
      %741 = vmatpush1.bf16.xpose.msra.mxu0 %v689
      %742 = vmatprep.subr.bf16.mxu0 0
      %743 = vmatpush1.bf16.xpose.msra.mxu0 %v686
      %744 = vmatprep.subr.bf16.mxu0 0
      %745 = vmatpush1.bf16.xpose.msra.mxu0 %v683
      %746 = vmatprep.subr.bf16.mxu0 0
      %747 = vmatpush2.bf16.xpose.msra.mxu0 %v728
      %748 = vmatprep.subr.bf16.mxu0 0
      %749 = vmatpush2.bf16.xpose.msra.mxu0 %v725
      %750 = vmatprep.subr.bf16.mxu0 0
      %751 = vmatpush2.bf16.xpose.msra.mxu0 %v722
      %752 = vmatprep.subr.bf16.mxu0 0
      %753 = vmatpush2.bf16.xpose.msra.mxu0 %v719
      %754 = vmatprep.subr.bf16.mxu0 0
      %755 = vmatpush2.bf16.xpose.msra.mxu0 %v716
      %756 = vmatprep.subr.bf16.mxu0 0
      %757 = vmatpush2.bf16.xpose.msra.mxu0 %v713
      %758 = vmatprep.subr.bf16.mxu0 0
      %759 = vmatpush2.bf16.xpose.msra.mxu0 %v710
      %760 = vmatprep.subr.bf16.mxu0 0
      %761 = vmatpush2.bf16.xpose.msra.mxu0 %v707
      %762 = vmatprep.mubr.bf16.mxu0 0
      %763 = vmatmul.mubr.bf16.gmra.mxu0 %v635
      %v764 = vpop.f32.mrf.mxu0
      %v765 = vadd.f32 0.0, %v764
      %v766 = vpop.f32.mrf.mxu0
      %v767 = vadd.f32 0.0, %v766
      %v768 = vpop.f32.mrf.mxu0
      %v769 = vadd.f32 0.0, %v768
      %v770 = vpop.f32.mrf.mxu0
      %v771 = vadd.f32 0.0, %v770
      %772 = vmatprep.mubr.bf16.mxu0 0
      %773 = vmatmul.mubr.bf16.gmra.mxu0 %v638
      %v774 = vpop.f32.mrf.mxu0
      %v775 = vadd.f32 0.0, %v774
      %v776 = vpop.f32.mrf.mxu0
      %v777 = vadd.f32 0.0, %v776
      %v778 = vpop.f32.mrf.mxu0
      %v779 = vadd.f32 0.0, %v778
      %v780 = vpop.f32.mrf.mxu0
      %v781 = vadd.f32 0.0, %v780
      %782 = vmatprep.mubr.bf16.mxu0 0
      %783 = vmatmul.mubr.bf16.gmra.mxu0 %v641
      %v784 = vpop.f32.mrf.mxu0
      %v785 = vadd.f32 0.0, %v784
      %v786 = vpop.f32.mrf.mxu0
      %v787 = vadd.f32 0.0, %v786
      %v788 = vpop.f32.mrf.mxu0
      %v789 = vadd.f32 0.0, %v788
      %v790 = vpop.f32.mrf.mxu0
      %v791 = vadd.f32 0.0, %v790
      %792 = vmatprep.mubr.bf16.mxu0 0
      %793 = vmatmul.mubr.bf16.gmra.mxu0 %v644
      %v794 = vpop.f32.mrf.mxu0
      %v795 = vadd.f32 0.0, %v794
      %v796 = vpop.f32.mrf.mxu0
      %v797 = vadd.f32 0.0, %v796
      %v798 = vpop.f32.mrf.mxu0
      %v799 = vadd.f32 0.0, %v798
      %v800 = vpop.f32.mrf.mxu0
      %v801 = vadd.f32 0.0, %v800
      %802 = vmatprep.mubr.bf16.mxu0 0
      %803 = vmatmul.mubr.bf16.gmra.mxu0 %v647
      %v804 = vpop.f32.mrf.mxu0
      %v805 = vadd.f32 0.0, %v804
      %v806 = vpop.f32.mrf.mxu0
      %v807 = vadd.f32 0.0, %v806
      %v808 = vpop.f32.mrf.mxu0
      %v809 = vadd.f32 0.0, %v808
      %v810 = vpop.f32.mrf.mxu0
      %v811 = vadd.f32 0.0, %v810
      %812 = vmatprep.mubr.bf16.mxu0 0
      %813 = vmatmul.mubr.bf16.gmra.mxu0 %v650
      %v814 = vpop.f32.mrf.mxu0
      %v815 = vadd.f32 0.0, %v814
      %v816 = vpop.f32.mrf.mxu0
      %v817 = vadd.f32 0.0, %v816
      %v818 = vpop.f32.mrf.mxu0
      %v819 = vadd.f32 0.0, %v818
      %v820 = vpop.f32.mrf.mxu0
      %v821 = vadd.f32 0.0, %v820
      %822 = vmatprep.mubr.bf16.mxu0 0
      %823 = vmatmul.mubr.bf16.gmra.mxu0 %v653
      %v824 = vpop.f32.mrf.mxu0
      %v825 = vadd.f32 0.0, %v824
      %v826 = vpop.f32.mrf.mxu0
      %v827 = vadd.f32 0.0, %v826
      %v828 = vpop.f32.mrf.mxu0
      %v829 = vadd.f32 0.0, %v828
      %v830 = vpop.f32.mrf.mxu0
      %v831 = vadd.f32 0.0, %v830
      %832 = vmatprep.mubr.bf16.mxu0 0
      %833 = vmatmul.mubr.bf16.gmra.mxu0 %v656
      %v834 = vpop.f32.mrf.mxu0
      %v835 = vadd.f32 0.0, %v834
      %v836 = vpop.f32.mrf.mxu0
      %v837 = vadd.f32 0.0, %v836
      %v838 = vpop.f32.mrf.mxu0
      %v839 = vadd.f32 0.0, %v838
      %v840 = vpop.f32.mrf.mxu0
      %v841 = vadd.f32 0.0, %v840
      %842 = vmatprep.mubr.bf16.mxu0 0
      %843 = vmatmul.mubr.bf16.gmra.mxu0 %v659
      %v844 = vpop.f32.mrf.mxu0
      %v845 = vadd.f32 0.0, %v844
      %v846 = vpop.f32.mrf.mxu0
      %v847 = vadd.f32 0.0, %v846
      %v848 = vpop.f32.mrf.mxu0
      %v849 = vadd.f32 0.0, %v848
      %v850 = vpop.f32.mrf.mxu0
      %v851 = vadd.f32 0.0, %v850
      %852 = vmatprep.mubr.bf16.mxu0 0
      %853 = vmatmul.mubr.bf16.gmra.mxu0 %v662
      %v854 = vpop.f32.mrf.mxu0
      %v855 = vadd.f32 0.0, %v854
      %v856 = vpop.f32.mrf.mxu0
      %v857 = vadd.f32 0.0, %v856
      %v858 = vpop.f32.mrf.mxu0
      %v859 = vadd.f32 0.0, %v858
      %v860 = vpop.f32.mrf.mxu0
      %v861 = vadd.f32 0.0, %v860
      %862 = vmatprep.mubr.bf16.mxu0 0
      %863 = vmatmul.mubr.bf16.gmra.mxu0 %v665
      %v864 = vpop.f32.mrf.mxu0
      %v865 = vadd.f32 0.0, %v864
      %v866 = vpop.f32.mrf.mxu0
      %v867 = vadd.f32 0.0, %v866
      %v868 = vpop.f32.mrf.mxu0
      %v869 = vadd.f32 0.0, %v868
      %v870 = vpop.f32.mrf.mxu0
      %v871 = vadd.f32 0.0, %v870
      %872 = vmatprep.mubr.bf16.mxu0 0
      %873 = vmatmul.mubr.bf16.gmra.mxu0 %v668
      %v874 = vpop.f32.mrf.mxu0
      %v875 = vadd.f32 0.0, %v874
      %v876 = vpop.f32.mrf.mxu0
      %v877 = vadd.f32 0.0, %v876
      %v878 = vpop.f32.mrf.mxu0
      %v879 = vadd.f32 0.0, %v878
      %v880 = vpop.f32.mrf.mxu0
      %v881 = vadd.f32 0.0, %v880
      %882 = vmatprep.mubr.bf16.mxu0 0
      %883 = vmatmul.mubr.bf16.gmra.mxu0 %v671
      %v884 = vpop.f32.mrf.mxu0
      %v885 = vadd.f32 0.0, %v884
      %v886 = vpop.f32.mrf.mxu0
      %v887 = vadd.f32 0.0, %v886
      %v888 = vpop.f32.mrf.mxu0
      %v889 = vadd.f32 0.0, %v888
      %v890 = vpop.f32.mrf.mxu0
      %v891 = vadd.f32 0.0, %v890
      %892 = vmatprep.mubr.bf16.mxu0 0
      %893 = vmatmul.mubr.bf16.gmra.mxu0 %v674
      %v894 = vpop.f32.mrf.mxu0
      %v895 = vadd.f32 0.0, %v894
      %v896 = vpop.f32.mrf.mxu0
      %v897 = vadd.f32 0.0, %v896
      %v898 = vpop.f32.mrf.mxu0
      %v899 = vadd.f32 0.0, %v898
      %v900 = vpop.f32.mrf.mxu0
      %v901 = vadd.f32 0.0, %v900
      %902 = vmatprep.mubr.bf16.mxu0 0
      %903 = vmatmul.mubr.bf16.gmra.mxu0 %v677
      %v904 = vpop.f32.mrf.mxu0
      %v905 = vadd.f32 0.0, %v904
      %v906 = vpop.f32.mrf.mxu0
      %v907 = vadd.f32 0.0, %v906
      %v908 = vpop.f32.mrf.mxu0
      %v909 = vadd.f32 0.0, %v908
      %v910 = vpop.f32.mrf.mxu0
      %v911 = vadd.f32 0.0, %v910
      %912 = vmatprep.mubr.bf16.mxu0 0
      %913 = vmatmul.mubr.bf16.gmra.mxu0 %v680
      %v914 = vpop.f32.mrf.mxu0
      %v915 = vadd.f32 0.0, %v914
      %v916 = vpop.f32.mrf.mxu0
      %v917 = vadd.f32 0.0, %v916
      %v918 = vpop.f32.mrf.mxu0
      %v919 = vadd.f32 0.0, %v918
      %v920 = vpop.f32.mrf.mxu0
      %v921 = vadd.f32 0.0, %v920
      %922 = vdwg.mxu0
      %v923 = vmax.f32 %v765, %v767
      %924 = vmax.xlane.f32.xlu0 %v923
      %v925 = vpop.xlane.xlu0 %924
      %v926 = vmax.f32 %v769, %v771
      %927 = vmax.xlane.f32.xlu0 %v926
      %v928 = vpop.xlane.xlu0 %927
      %v929 = vmax.f32 %v775, %v777
      %930 = vmax.xlane.f32.xlu0 %v929
      %v931 = vpop.xlane.xlu0 %930
      %v932 = vmax.f32 %v779, %v781
      %933 = vmax.xlane.f32.xlu0 %v932
      %v934 = vpop.xlane.xlu0 %933
      %v935 = vmax.f32 %v785, %v787
      %936 = vmax.xlane.f32.xlu0 %v935
      %v937 = vpop.xlane.xlu0 %936
      %v938 = vmax.f32 %v789, %v791
      %939 = vmax.xlane.f32.xlu0 %v938
      %v940 = vpop.xlane.xlu0 %939
      %v941 = vmax.f32 %v795, %v797
      %942 = vmax.xlane.f32.xlu0 %v941
      %v943 = vpop.xlane.xlu0 %942
      %v944 = vmax.f32 %v799, %v801
      %945 = vmax.xlane.f32.xlu0 %v944
      %v946 = vpop.xlane.xlu0 %945
      %v947 = vmax.f32 %v805, %v807
      %948 = vmax.xlane.f32.xlu0 %v947
      %v949 = vpop.xlane.xlu0 %948
      %v950 = vmax.f32 %v809, %v811
      %951 = vmax.xlane.f32.xlu0 %v950
      %v952 = vpop.xlane.xlu0 %951
      %v953 = vmax.f32 %v815, %v817
      %954 = vmax.xlane.f32.xlu0 %v953
      %v955 = vpop.xlane.xlu0 %954
      %v956 = vmax.f32 %v819, %v821
      %957 = vmax.xlane.f32.xlu0 %v956
      %v958 = vpop.xlane.xlu0 %957
      %v959 = vmax.f32 %v825, %v827
      %960 = vmax.xlane.f32.xlu0 %v959
      %v961 = vpop.xlane.xlu0 %960
      %v962 = vmax.f32 %v829, %v831
      %963 = vmax.xlane.f32.xlu0 %v962
      %v964 = vpop.xlane.xlu0 %963
      %v965 = vmax.f32 %v835, %v837
      %966 = vmax.xlane.f32.xlu0 %v965
      %v967 = vpop.xlane.xlu0 %966
      %v968 = vmax.f32 %v839, %v841
      %969 = vmax.xlane.f32.xlu0 %v968
      %v970 = vpop.xlane.xlu0 %969
      %v971 = vmax.f32 %v845, %v847
      %972 = vmax.xlane.f32.xlu0 %v971
      %v973 = vpop.xlane.xlu0 %972
      %v974 = vmax.f32 %v849, %v851
      %975 = vmax.xlane.f32.xlu0 %v974
      %v976 = vpop.xlane.xlu0 %975
      %v977 = vmax.f32 %v855, %v857
      %978 = vmax.xlane.f32.xlu0 %v977
      %v979 = vpop.xlane.xlu0 %978
      %v980 = vmax.f32 %v859, %v861
      %981 = vmax.xlane.f32.xlu0 %v980
      %v982 = vpop.xlane.xlu0 %981
      %v983 = vmax.f32 %v865, %v867
      %984 = vmax.xlane.f32.xlu0 %v983
      %v985 = vpop.xlane.xlu0 %984
      %v986 = vmax.f32 %v869, %v871
      %987 = vmax.xlane.f32.xlu0 %v986
      %v988 = vpop.xlane.xlu0 %987
      %v989 = vmax.f32 %v875, %v877
      %990 = vmax.xlane.f32.xlu0 %v989
      %v991 = vpop.xlane.xlu0 %990
      %v992 = vmax.f32 %v879, %v881
      %993 = vmax.xlane.f32.xlu0 %v992
      %v994 = vpop.xlane.xlu0 %993
      %v995 = vmax.f32 %v885, %v887
      %996 = vmax.xlane.f32.xlu0 %v995
      %v997 = vpop.xlane.xlu0 %996
      %v998 = vmax.f32 %v889, %v891
      %999 = vmax.xlane.f32.xlu0 %v998
      %v1000 = vpop.xlane.xlu0 %999
      %v1001 = vmax.f32 %v895, %v897
      %1002 = vmax.xlane.f32.xlu0 %v1001
      %v1003 = vpop.xlane.xlu0 %1002
      %v1004 = vmax.f32 %v899, %v901
      %1005 = vmax.xlane.f32.xlu0 %v1004
      %v1006 = vpop.xlane.xlu0 %1005
      %v1007 = vmax.f32 %v905, %v907
      %1008 = vmax.xlane.f32.xlu0 %v1007
      %v1009 = vpop.xlane.xlu0 %1008
      %v1010 = vmax.f32 %v909, %v911
      %1011 = vmax.xlane.f32.xlu0 %v1010
      %v1012 = vpop.xlane.xlu0 %1011
      %v1013 = vmax.f32 %v915, %v917
      %1014 = vmax.xlane.f32.xlu0 %v1013
      %v1015 = vpop.xlane.xlu0 %1014
      %v1016 = vmax.f32 %v919, %v921
      %1017 = vmax.xlane.f32.xlu0 %v1016
      %v1018 = vpop.xlane.xlu0 %1017
      %v1019 = vsub.f32 %v765, %v925
      %v1020 = vsub.f32 %v767, %v925
      %v1021 = vsub.f32 %v769, %v928
      %v1022 = vsub.f32 %v771, %v928
      %v1023 = vsub.f32 %v775, %v931
      %v1024 = vsub.f32 %v777, %v931
      %v1025 = vsub.f32 %v779, %v934
      %v1026 = vsub.f32 %v781, %v934
      %v1027 = vsub.f32 %v785, %v937
      %v1028 = vsub.f32 %v787, %v937
      %v1029 = vsub.f32 %v789, %v940
      %v1030 = vsub.f32 %v791, %v940
      %v1031 = vsub.f32 %v795, %v943
      %v1032 = vsub.f32 %v797, %v943
      %v1033 = vsub.f32 %v799, %v946
      %v1034 = vsub.f32 %v801, %v946
      %v1035 = vsub.f32 %v805, %v949
      %v1036 = vsub.f32 %v807, %v949
      %v1037 = vsub.f32 %v809, %v952
      %v1038 = vsub.f32 %v811, %v952
      %v1039 = vsub.f32 %v815, %v955
      %v1040 = vsub.f32 %v817, %v955
      %v1041 = vsub.f32 %v819, %v958
      %v1042 = vsub.f32 %v821, %v958
      %v1043 = vsub.f32 %v825, %v961
      %v1044 = vsub.f32 %v827, %v961
      %v1045 = vsub.f32 %v829, %v964
      %v1046 = vsub.f32 %v831, %v964
      %v1047 = vsub.f32 %v835, %v967
      %v1048 = vsub.f32 %v837, %v967
      %v1049 = vsub.f32 %v839, %v970
      %v1050 = vsub.f32 %v841, %v970
      %v1051 = vsub.f32 %v845, %v973
      %v1052 = vsub.f32 %v847, %v973
      %v1053 = vsub.f32 %v849, %v976
      %v1054 = vsub.f32 %v851, %v976
      %v1055 = vsub.f32 %v855, %v979
      %v1056 = vsub.f32 %v857, %v979
      %v1057 = vsub.f32 %v859, %v982
      %v1058 = vsub.f32 %v861, %v982
      %v1059 = vsub.f32 %v865, %v985
      %v1060 = vsub.f32 %v867, %v985
      %v1061 = vsub.f32 %v869, %v988
      %v1062 = vsub.f32 %v871, %v988
      %v1063 = vsub.f32 %v875, %v991
      %v1064 = vsub.f32 %v877, %v991
      %v1065 = vsub.f32 %v879, %v994
      %v1066 = vsub.f32 %v881, %v994
      %v1067 = vsub.f32 %v885, %v997
      %v1068 = vsub.f32 %v887, %v997
      %v1069 = vsub.f32 %v889, %v1000
      %v1070 = vsub.f32 %v891, %v1000
      %v1071 = vsub.f32 %v895, %v1003
      %v1072 = vsub.f32 %v897, %v1003
      %v1073 = vsub.f32 %v899, %v1006
      %v1074 = vsub.f32 %v901, %v1006
      %v1075 = vsub.f32 %v905, %v1009
      %v1076 = vsub.f32 %v907, %v1009
      %v1077 = vsub.f32 %v909, %v1012
      %v1078 = vsub.f32 %v911, %v1012
      %v1079 = vsub.f32 %v915, %v1015
      %v1080 = vsub.f32 %v917, %v1015
      %v1081 = vsub.f32 %v919, %v1018
      %v1082 = vsub.f32 %v921, %v1018
      %v1083 = vmul.f32 %v1019, 1.442695
      %v1084 = vpow.pop %v1083
      %v1085 = vmul.f32 %v1020, 1.442695
      %v1086 = vpow.pop %v1085
      %v1087 = vmul.f32 %v1021, 1.442695
      %v1088 = vpow.pop %v1087
      %v1089 = vmul.f32 %v1022, 1.442695
      %v1090 = vpow.pop %v1089
      %v1091 = vmul.f32 %v1023, 1.442695
      %v1092 = vpow.pop %v1091
      %v1093 = vmul.f32 %v1024, 1.442695
      %v1094 = vpow.pop %v1093
      %v1095 = vmul.f32 %v1025, 1.442695
      %v1096 = vpow.pop %v1095
      %v1097 = vmul.f32 %v1026, 1.442695
      %v1098 = vpow.pop %v1097
      %v1099 = vmul.f32 %v1027, 1.442695
      %v1100 = vpow.pop %v1099
      %v1101 = vmul.f32 %v1028, 1.442695
      %v1102 = vpow.pop %v1101
      %v1103 = vmul.f32 %v1029, 1.442695
      %v1104 = vpow.pop %v1103
      %v1105 = vmul.f32 %v1030, 1.442695
      %v1106 = vpow.pop %v1105
      %v1107 = vmul.f32 %v1031, 1.442695
      %v1108 = vpow.pop %v1107
      %v1109 = vmul.f32 %v1032, 1.442695
      %v1110 = vpow.pop %v1109
      %v1111 = vmul.f32 %v1033, 1.442695
      %v1112 = vpow.pop %v1111
      %v1113 = vmul.f32 %v1034, 1.442695
      %v1114 = vpow.pop %v1113
      %v1115 = vmul.f32 %v1035, 1.442695
      %v1116 = vpow.pop %v1115
      %v1117 = vmul.f32 %v1036, 1.442695
      %v1118 = vpow.pop %v1117
      %v1119 = vmul.f32 %v1037, 1.442695
      %v1120 = vpow.pop %v1119
      %v1121 = vmul.f32 %v1038, 1.442695
      %v1122 = vpow.pop %v1121
      %v1123 = vmul.f32 %v1039, 1.442695
      %v1124 = vpow.pop %v1123
      %v1125 = vmul.f32 %v1040, 1.442695
      %v1126 = vpow.pop %v1125
      %v1127 = vmul.f32 %v1041, 1.442695
      %v1128 = vpow.pop %v1127
      %v1129 = vmul.f32 %v1042, 1.442695
      %v1130 = vpow.pop %v1129
      %v1131 = vmul.f32 %v1043, 1.442695
      %v1132 = vpow.pop %v1131
      %v1133 = vmul.f32 %v1044, 1.442695
      %v1134 = vpow.pop %v1133
      %v1135 = vmul.f32 %v1045, 1.442695
      %v1136 = vpow.pop %v1135
      %v1137 = vmul.f32 %v1046, 1.442695
      %v1138 = vpow.pop %v1137
      %v1139 = vmul.f32 %v1047, 1.442695
      %v1140 = vpow.pop %v1139
      %v1141 = vmul.f32 %v1048, 1.442695
      %v1142 = vpow.pop %v1141
      %v1143 = vmul.f32 %v1049, 1.442695
      %v1144 = vpow.pop %v1143
      %v1145 = vmul.f32 %v1050, 1.442695
      %v1146 = vpow.pop %v1145
      %v1147 = vmul.f32 %v1051, 1.442695
      %v1148 = vpow.pop %v1147
      %v1149 = vmul.f32 %v1052, 1.442695
      %v1150 = vpow.pop %v1149
      %v1151 = vmul.f32 %v1053, 1.442695
      %v1152 = vpow.pop %v1151
      %v1153 = vmul.f32 %v1054, 1.442695
      %v1154 = vpow.pop %v1153
      %v1155 = vmul.f32 %v1055, 1.442695
      %v1156 = vpow.pop %v1155
      %v1157 = vmul.f32 %v1056, 1.442695
      %v1158 = vpow.pop %v1157
      %v1159 = vmul.f32 %v1057, 1.442695
      %v1160 = vpow.pop %v1159
      %v1161 = vmul.f32 %v1058, 1.442695
      %v1162 = vpow.pop %v1161
      %v1163 = vmul.f32 %v1059, 1.442695
      %v1164 = vpow.pop %v1163
      %v1165 = vmul.f32 %v1060, 1.442695
      %v1166 = vpow.pop %v1165
      %v1167 = vmul.f32 %v1061, 1.442695
      %v1168 = vpow.pop %v1167
      %v1169 = vmul.f32 %v1062, 1.442695
      %v1170 = vpow.pop %v1169
      %v1171 = vmul.f32 %v1063, 1.442695
      %v1172 = vpow.pop %v1171
      %v1173 = vmul.f32 %v1064, 1.442695
      %v1174 = vpow.pop %v1173
      %v1175 = vmul.f32 %v1065, 1.442695
      %v1176 = vpow.pop %v1175
      %v1177 = vmul.f32 %v1066, 1.442695
      %v1178 = vpow.pop %v1177
      %v1179 = vmul.f32 %v1067, 1.442695
      %v1180 = vpow.pop %v1179
      %v1181 = vmul.f32 %v1068, 1.442695
      %v1182 = vpow.pop %v1181
      %v1183 = vmul.f32 %v1069, 1.442695
      %v1184 = vpow.pop %v1183
      %v1185 = vmul.f32 %v1070, 1.442695
      %v1186 = vpow.pop %v1185
      %v1187 = vmul.f32 %v1071, 1.442695
      %v1188 = vpow.pop %v1187
      %v1189 = vmul.f32 %v1072, 1.442695
      %v1190 = vpow.pop %v1189
      %v1191 = vmul.f32 %v1073, 1.442695
      %v1192 = vpow.pop %v1191
      %v1193 = vmul.f32 %v1074, 1.442695
      %v1194 = vpow.pop %v1193
      %v1195 = vmul.f32 %v1075, 1.442695
      %v1196 = vpow.pop %v1195
      %v1197 = vmul.f32 %v1076, 1.442695
      %v1198 = vpow.pop %v1197
      %v1199 = vmul.f32 %v1077, 1.442695
      %v1200 = vpow.pop %v1199
      %v1201 = vmul.f32 %v1078, 1.442695
      %v1202 = vpow.pop %v1201
      %v1203 = vmul.f32 %v1079, 1.442695
      %v1204 = vpow.pop %v1203
      %v1205 = vmul.f32 %v1080, 1.442695
      %v1206 = vpow.pop %v1205
      %v1207 = vmul.f32 %v1081, 1.442695
      %v1208 = vpow.pop %v1207
      %v1209 = vmul.f32 %v1082, 1.442695
      %v1210 = vpow.pop %v1209
      %v1211 = vadd.f32 %v1084, %v1086
      %1212 = vadd.xlane.f32.xlu0 %v1211
      %v1213 = vpop.xlane.xlu0 %1212
      %v1214 = vadd.f32 %v1088, %v1090
      %1215 = vadd.xlane.f32.xlu0 %v1214
      %v1216 = vpop.xlane.xlu0 %1215
      %v1217 = vadd.f32 %v1092, %v1094
      %1218 = vadd.xlane.f32.xlu0 %v1217
      %v1219 = vpop.xlane.xlu0 %1218
      %v1220 = vadd.f32 %v1096, %v1098
      %1221 = vadd.xlane.f32.xlu0 %v1220
      %v1222 = vpop.xlane.xlu0 %1221
      %v1223 = vadd.f32 %v1100, %v1102
      %1224 = vadd.xlane.f32.xlu0 %v1223
      %v1225 = vpop.xlane.xlu0 %1224
      %v1226 = vadd.f32 %v1104, %v1106
      %1227 = vadd.xlane.f32.xlu0 %v1226
      %v1228 = vpop.xlane.xlu0 %1227
      %v1229 = vadd.f32 %v1108, %v1110
      %1230 = vadd.xlane.f32.xlu0 %v1229
      %v1231 = vpop.xlane.xlu0 %1230
      %v1232 = vadd.f32 %v1112, %v1114
      %1233 = vadd.xlane.f32.xlu0 %v1232
      %v1234 = vpop.xlane.xlu0 %1233
      %v1235 = vadd.f32 %v1116, %v1118
      %1236 = vadd.xlane.f32.xlu0 %v1235
      %v1237 = vpop.xlane.xlu0 %1236
      %v1238 = vadd.f32 %v1120, %v1122
      %1239 = vadd.xlane.f32.xlu0 %v1238
      %v1240 = vpop.xlane.xlu0 %1239
      %v1241 = vadd.f32 %v1124, %v1126
      %1242 = vadd.xlane.f32.xlu0 %v1241
      %v1243 = vpop.xlane.xlu0 %1242
      %v1244 = vadd.f32 %v1128, %v1130
      %1245 = vadd.xlane.f32.xlu0 %v1244
      %v1246 = vpop.xlane.xlu0 %1245
      %v1247 = vadd.f32 %v1132, %v1134
      %1248 = vadd.xlane.f32.xlu0 %v1247
      %v1249 = vpop.xlane.xlu0 %1248
      %v1250 = vadd.f32 %v1136, %v1138
      %1251 = vadd.xlane.f32.xlu0 %v1250
      %v1252 = vpop.xlane.xlu0 %1251
      %v1253 = vadd.f32 %v1140, %v1142
      %1254 = vadd.xlane.f32.xlu0 %v1253
      %v1255 = vpop.xlane.xlu0 %1254
      %v1256 = vadd.f32 %v1144, %v1146
      %1257 = vadd.xlane.f32.xlu0 %v1256
      %v1258 = vpop.xlane.xlu0 %1257
      %v1259 = vadd.f32 %v1148, %v1150
      %1260 = vadd.xlane.f32.xlu0 %v1259
      %v1261 = vpop.xlane.xlu0 %1260
      %v1262 = vadd.f32 %v1152, %v1154
      %1263 = vadd.xlane.f32.xlu0 %v1262
      %v1264 = vpop.xlane.xlu0 %1263
      %v1265 = vadd.f32 %v1156, %v1158
      %1266 = vadd.xlane.f32.xlu0 %v1265
      %v1267 = vpop.xlane.xlu0 %1266
      %v1268 = vadd.f32 %v1160, %v1162
      %1269 = vadd.xlane.f32.xlu0 %v1268
      %v1270 = vpop.xlane.xlu0 %1269
      %v1271 = vadd.f32 %v1164, %v1166
      %1272 = vadd.xlane.f32.xlu0 %v1271
      %v1273 = vpop.xlane.xlu0 %1272
      %v1274 = vadd.f32 %v1168, %v1170
      %1275 = vadd.xlane.f32.xlu0 %v1274
      %v1276 = vpop.xlane.xlu0 %1275
      %v1277 = vadd.f32 %v1172, %v1174
      %1278 = vadd.xlane.f32.xlu0 %v1277
      %v1279 = vpop.xlane.xlu0 %1278
      %v1280 = vadd.f32 %v1176, %v1178
      %1281 = vadd.xlane.f32.xlu0 %v1280
      %v1282 = vpop.xlane.xlu0 %1281
      %v1283 = vadd.f32 %v1180, %v1182
      %1284 = vadd.xlane.f32.xlu0 %v1283
      %v1285 = vpop.xlane.xlu0 %1284
      %v1286 = vadd.f32 %v1184, %v1186
      %1287 = vadd.xlane.f32.xlu0 %v1286
      %v1288 = vpop.xlane.xlu0 %1287
      %v1289 = vadd.f32 %v1188, %v1190
      %1290 = vadd.xlane.f32.xlu0 %v1289
      %v1291 = vpop.xlane.xlu0 %1290
      %v1292 = vadd.f32 %v1192, %v1194
      %1293 = vadd.xlane.f32.xlu0 %v1292
      %v1294 = vpop.xlane.xlu0 %1293
      %v1295 = vadd.f32 %v1196, %v1198
      %1296 = vadd.xlane.f32.xlu0 %v1295
      %v1297 = vpop.xlane.xlu0 %1296
      %v1298 = vadd.f32 %v1200, %v1202
      %1299 = vadd.xlane.f32.xlu0 %v1298
      %v1300 = vpop.xlane.xlu0 %1299
      %v1301 = vadd.f32 %v1204, %v1206
      %1302 = vadd.xlane.f32.xlu0 %v1301
      %v1303 = vpop.xlane.xlu0 %1302
      %v1304 = vadd.f32 %v1208, %v1210
      %1305 = vadd.xlane.f32.xlu0 %v1304
      %v1306 = vpop.xlane.xlu0 %1305
      %v1307 = vrcp.pop %v1213
      %v1308 = vrcp.pop %v1216
      %v1309 = vrcp.pop %v1219
      %v1310 = vrcp.pop %v1222
      %v1311 = vrcp.pop %v1225
      %v1312 = vrcp.pop %v1228
      %v1313 = vrcp.pop %v1231
      %v1314 = vrcp.pop %v1234
      %v1315 = vrcp.pop %v1237
      %v1316 = vrcp.pop %v1240
      %v1317 = vrcp.pop %v1243
      %v1318 = vrcp.pop %v1246
      %v1319 = vrcp.pop %v1249
      %v1320 = vrcp.pop %v1252
      %v1321 = vrcp.pop %v1255
      %v1322 = vrcp.pop %v1258
      %v1323 = vrcp.pop %v1261
      %v1324 = vrcp.pop %v1264
      %v1325 = vrcp.pop %v1267
      %v1326 = vrcp.pop %v1270
      %v1327 = vrcp.pop %v1273
      %v1328 = vrcp.pop %v1276
      %v1329 = vrcp.pop %v1279
      %v1330 = vrcp.pop %v1282
      %v1331 = vrcp.pop %v1285
      %v1332 = vrcp.pop %v1288
      %v1333 = vrcp.pop %v1291
      %v1334 = vrcp.pop %v1294
      %v1335 = vrcp.pop %v1297
      %v1336 = vrcp.pop %v1300
      %v1337 = vrcp.pop %v1303
      %v1338 = vrcp.pop %v1306
      %v1339 = vmul.f32 %v1084, %v1307
      %v1340 = vmul.f32 %v1086, %v1307
      %v1341 = vmul.f32 %v1088, %v1308
      %v1342 = vmul.f32 %v1090, %v1308
      %v1343 = vmul.f32 %v1092, %v1309
      %v1344 = vmul.f32 %v1094, %v1309
      %v1345 = vmul.f32 %v1096, %v1310
      %v1346 = vmul.f32 %v1098, %v1310
      %v1347 = vmul.f32 %v1100, %v1311
      %v1348 = vmul.f32 %v1102, %v1311
      %v1349 = vmul.f32 %v1104, %v1312
      %v1350 = vmul.f32 %v1106, %v1312
      %v1351 = vmul.f32 %v1108, %v1313
      %v1352 = vmul.f32 %v1110, %v1313
      %v1353 = vmul.f32 %v1112, %v1314
      %v1354 = vmul.f32 %v1114, %v1314
      %v1355 = vmul.f32 %v1116, %v1315
      %v1356 = vmul.f32 %v1118, %v1315
      %v1357 = vmul.f32 %v1120, %v1316
      %v1358 = vmul.f32 %v1122, %v1316
      %v1359 = vmul.f32 %v1124, %v1317
      %v1360 = vmul.f32 %v1126, %v1317
      %v1361 = vmul.f32 %v1128, %v1318
      %v1362 = vmul.f32 %v1130, %v1318
      %v1363 = vmul.f32 %v1132, %v1319
      %v1364 = vmul.f32 %v1134, %v1319
      %v1365 = vmul.f32 %v1136, %v1320
      %v1366 = vmul.f32 %v1138, %v1320
      %v1367 = vmul.f32 %v1140, %v1321
      %v1368 = vmul.f32 %v1142, %v1321
      %v1369 = vmul.f32 %v1144, %v1322
      %v1370 = vmul.f32 %v1146, %v1322
      %v1371 = vmul.f32 %v1148, %v1323
      %v1372 = vmul.f32 %v1150, %v1323
      %v1373 = vmul.f32 %v1152, %v1324
      %v1374 = vmul.f32 %v1154, %v1324
      %v1375 = vmul.f32 %v1156, %v1325
      %v1376 = vmul.f32 %v1158, %v1325
      %v1377 = vmul.f32 %v1160, %v1326
      %v1378 = vmul.f32 %v1162, %v1326
      %v1379 = vmul.f32 %v1164, %v1327
      %v1380 = vmul.f32 %v1166, %v1327
      %v1381 = vmul.f32 %v1168, %v1328
      %v1382 = vmul.f32 %v1170, %v1328
      %v1383 = vmul.f32 %v1172, %v1329
      %v1384 = vmul.f32 %v1174, %v1329
      %v1385 = vmul.f32 %v1176, %v1330
      %v1386 = vmul.f32 %v1178, %v1330
      %v1387 = vmul.f32 %v1180, %v1331
      %v1388 = vmul.f32 %v1182, %v1331
      %v1389 = vmul.f32 %v1184, %v1332
      %v1390 = vmul.f32 %v1186, %v1332
      %v1391 = vmul.f32 %v1188, %v1333
      %v1392 = vmul.f32 %v1190, %v1333
      %v1393 = vmul.f32 %v1192, %v1334
      %v1394 = vmul.f32 %v1194, %v1334
      %v1395 = vmul.f32 %v1196, %v1335
      %v1396 = vmul.f32 %v1198, %v1335
      %v1397 = vmul.f32 %v1200, %v1336
      %v1398 = vmul.f32 %v1202, %v1336
      %v1399 = vmul.f32 %v1204, %v1337
      %v1400 = vmul.f32 %v1206, %v1337
      %v1401 = vmul.f32 %v1208, %v1338
      %v1402 = vmul.f32 %v1210, %v1338
      %v1403 = vpack.c.bf16 %v1341, %v1339
      %v1404 = vpack.c.bf16 %v1342, %v1340
      %v1405 = vpack.c.bf16 %v1345, %v1343
      %v1406 = vpack.c.bf16 %v1346, %v1344
      %v1407 = vpack.c.bf16 %v1349, %v1347
      %v1408 = vpack.c.bf16 %v1350, %v1348
      %v1409 = vpack.c.bf16 %v1353, %v1351
      %v1410 = vpack.c.bf16 %v1354, %v1352
      %v1411 = vpack.c.bf16 %v1357, %v1355
      %v1412 = vpack.c.bf16 %v1358, %v1356
      %v1413 = vpack.c.bf16 %v1361, %v1359
      %v1414 = vpack.c.bf16 %v1362, %v1360
      %v1415 = vpack.c.bf16 %v1365, %v1363
      %v1416 = vpack.c.bf16 %v1366, %v1364
      %v1417 = vpack.c.bf16 %v1369, %v1367
      %v1418 = vpack.c.bf16 %v1370, %v1368
      %v1419 = vpack.c.bf16 %v1373, %v1371
      %v1420 = vpack.c.bf16 %v1374, %v1372
      %v1421 = vpack.c.bf16 %v1377, %v1375
      %v1422 = vpack.c.bf16 %v1378, %v1376
      %v1423 = vpack.c.bf16 %v1381, %v1379
      %v1424 = vpack.c.bf16 %v1382, %v1380
      %v1425 = vpack.c.bf16 %v1385, %v1383
      %v1426 = vpack.c.bf16 %v1386, %v1384
      %v1427 = vpack.c.bf16 %v1389, %v1387
      %v1428 = vpack.c.bf16 %v1390, %v1388
      %v1429 = vpack.c.bf16 %v1393, %v1391
      %v1430 = vpack.c.bf16 %v1394, %v1392
      %v1431 = vpack.c.bf16 %v1397, %v1395
      %v1432 = vpack.c.bf16 %v1398, %v1396
      %v1433 = vpack.c.bf16 %v1401, %v1399
      %v1434 = vpack.c.bf16 %v1402, %v1400
      %v1467 = vunpack.c.l.b16 %v441
      %v1468 = vunpack.c.l.b16 %v442
      %v1469 = vunpack.c.l.b16 %v443
      %v1470 = vunpack.c.l.b16 %v444
      %v1471 = vunpack.c.l.b16 %v445
      %v1472 = vunpack.c.l.b16 %v446
      %v1473 = vunpack.c.l.b16 %v447
      %v1474 = vunpack.c.l.b16 %v448
      %v1475 = vunpack.c.l.b16 %v449
      %v1476 = vunpack.c.l.b16 %v450
      %v1477 = vunpack.c.l.b16 %v451
      %v1478 = vunpack.c.l.b16 %v452
      %v1479 = vunpack.c.l.b16 %v453
      %v1480 = vunpack.c.l.b16 %v454
      %v1481 = vunpack.c.l.b16 %v455
      %v1482 = vunpack.c.l.b16 %v456
      %v1483 = vunpack.c.l.b16 %v457
      %v1484 = vunpack.c.l.b16 %v458
      %v1485 = vunpack.c.l.b16 %v459
      %v1486 = vunpack.c.l.b16 %v460
      %v1487 = vunpack.c.l.b16 %v461
      %v1488 = vunpack.c.l.b16 %v462
      %v1489 = vunpack.c.l.b16 %v463
      %v1490 = vunpack.c.l.b16 %v464
      %v1491 = vunpack.c.l.b16 %v465
      %v1492 = vunpack.c.l.b16 %v466
      %v1493 = vunpack.c.l.b16 %v467
      %v1494 = vunpack.c.l.b16 %v468
      %v1495 = vunpack.c.l.b16 %v469
      %v1496 = vunpack.c.l.b16 %v470
      %v1497 = vunpack.c.l.b16 %v471
      %v1498 = vunpack.c.l.b16 %v472
      %v1499 = vpack.c.b16 %v1468, %v1467
      %v1500 = vpack.c.b16 %v1470, %v1469
      %v1501 = vpack.c.b16 %v1472, %v1471
      %v1502 = vpack.c.b16 %v1474, %v1473
      %v1503 = vpack.c.b16 %v1476, %v1475
      %v1504 = vpack.c.b16 %v1478, %v1477
      %v1505 = vpack.c.b16 %v1480, %v1479
      %v1506 = vpack.c.b16 %v1482, %v1481
      %v1507 = vpack.c.b16 %v1484, %v1483
      %v1508 = vpack.c.b16 %v1486, %v1485
      %v1509 = vpack.c.b16 %v1488, %v1487
      %v1510 = vpack.c.b16 %v1490, %v1489
      %v1511 = vpack.c.b16 %v1492, %v1491
      %v1512 = vpack.c.b16 %v1494, %v1493
      %v1513 = vpack.c.b16 %v1496, %v1495
      %v1514 = vpack.c.b16 %v1498, %v1497
      %1531 = vmatprep.subr.bf16.mxu0 0
      %1532 = vmatpush1.bf16.msra.mxu0 %v1506
      %1533 = vmatprep.subr.bf16.mxu0 0
      %1534 = vmatpush1.bf16.msra.mxu0 %v1505
      %1535 = vmatprep.subr.bf16.mxu0 0
      %1536 = vmatpush1.bf16.msra.mxu0 %v1504
      %1537 = vmatprep.subr.bf16.mxu0 0
      %1538 = vmatpush1.bf16.msra.mxu0 %v1503
      %1539 = vmatprep.subr.bf16.mxu0 0
      %1540 = vmatpush1.bf16.msra.mxu0 %v1502
      %1541 = vmatprep.subr.bf16.mxu0 0
      %1542 = vmatpush1.bf16.msra.mxu0 %v1501
      %1543 = vmatprep.subr.bf16.mxu0 0
      %1544 = vmatpush1.bf16.msra.mxu0 %v1500
      %1545 = vmatprep.subr.bf16.mxu0 0
      %1546 = vmatpush1.bf16.msra.mxu0 %v1499
      %1547 = vmatprep.subr.bf16.mxu0 0
      %1548 = vmatpush2.bf16.msra.mxu0 %v1514
      %1549 = vmatprep.subr.bf16.mxu0 0
      %1550 = vmatpush2.bf16.msra.mxu0 %v1513
      %1551 = vmatprep.subr.bf16.mxu0 0
      %1552 = vmatpush2.bf16.msra.mxu0 %v1512
      %1553 = vmatprep.subr.bf16.mxu0 0
      %1554 = vmatpush2.bf16.msra.mxu0 %v1511
      %1555 = vmatprep.subr.bf16.mxu0 0
      %1556 = vmatpush2.bf16.msra.mxu0 %v1510
      %1557 = vmatprep.subr.bf16.mxu0 0
      %1558 = vmatpush2.bf16.msra.mxu0 %v1509
      %1559 = vmatprep.subr.bf16.mxu0 0
      %1560 = vmatpush2.bf16.msra.mxu0 %v1508
      %1561 = vmatprep.subr.bf16.mxu0 0
      %1562 = vmatpush2.bf16.msra.mxu0 %v1507
      %1563 = vmatprep.mubr.bf16.mxu0 %v1404
      %1564 = vmatmul.mubr.bf16.gmra.mxu0 %v1403
      %v1565 = vpop.f32.mrf.mxu0
      %v1566 = vadd.f32 0.0, %v1565
      %v1567 = vpop.f32.mrf.mxu0
      %v1568 = vpop.f32.mrf.mxu0
      %v1569 = vadd.f32 0.0, %v1568
      %v1570 = vpop.f32.mrf.mxu0
      %1571 = vmatprep.mubr.bf16.mxu0 %v1406
      %1572 = vmatmul.mubr.bf16.gmra.mxu0 %v1405
      %v1573 = vpop.f32.mrf.mxu0
      %v1574 = vadd.f32 0.0, %v1573
      %v1575 = vpop.f32.mrf.mxu0
      %v1576 = vpop.f32.mrf.mxu0
      %v1577 = vadd.f32 0.0, %v1576
      %v1578 = vpop.f32.mrf.mxu0
      %1579 = vmatprep.mubr.bf16.mxu0 %v1408
      %1580 = vmatmul.mubr.bf16.gmra.mxu0 %v1407
      %v1581 = vpop.f32.mrf.mxu0
      %v1582 = vadd.f32 0.0, %v1581
      %v1583 = vpop.f32.mrf.mxu0
      %v1584 = vpop.f32.mrf.mxu0
      %v1585 = vadd.f32 0.0, %v1584
      %v1586 = vpop.f32.mrf.mxu0
      %1587 = vmatprep.mubr.bf16.mxu0 %v1410
      %1588 = vmatmul.mubr.bf16.gmra.mxu0 %v1409
      %v1589 = vpop.f32.mrf.mxu0
      %v1590 = vadd.f32 0.0, %v1589
      %v1591 = vpop.f32.mrf.mxu0
      %v1592 = vpop.f32.mrf.mxu0
      %v1593 = vadd.f32 0.0, %v1592
      %v1594 = vpop.f32.mrf.mxu0
      %1595 = vmatprep.mubr.bf16.mxu0 %v1412
      %1596 = vmatmul.mubr.bf16.gmra.mxu0 %v1411
      %v1597 = vpop.f32.mrf.mxu0
      %v1598 = vadd.f32 0.0, %v1597
      %v1599 = vpop.f32.mrf.mxu0
      %v1600 = vpop.f32.mrf.mxu0
      %v1601 = vadd.f32 0.0, %v1600
      %v1602 = vpop.f32.mrf.mxu0
      %1603 = vmatprep.mubr.bf16.mxu0 %v1414
      %1604 = vmatmul.mubr.bf16.gmra.mxu0 %v1413
      %v1605 = vpop.f32.mrf.mxu0
      %v1606 = vadd.f32 0.0, %v1605
      %v1607 = vpop.f32.mrf.mxu0
      %v1608 = vpop.f32.mrf.mxu0
      %v1609 = vadd.f32 0.0, %v1608
      %v1610 = vpop.f32.mrf.mxu0
      %1611 = vmatprep.mubr.bf16.mxu0 %v1416
      %1612 = vmatmul.mubr.bf16.gmra.mxu0 %v1415
      %v1613 = vpop.f32.mrf.mxu0
      %v1614 = vadd.f32 0.0, %v1613
      %v1615 = vpop.f32.mrf.mxu0
      %v1616 = vpop.f32.mrf.mxu0
      %v1617 = vadd.f32 0.0, %v1616
      %v1618 = vpop.f32.mrf.mxu0
      %1619 = vmatprep.mubr.bf16.mxu0 %v1418
      %1620 = vmatmul.mubr.bf16.gmra.mxu0 %v1417
      %v1621 = vpop.f32.mrf.mxu0
      %v1622 = vadd.f32 0.0, %v1621
      %v1623 = vpop.f32.mrf.mxu0
      %v1624 = vpop.f32.mrf.mxu0
      %v1625 = vadd.f32 0.0, %v1624
      %v1626 = vpop.f32.mrf.mxu0
      %1627 = vmatprep.mubr.bf16.mxu0 %v1420
      %1628 = vmatmul.mubr.bf16.gmra.mxu0 %v1419
      %v1629 = vpop.f32.mrf.mxu0
      %v1630 = vadd.f32 0.0, %v1629
      %v1631 = vpop.f32.mrf.mxu0
      %v1632 = vpop.f32.mrf.mxu0
      %v1633 = vadd.f32 0.0, %v1632
      %v1634 = vpop.f32.mrf.mxu0
      %1635 = vmatprep.mubr.bf16.mxu0 %v1422
      %1636 = vmatmul.mubr.bf16.gmra.mxu0 %v1421
      %v1637 = vpop.f32.mrf.mxu0
      %v1638 = vadd.f32 0.0, %v1637
      %v1639 = vpop.f32.mrf.mxu0
      %v1640 = vpop.f32.mrf.mxu0
      %v1641 = vadd.f32 0.0, %v1640
      %v1642 = vpop.f32.mrf.mxu0
      %1643 = vmatprep.mubr.bf16.mxu0 %v1424
      %1644 = vmatmul.mubr.bf16.gmra.mxu0 %v1423
      %v1645 = vpop.f32.mrf.mxu0
      %v1646 = vadd.f32 0.0, %v1645
      %v1647 = vpop.f32.mrf.mxu0
      %v1648 = vpop.f32.mrf.mxu0
      %v1649 = vadd.f32 0.0, %v1648
      %v1650 = vpop.f32.mrf.mxu0
      %1651 = vmatprep.mubr.bf16.mxu0 %v1426
      %1652 = vmatmul.mubr.bf16.gmra.mxu0 %v1425
      %v1653 = vpop.f32.mrf.mxu0
      %v1654 = vadd.f32 0.0, %v1653
      %v1655 = vpop.f32.mrf.mxu0
      %v1656 = vpop.f32.mrf.mxu0
      %v1657 = vadd.f32 0.0, %v1656
      %v1658 = vpop.f32.mrf.mxu0
      %1659 = vmatprep.mubr.bf16.mxu0 %v1428
      %1660 = vmatmul.mubr.bf16.gmra.mxu0 %v1427
      %v1661 = vpop.f32.mrf.mxu0
      %v1662 = vadd.f32 0.0, %v1661
      %v1663 = vpop.f32.mrf.mxu0
      %v1664 = vpop.f32.mrf.mxu0
      %v1665 = vadd.f32 0.0, %v1664
      %v1666 = vpop.f32.mrf.mxu0
      %1667 = vmatprep.mubr.bf16.mxu0 %v1430
      %1668 = vmatmul.mubr.bf16.gmra.mxu0 %v1429
      %v1669 = vpop.f32.mrf.mxu0
      %v1670 = vadd.f32 0.0, %v1669
      %v1671 = vpop.f32.mrf.mxu0
      %v1672 = vpop.f32.mrf.mxu0
      %v1673 = vadd.f32 0.0, %v1672
      %v1674 = vpop.f32.mrf.mxu0
      %1675 = vmatprep.mubr.bf16.mxu0 %v1432
      %1676 = vmatmul.mubr.bf16.gmra.mxu0 %v1431
      %v1677 = vpop.f32.mrf.mxu0
      %v1678 = vadd.f32 0.0, %v1677
      %v1679 = vpop.f32.mrf.mxu0
      %v1680 = vpop.f32.mrf.mxu0
      %v1681 = vadd.f32 0.0, %v1680
      %v1682 = vpop.f32.mrf.mxu0
      %1683 = vmatprep.mubr.bf16.mxu0 %v1434
      %1684 = vmatmul.mubr.bf16.gmra.mxu0 %v1433
      %v1685 = vpop.f32.mrf.mxu0
      %v1686 = vadd.f32 0.0, %v1685
      %v1687 = vpop.f32.mrf.mxu0
      %v1688 = vpop.f32.mrf.mxu0
      %v1689 = vadd.f32 0.0, %v1688
      %v1690 = vpop.f32.mrf.mxu0
      %1691 = vdwg.mxu0
      %v1692 = vld [vmem:[%s265] sm:$0xff]
      %v1693 = vld [vmem:[%s265 + $0x8] sm:$0xff]
      %v1694 = vld [vmem:[%s265 + $0x10] sm:$0xff]
      %v1695 = vld [vmem:[%s265 + $0x18] sm:$0xff]
      %v1696 = vld [vmem:[%s265 + $0x20] sm:$0xff]
      %v1697 = vld [vmem:[%s265 + $0x28] sm:$0xff]
      %v1698 = vld [vmem:[%s265 + $0x30] sm:$0xff]
      %v1699 = vld [vmem:[%s265 + $0x38] sm:$0xff]
      %v1700 = vld [vmem:[%s265 + $0x40] sm:$0xff]
      %v1701 = vld [vmem:[%s265 + $0x48] sm:$0xff]
      %v1702 = vld [vmem:[%s265 + $0x50] sm:$0xff]
      %v1703 = vld [vmem:[%s265 + $0x58] sm:$0xff]
      %v1704 = vld [vmem:[%s265 + $0x60] sm:$0xff]
      %v1705 = vld [vmem:[%s265 + $0x68] sm:$0xff]
      %v1706 = vld [vmem:[%s265 + $0x70] sm:$0xff]
      %v1707 = vld [vmem:[%s265 + $0x78] sm:$0xff]
      %v1708 = vld [vmem:[%s265 + $0x80] sm:$0xff]
      %v1709 = vld [vmem:[%s265 + $0x88] sm:$0xff]
      %v1710 = vld [vmem:[%s265 + $0x90] sm:$0xff]
      %v1711 = vld [vmem:[%s265 + $0x98] sm:$0xff]
      %v1712 = vld [vmem:[%s265 + $0xa0] sm:$0xff]
      %v1713 = vld [vmem:[%s265 + $0xa8] sm:$0xff]
      %v1714 = vld [vmem:[%s265 + $0xb0] sm:$0xff]
      %v1715 = vld [vmem:[%s265 + $0xb8] sm:$0xff]
      %v1716 = vld [vmem:[%s265 + $0xc0] sm:$0xff]
      %v1717 = vld [vmem:[%s265 + $0xc8] sm:$0xff]
      %v1718 = vld [vmem:[%s265 + $0xd0] sm:$0xff]
      %v1719 = vld [vmem:[%s265 + $0xd8] sm:$0xff]
      %v1720 = vld [vmem:[%s265 + $0xe0] sm:$0xff]
      %v1721 = vld [vmem:[%s265 + $0xe8] sm:$0xff]
      %v1722 = vld [vmem:[%s265 + $0xf0] sm:$0xff]
      %v1723 = vld [vmem:[%s265 + $0xf8] sm:$0xff]
      %v1724 = vpack.c.bf16 %v1569, %v1566
      %v1725 = vpack.c.bf16 %v1577, %v1574
      %v1726 = vpack.c.bf16 %v1585, %v1582
      %v1727 = vpack.c.bf16 %v1593, %v1590
      %v1728 = vpack.c.bf16 %v1601, %v1598
      %v1729 = vpack.c.bf16 %v1609, %v1606
      %v1730 = vpack.c.bf16 %v1617, %v1614
      %v1731 = vpack.c.bf16 %v1625, %v1622
      %v1732 = vpack.c.bf16 %v1633, %v1630
      %v1733 = vpack.c.bf16 %v1641, %v1638
      %v1734 = vpack.c.bf16 %v1649, %v1646
      %v1735 = vpack.c.bf16 %v1657, %v1654
      %v1736 = vpack.c.bf16 %v1665, %v1662
      %v1737 = vpack.c.bf16 %v1673, %v1670
      %v1738 = vpack.c.bf16 %v1681, %v1678
      %v1739 = vpack.c.bf16 %v1689, %v1686
      %v1740 = vld [vmem:[%s260] sm:$0x3]
      %v1742 = vsel %vm633, %v1724, 0
      %v1745 = vsel %vm633, %v1725, 0
      %v1748 = vsel %vm633, %v1726, 0
      %v1751 = vsel %vm633, %v1727, 0
      %v1754 = vsel %vm633, %v1728, 0
      %v1757 = vsel %vm633, %v1729, 0
      %v1760 = vsel %vm633, %v1730, 0
      %v1763 = vsel %vm633, %v1731, 0
      %v1766 = vsel %vm633, %v1732, 0
      %v1769 = vsel %vm633, %v1733, 0
      %v1772 = vsel %vm633, %v1734, 0
      %v1775 = vsel %vm633, %v1735, 0
      %v1778 = vsel %vm633, %v1736, 0
      %v1781 = vsel %vm633, %v1737, 0
      %v1784 = vsel %vm633, %v1738, 0
      %v1787 = vsel %vm633, %v1739, 0
      %vm1789 = vcmask 1041408
      %v1791 = vsel %vm1789, %v1740, 0
      %1793 = vmatprep.subr.bf16.mxu0 0
      %1794 = vmatpush1.bf16.msra.mxu0 0
      %1795 = vmatprep.subr.bf16.mxu0 0
      %1796 = vmatpush1.bf16.msra.mxu0 0
      %1797 = vmatprep.subr.bf16.mxu0 0
      %1798 = vmatpush1.bf16.msra.mxu0 0
      %1799 = vmatprep.subr.bf16.mxu0 0
      %1800 = vmatpush1.bf16.msra.mxu0 0
      %1801 = vmatprep.subr.bf16.mxu0 0
      %1802 = vmatpush1.bf16.msra.mxu0 0
      %1803 = vmatprep.subr.bf16.mxu0 0
      %1804 = vmatpush1.bf16.msra.mxu0 0
      %1805 = vmatprep.subr.bf16.mxu0 0
      %1806 = vmatpush1.bf16.msra.mxu0 0
      %1807 = vmatprep.subr.bf16.mxu0 0
      %1808 = vmatpush1.bf16.msra.mxu0 %v1791
      %1809 = vmatprep.subr.bf16.mxu0 0
      %1810 = vmatpush2.bf16.msra.mxu0 0
      %1811 = vmatprep.subr.bf16.mxu0 0
      %1812 = vmatpush2.bf16.msra.mxu0 0
      %1813 = vmatprep.subr.bf16.mxu0 0
      %1814 = vmatpush2.bf16.msra.mxu0 0
      %1815 = vmatprep.subr.bf16.mxu0 0
      %1816 = vmatpush2.bf16.msra.mxu0 0
      %1817 = vmatprep.subr.bf16.mxu0 0
      %1818 = vmatpush2.bf16.msra.mxu0 0
      %1819 = vmatprep.subr.bf16.mxu0 0
      %1820 = vmatpush2.bf16.msra.mxu0 0
      %1821 = vmatprep.subr.bf16.mxu0 0
      %1822 = vmatpush2.bf16.msra.mxu0 0
      %1823 = vmatprep.subr.bf16.mxu0 0
      %1824 = vmatpush2.bf16.msra.mxu0 0
      %1825 = vmatprep.mubr.bf16.mxu0 0
      %1826 = vmatmul.mubr.bf16.gmra.mxu0 %v1742
      %v1827 = vpop.f32.mrf.mxu0
      %v1828 = vadd.f32 0.0, %v1827
      %v1829 = vpop.f32.mrf.mxu0
      %v1830 = vpop.f32.mrf.mxu0
      %v1831 = vadd.f32 0.0, %v1830
      %v1832 = vpop.f32.mrf.mxu0
      %1833 = vmatprep.mubr.bf16.mxu0 0
      %1834 = vmatmul.mubr.bf16.gmra.mxu0 %v1745
      %v1835 = vpop.f32.mrf.mxu0
      %v1836 = vadd.f32 0.0, %v1835
      %v1837 = vpop.f32.mrf.mxu0
      %v1838 = vpop.f32.mrf.mxu0
      %v1839 = vadd.f32 0.0, %v1838
      %v1840 = vpop.f32.mrf.mxu0
      %1841 = vmatprep.mubr.bf16.mxu0 0
      %1842 = vmatmul.mubr.bf16.gmra.mxu0 %v1748
      %v1843 = vpop.f32.mrf.mxu0
      %v1844 = vadd.f32 0.0, %v1843
      %v1845 = vpop.f32.mrf.mxu0
      %v1846 = vpop.f32.mrf.mxu0
      %v1847 = vadd.f32 0.0, %v1846
      %v1848 = vpop.f32.mrf.mxu0
      %1849 = vmatprep.mubr.bf16.mxu0 0
      %1850 = vmatmul.mubr.bf16.gmra.mxu0 %v1751
      %v1851 = vpop.f32.mrf.mxu0
      %v1852 = vadd.f32 0.0, %v1851
      %v1853 = vpop.f32.mrf.mxu0
      %v1854 = vpop.f32.mrf.mxu0
      %v1855 = vadd.f32 0.0, %v1854
      %v1856 = vpop.f32.mrf.mxu0
      %1857 = vmatprep.mubr.bf16.mxu0 0
      %1858 = vmatmul.mubr.bf16.gmra.mxu0 %v1754
      %v1859 = vpop.f32.mrf.mxu0
      %v1860 = vadd.f32 0.0, %v1859
      %v1861 = vpop.f32.mrf.mxu0
      %v1862 = vpop.f32.mrf.mxu0
      %v1863 = vadd.f32 0.0, %v1862
      %v1864 = vpop.f32.mrf.mxu0
      %1865 = vmatprep.mubr.bf16.mxu0 0
      %1866 = vmatmul.mubr.bf16.gmra.mxu0 %v1757
      %v1867 = vpop.f32.mrf.mxu0
      %v1868 = vadd.f32 0.0, %v1867
      %v1869 = vpop.f32.mrf.mxu0
      %v1870 = vpop.f32.mrf.mxu0
      %v1871 = vadd.f32 0.0, %v1870
      %v1872 = vpop.f32.mrf.mxu0
      %1873 = vmatprep.mubr.bf16.mxu0 0
      %1874 = vmatmul.mubr.bf16.gmra.mxu0 %v1760
      %v1875 = vpop.f32.mrf.mxu0
      %v1876 = vadd.f32 0.0, %v1875
      %v1877 = vpop.f32.mrf.mxu0
      %v1878 = vpop.f32.mrf.mxu0
      %v1879 = vadd.f32 0.0, %v1878
      %v1880 = vpop.f32.mrf.mxu0
      %1881 = vmatprep.mubr.bf16.mxu0 0
      %1882 = vmatmul.mubr.bf16.gmra.mxu0 %v1763
      %v1883 = vpop.f32.mrf.mxu0
      %v1884 = vadd.f32 0.0, %v1883
      %v1885 = vpop.f32.mrf.mxu0
      %v1886 = vpop.f32.mrf.mxu0
      %v1887 = vadd.f32 0.0, %v1886
      %v1888 = vpop.f32.mrf.mxu0
      %1889 = vmatprep.mubr.bf16.mxu0 0
      %1890 = vmatmul.mubr.bf16.gmra.mxu0 %v1766
      %v1891 = vpop.f32.mrf.mxu0
      %v1892 = vadd.f32 0.0, %v1891
      %v1893 = vpop.f32.mrf.mxu0
      %v1894 = vpop.f32.mrf.mxu0
      %v1895 = vadd.f32 0.0, %v1894
      %v1896 = vpop.f32.mrf.mxu0
      %1897 = vmatprep.mubr.bf16.mxu0 0
      %1898 = vmatmul.mubr.bf16.gmra.mxu0 %v1769
      %v1899 = vpop.f32.mrf.mxu0
      %v1900 = vadd.f32 0.0, %v1899
      %v1901 = vpop.f32.mrf.mxu0
      %v1902 = vpop.f32.mrf.mxu0
      %v1903 = vadd.f32 0.0, %v1902
      %v1904 = vpop.f32.mrf.mxu0
      %1905 = vmatprep.mubr.bf16.mxu0 0
      %1906 = vmatmul.mubr.bf16.gmra.mxu0 %v1772
      %v1907 = vpop.f32.mrf.mxu0
      %v1908 = vadd.f32 0.0, %v1907
      %v1909 = vpop.f32.mrf.mxu0
      %v1910 = vpop.f32.mrf.mxu0
      %v1911 = vadd.f32 0.0, %v1910
      %v1912 = vpop.f32.mrf.mxu0
      %1913 = vmatprep.mubr.bf16.mxu0 0
      %1914 = vmatmul.mubr.bf16.gmra.mxu0 %v1775
      %v1915 = vpop.f32.mrf.mxu0
      %v1916 = vadd.f32 0.0, %v1915
      %v1917 = vpop.f32.mrf.mxu0
      %v1918 = vpop.f32.mrf.mxu0
      %v1919 = vadd.f32 0.0, %v1918
      %v1920 = vpop.f32.mrf.mxu0
      %1921 = vmatprep.mubr.bf16.mxu0 0
      %1922 = vmatmul.mubr.bf16.gmra.mxu0 %v1778
      %v1923 = vpop.f32.mrf.mxu0
      %v1924 = vadd.f32 0.0, %v1923
      %v1925 = vpop.f32.mrf.mxu0
      %v1926 = vpop.f32.mrf.mxu0
      %v1927 = vadd.f32 0.0, %v1926
      %v1928 = vpop.f32.mrf.mxu0
      %1929 = vmatprep.mubr.bf16.mxu0 0
      %1930 = vmatmul.mubr.bf16.gmra.mxu0 %v1781
      %v1931 = vpop.f32.mrf.mxu0
      %v1932 = vadd.f32 0.0, %v1931
      %v1933 = vpop.f32.mrf.mxu0
      %v1934 = vpop.f32.mrf.mxu0
      %v1935 = vadd.f32 0.0, %v1934
      %v1936 = vpop.f32.mrf.mxu0
      %1937 = vmatprep.mubr.bf16.mxu0 0
      %1938 = vmatmul.mubr.bf16.gmra.mxu0 %v1784
      %v1939 = vpop.f32.mrf.mxu0
      %v1940 = vadd.f32 0.0, %v1939
      %v1941 = vpop.f32.mrf.mxu0
      %v1942 = vpop.f32.mrf.mxu0
      %v1943 = vadd.f32 0.0, %v1942
      %v1944 = vpop.f32.mrf.mxu0
      %1945 = vmatprep.mubr.bf16.mxu0 0
      %1946 = vmatmul.mubr.bf16.gmra.mxu0 %v1787
      %v1947 = vpop.f32.mrf.mxu0
      %v1948 = vadd.f32 0.0, %v1947
      %v1949 = vpop.f32.mrf.mxu0
      %v1950 = vpop.f32.mrf.mxu0
      %v1951 = vadd.f32 0.0, %v1950
      %v1952 = vpop.f32.mrf.mxu0
      %1953 = vdwg.mxu0
      %v1954 = vadd.f32 %v1692, %v1828
      %v1955 = vadd.f32 %v1693, %v1831
      %v1956 = vadd.f32 %v1694, %v1836
      %v1957 = vadd.f32 %v1695, %v1839
      %v1958 = vadd.f32 %v1696, %v1844
      %v1959 = vadd.f32 %v1697, %v1847
      %v1960 = vadd.f32 %v1698, %v1852
      %v1961 = vadd.f32 %v1699, %v1855
      %v1962 = vadd.f32 %v1700, %v1860
      %v1963 = vadd.f32 %v1701, %v1863
      %v1964 = vadd.f32 %v1702, %v1868
      %v1965 = vadd.f32 %v1703, %v1871
      %v1966 = vadd.f32 %v1704, %v1876
      %v1967 = vadd.f32 %v1705, %v1879
      %v1968 = vadd.f32 %v1706, %v1884
      %v1969 = vadd.f32 %v1707, %v1887
      %v1970 = vadd.f32 %v1708, %v1892
      %v1971 = vadd.f32 %v1709, %v1895
      %v1972 = vadd.f32 %v1710, %v1900
      %v1973 = vadd.f32 %v1711, %v1903
      %v1974 = vadd.f32 %v1712, %v1908
      %v1975 = vadd.f32 %v1713, %v1911
      %v1976 = vadd.f32 %v1714, %v1916
      %v1977 = vadd.f32 %v1715, %v1919
      %v1978 = vadd.f32 %v1716, %v1924
      %v1979 = vadd.f32 %v1717, %v1927
      %v1980 = vadd.f32 %v1718, %v1932
      %v1981 = vadd.f32 %v1719, %v1935
      %v1982 = vadd.f32 %v1720, %v1940
      %v1983 = vadd.f32 %v1721, %v1943
      %v1984 = vadd.f32 %v1722, %v1948
      %v1985 = vadd.f32 %v1723, %v1951
      %vm1986 = vcmask 261120
      %1987 = vst.msk [vmem:[%s265] sm:$0xff] %vm1986, %v1954
      %1988 = vst.msk [vmem:[%s265 + $0x8] sm:$0xff] %vm1986, %v1955
      %1989 = vst.msk [vmem:[%s265 + $0x10] sm:$0xff] %vm1986, %v1956
      %1990 = vst.msk [vmem:[%s265 + $0x18] sm:$0xff] %vm1986, %v1957
      %1991 = vst.msk [vmem:[%s265 + $0x20] sm:$0xff] %vm1986, %v1958
      %1992 = vst.msk [vmem:[%s265 + $0x28] sm:$0xff] %vm1986, %v1959
      %1993 = vst.msk [vmem:[%s265 + $0x30] sm:$0xff] %vm1986, %v1960
      %1994 = vst.msk [vmem:[%s265 + $0x38] sm:$0xff] %vm1986, %v1961
      %1995 = vst.msk [vmem:[%s265 + $0x40] sm:$0xff] %vm1986, %v1962
      %1996 = vst.msk [vmem:[%s265 + $0x48] sm:$0xff] %vm1986, %v1963
      %1997 = vst.msk [vmem:[%s265 + $0x50] sm:$0xff] %vm1986, %v1964
      %1998 = vst.msk [vmem:[%s265 + $0x58] sm:$0xff] %vm1986, %v1965
      %1999 = vst.msk [vmem:[%s265 + $0x60] sm:$0xff] %vm1986, %v1966
      %2000 = vst.msk [vmem:[%s265 + $0x68] sm:$0xff] %vm1986, %v1967
      %2001 = vst.msk [vmem:[%s265 + $0x70] sm:$0xff] %vm1986, %v1968
      %2002 = vst.msk [vmem:[%s265 + $0x78] sm:$0xff] %vm1986, %v1969
      %2003 = vst.msk [vmem:[%s265 + $0x80] sm:$0xff] %vm1986, %v1970
      %2004 = vst.msk [vmem:[%s265 + $0x88] sm:$0xff] %vm1986, %v1971
      %2005 = vst.msk [vmem:[%s265 + $0x90] sm:$0xff] %vm1986, %v1972
      %2006 = vst.msk [vmem:[%s265 + $0x98] sm:$0xff] %vm1986, %v1973
      %2007 = vst.msk [vmem:[%s265 + $0xa0] sm:$0xff] %vm1986, %v1974
      %2008 = vst.msk [vmem:[%s265 + $0xa8] sm:$0xff] %vm1986, %v1975
      %2009 = vst.msk [vmem:[%s265 + $0xb0] sm:$0xff] %vm1986, %v1976
      %2010 = vst.msk [vmem:[%s265 + $0xb8] sm:$0xff] %vm1986, %v1977
      %2011 = vst.msk [vmem:[%s265 + $0xc0] sm:$0xff] %vm1986, %v1978
      %2012 = vst.msk [vmem:[%s265 + $0xc8] sm:$0xff] %vm1986, %v1979
      %2013 = vst.msk [vmem:[%s265 + $0xd0] sm:$0xff] %vm1986, %v1980
      %2014 = vst.msk [vmem:[%s265 + $0xd8] sm:$0xff] %vm1986, %v1981
      %2015 = vst.msk [vmem:[%s265 + $0xe0] sm:$0xff] %vm1986, %v1982
      %2016 = vst.msk [vmem:[%s265 + $0xe8] sm:$0xff] %vm1986, %v1983
      %2017 = vst.msk [vmem:[%s265 + $0xf0] sm:$0xff] %vm1986, %v1984
      %2018 = vst.msk [vmem:[%s265 + $0xf8] sm:$0xff] %vm1986, %v1985
      %p2019 = scmp.lt.s32.totalorder %s19, 1
      %s2020 = scalar_select %p2019, %s19, 1
      %s2021 = smul.addr %s2020, 32
      %s2022 = smul.addr %s2021, 8
      %s2023 = scalar_lea.vmem %s4, %s2022
      // Predicated region
      $region41: #{multi_head_attention_block.7} parent=35 // pred_check
        %p2024 = pneg %p146
      $region42: #{multi_head_attention_block.7} parent=35 // pred_check_branch
        %2026 = sbr.rel (%p2024) target = $region44
      $region43: #{multi_head_attention_block.7} parent=35 // pred_region
        _
      $region44: #{multi_head_attention_block.7} parent=35 // pred_fallthru
        _
    $region36: #{multi_head_attention_block.7} parent=5 // pred_fallthru
      _
    %p2027 = scmp.le.s32.totalorder 2, %s10
    // Predicated region
    $region45: #{multi_head_attention_block.7} parent=5 // pred_check
      %p2028 = pneg %p2027
    $region46: #{multi_head_attention_block.7} parent=5 // pred_check_branch
      %2030 = sbr.rel (%p2028) target = $region48
    $region47: #{multi_head_attention_block.7} parent=5 // pred_region
      %s2031 = ssub.s32 %s10, 2
      // Predicated region
      $region49: #{multi_head_attention_block.7} parent=47 // pred_check
        %p2032 = pneg %p152
      $region50: #{multi_head_attention_block.7} parent=47 // pred_check_branch
        %2034 = sbr.rel (%p2032) target = $region52
      $region51: #{multi_head_attention_block.7} parent=47 // pred_region
        %p2035 = scmp.lt.s32.totalorder %s21, 1
        %s2036 = scalar_select %p2035, %s21, 1
        %s2037 = smul.addr %s2036, 32
        %s2038 = smul.addr %s2037, 8
        %s2039 = scalar_lea.vmem %s4, %s2038
      $region52: #{multi_head_attention_block.7} parent=47 // pred_fallthru
        _
    $region48: #{multi_head_attention_block.7} parent=5 // pred_fallthru
      _
  $region6: #{multi_head_attention_block.7} parent=0 // loop_footer
    %s14 = sadd.s32 1, %s10
  $region7: #{multi_head_attention_block.7} parent=0 // loop_footer_branch
    %9 = sbr.rel target = $region3
  $region8: #{multi_head_attention_block.7} parent=0 // loop_exit
    _

// kernel: multi_head_attention_block.9
$region0: #{multi_head_attention_block.9}
  #allocation0 [shape = 'u32[]', space=smem, size = 0x4, offset = 0x4, fixed_abs, tag = 'smem constant byte address 0x4 - core index']
  #allocation1 [shape = 'u32[144,128]{1,0:T(1,128)}', space=vmem, size = 0x12000, scoped, tag = 'internal scratch']
  %s0 = inlined_call_operand.vmem [shape: f32[2,256,32], index: 0, kind: input, shape index: {}]
  %s1 = inlined_call_operand.vmem [shape: f32[1,32], index: 1, kind: input, shape index: {}]
  %s2 = inlined_call_operand.vmem [shape: f32[1,32], index: 2, kind: input, shape index: {}]
  %s3 = inlined_call_operand.vmem [shape: bf16[32,128], index: 3, kind: input, shape index: {}]
  %s4 = inlined_call_operand.vmem [shape: f32[1,128], index: 4, kind: input, shape index: {}]
  %s5 = inlined_call_operand.vmem [shape: bf16[128,32], index: 5, kind: input, shape index: {}]
  %s6 = inlined_call_operand.vmem [shape: f32[1,32], index: 6, kind: input, shape index: {}]
  %s7 = inlined_call_operand.hbm [shape: f32[2,256,32], index: 7, kind: output, shape index: {}]
  %s8 = sld [smem:[#allocation0]]
  $region61: #{multi_head_attention_block.9} parent=0
    _
  %s10 = ssub.s32 1, %s8
  %s11 = scalar_select 0, %s10, %s8
  $region1: #{multi_head_attention_block.9} parent=0
    #allocation2 [shape = 'u8[262144]{0}', space=vmem, size = 0x40000, scoped, tag = 'output window, operand 0']
    #allocation3 [shape = 's32[2]{0}', space=sflag, size = 0x8, scoped, tag = 'scoped memory for multi_head_attention_block.9']
    %12 = vsyncpa [#allocation3], 0
    %s13 = scalar_lea.sflag [#allocation3], 1
    %14 = vsyncpa %s13, 0
    loop: start=0, step=1, limit=4
    $region2: #{multi_head_attention_block.9} parent=1 // loop_pre_header
      _
    $region3: #{multi_head_attention_block.9} parent=1 // loop_header
      %s16 = sphi 0, %s20
      %p17 = scmp.ge.s32.totalorder %s16, 4
      %s23 = sphi 0, %s35
      %s24 = sphi 0, %s31
      %s25 = sphi 0, %s23
      %s26 = sphi 0, %s24
      %s27 = sphi 0, %s25
      %s28 = sphi 0, %s26
      %s40 = sphi 0, %s42
      %s43 = sphi 0, %s40
      %s44 = sphi 0, %s43
      %s60 = sphi 0, %s44
      %s64 = sphi 0, %s64
      %s66 = sphi 0, %s64
      %s67 = sphi 0, %s66
      %s81 = sphi 0, %s67
      %s85 = sphi 0, %s85
      %s87 = sphi 0, %s85
      %s88 = sphi 0, %s87
      %s102 = sphi 0, %s88
      %s106 = sphi 0, %s106
      %s108 = sphi 0, %s106
      %s109 = sphi 0, %s108
      %s123 = sphi 0, %s109
      %s127 = sphi 0, %s127
      %s129 = sphi 0, %s127
      %s130 = sphi 0, %s129
      %s144 = sphi 0, %s130
      %s148 = sphi 0, %s148
      %s150 = sphi 0, %s148
      %s151 = sphi 0, %s150
      %s165 = sphi 0, %s151
      %s169 = sphi 0, %s169
      %s171 = sphi 0, %s169
      %s172 = sphi 0, %s171
      %s186 = sphi 0, %s172
      %s194 = sphi 0, %s196
      %s197 = sphi 0, %s194
      %s198 = sphi 0, %s197
      %s214 = sphi 0, %s198
    $region4: #{multi_head_attention_block.9} parent=1 // loop_header_branch
      %19 = sbr.rel (%p17) target = $region8
    $region5: #{multi_head_attention_block.9} parent=1 // loop_body
      %s21 = ssub.s32 %s16, 1
      %s22 = ssub.s32 %s16, 2
      %s29 = sadd.s32 1, %s24
      %p30 = scmp.ge.s32.totalorder %s29, 1
      %s31 = scalar_select %p30, 0, %s29
      %s32 = sadd.s32 1, %s23
      %s33 = scalar_select %p30, %s32, %s23
      %p34 = scmp.ge.s32.totalorder %s33, 2
      %s35 = scalar_select %p34, 0, %s33
      %s36 = ssub.s32 %s23, %s35
      %s37 = ssub.s32 %s24, %s31
      %s38 = sor.u32 %s36, %s37
      %p39 = scmp.eq.s32.totalorder %s38, 0
      %s41 = sadd.s32 %s40, 1
      %s42 = scalar_select %p39, %s40, %s41
      %p45 = pneg %p39
      %p46 = scmp.eq.s32.totalorder %s16, 1
      %p47 = por %p45, %p46
      %p48 = scmp.ne.s32.totalorder %s40, %s43
      %p49 = scmp.eq.s32.totalorder %s16, 0
      %p50 = por %p48, %p49
      %p51 = scmp.ne.s32.totalorder %s40, %s43
      %p52 = scmp.eq.s32.totalorder %s21, 1
      %p53 = por %p51, %p52
      %p54 = scmp.ne.s32.totalorder %s43, %s44
      %p55 = scmp.eq.s32.totalorder %s21, 0
      %p56 = por %p54, %p55
      %p57 = scmp.ne.s32.totalorder %s43, %s44
      %p58 = scmp.eq.s32.totalorder %s22, 1
      %p59 = por %p57, %p58
      %p61 = scmp.ne.s32.totalorder %s44, %s60
      %p62 = scmp.eq.s32.totalorder %s22, 0
      %p63 = por %p61, %p62
      %s65 = sadd.s32 %s64, 1
      %p68 = scmp.eq.s32.totalorder %s16, 1
      %p69 = scmp.ne.s32.totalorder %s64, %s66
      %p70 = scmp.eq.s32.totalorder %s16, 0
      %p71 = por %p69, %p70
      %p72 = scmp.ne.s32.totalorder %s64, %s66
      %p73 = scmp.eq.s32.totalorder %s21, 1
      %p74 = por %p72, %p73
      %p75 = scmp.ne.s32.totalorder %s66, %s67
      %p76 = scmp.eq.s32.totalorder %s21, 0
      %p77 = por %p75, %p76
      %p78 = scmp.ne.s32.totalorder %s66, %s67
      %p79 = scmp.eq.s32.totalorder %s22, 1
      %p80 = por %p78, %p79
      %p82 = scmp.ne.s32.totalorder %s67, %s81
      %p83 = scmp.eq.s32.totalorder %s22, 0
      %p84 = por %p82, %p83
      %s86 = sadd.s32 %s85, 1
      %p89 = scmp.eq.s32.totalorder %s16, 1
      %p90 = scmp.ne.s32.totalorder %s85, %s87
      %p91 = scmp.eq.s32.totalorder %s16, 0
      %p92 = por %p90, %p91
      %p93 = scmp.ne.s32.totalorder %s85, %s87
      %p94 = scmp.eq.s32.totalorder %s21, 1
      %p95 = por %p93, %p94
      %p96 = scmp.ne.s32.totalorder %s87, %s88
      %p97 = scmp.eq.s32.totalorder %s21, 0
      %p98 = por %p96, %p97
      %p99 = scmp.ne.s32.totalorder %s87, %s88
      %p100 = scmp.eq.s32.totalorder %s22, 1
      %p101 = por %p99, %p100
      %p103 = scmp.ne.s32.totalorder %s88, %s102
      %p104 = scmp.eq.s32.totalorder %s22, 0
      %p105 = por %p103, %p104
      %s107 = sadd.s32 %s106, 1
      %p110 = scmp.eq.s32.totalorder %s16, 1
      %p111 = scmp.ne.s32.totalorder %s106, %s108
      %p112 = scmp.eq.s32.totalorder %s16, 0
      %p113 = por %p111, %p112
      %p114 = scmp.ne.s32.totalorder %s106, %s108
      %p115 = scmp.eq.s32.totalorder %s21, 1
      %p116 = por %p114, %p115
      %p117 = scmp.ne.s32.totalorder %s108, %s109
      %p118 = scmp.eq.s32.totalorder %s21, 0
      %p119 = por %p117, %p118
      %p120 = scmp.ne.s32.totalorder %s108, %s109
      %p121 = scmp.eq.s32.totalorder %s22, 1
      %p122 = por %p120, %p121
      %p124 = scmp.ne.s32.totalorder %s109, %s123
      %p125 = scmp.eq.s32.totalorder %s22, 0
      %p126 = por %p124, %p125
      %s128 = sadd.s32 %s127, 1
      %p131 = scmp.eq.s32.totalorder %s16, 1
      %p132 = scmp.ne.s32.totalorder %s127, %s129
      %p133 = scmp.eq.s32.totalorder %s16, 0
      %p134 = por %p132, %p133
      %p135 = scmp.ne.s32.totalorder %s127, %s129
      %p136 = scmp.eq.s32.totalorder %s21, 1
      %p137 = por %p135, %p136
      %p138 = scmp.ne.s32.totalorder %s129, %s130
      %p139 = scmp.eq.s32.totalorder %s21, 0
      %p140 = por %p138, %p139
      %p141 = scmp.ne.s32.totalorder %s129, %s130
      %p142 = scmp.eq.s32.totalorder %s22, 1
      %p143 = por %p141, %p142
      %p145 = scmp.ne.s32.totalorder %s130, %s144
      %p146 = scmp.eq.s32.totalorder %s22, 0
      %p147 = por %p145, %p146
      %s149 = sadd.s32 %s148, 1
      %p152 = scmp.eq.s32.totalorder %s16, 1
      %p153 = scmp.ne.s32.totalorder %s148, %s150
      %p154 = scmp.eq.s32.totalorder %s16, 0
      %p155 = por %p153, %p154
      %p156 = scmp.ne.s32.totalorder %s148, %s150
      %p157 = scmp.eq.s32.totalorder %s21, 1
      %p158 = por %p156, %p157
      %p159 = scmp.ne.s32.totalorder %s150, %s151
      %p160 = scmp.eq.s32.totalorder %s21, 0
      %p161 = por %p159, %p160
      %p162 = scmp.ne.s32.totalorder %s150, %s151
      %p163 = scmp.eq.s32.totalorder %s22, 1
      %p164 = por %p162, %p163
      %p166 = scmp.ne.s32.totalorder %s151, %s165
      %p167 = scmp.eq.s32.totalorder %s22, 0
      %p168 = por %p166, %p167
      %s170 = sadd.s32 %s169, 1
      %p173 = scmp.eq.s32.totalorder %s16, 1
      %p174 = scmp.ne.s32.totalorder %s169, %s171
      %p175 = scmp.eq.s32.totalorder %s16, 0
      %p176 = por %p174, %p175
      %p177 = scmp.ne.s32.totalorder %s169, %s171
      %p178 = scmp.eq.s32.totalorder %s21, 1
      %p179 = por %p177, %p178
      %p180 = scmp.ne.s32.totalorder %s171, %s172
      %p181 = scmp.eq.s32.totalorder %s21, 0
      %p182 = por %p180, %p181
      %p183 = scmp.ne.s32.totalorder %s171, %s172
      %p184 = scmp.eq.s32.totalorder %s22, 1
      %p185 = por %p183, %p184
      %p187 = scmp.ne.s32.totalorder %s172, %s186
      %p188 = scmp.eq.s32.totalorder %s22, 0
      %p189 = por %p187, %p188
      %s190 = ssub.s32 %s23, %s35
      %s191 = ssub.s32 %s24, %s31
      %s192 = sor.u32 %s190, %s191
      %p193 = scmp.eq.s32.totalorder %s192, 0
      %s195 = sadd.s32 %s194, 1
      %s196 = scalar_select %p193, %s194, %s195
      %p199 = pneg %p193
      %p200 = scmp.eq.s32.totalorder %s16, 1
      %p201 = por %p199, %p200
      %p202 = scmp.ne.s32.totalorder %s194, %s197
      %p203 = scmp.eq.s32.totalorder %s16, 0
      %p204 = por %p202, %p203
      %p205 = scmp.ne.s32.totalorder %s194, %s197
      %p206 = scmp.eq.s32.totalorder %s21, 1
      %p207 = por %p205, %p206
      %p208 = scmp.ne.s32.totalorder %s197, %s198
      %p209 = scmp.eq.s32.totalorder %s21, 0
      %p210 = por %p208, %p209
      %p211 = scmp.ne.s32.totalorder %s197, %s198
      %p212 = scmp.eq.s32.totalorder %s22, 1
      %p213 = por %p211, %p212
      %p215 = scmp.ne.s32.totalorder %s198, %s214
      %p216 = scmp.eq.s32.totalorder %s22, 0
      %p217 = por %p215, %p216
      %p218 = scmp.le.s32.totalorder 1, %s16
      %p219 = scmp.lt.s32.totalorder %s16, 3
      %p220 = pnand %p218, %p219
      %p221 = pneg %p220
      // Predicated region
      $region9: #{multi_head_attention_block.9} parent=5 // pred_check
        _
      $region10: #{multi_head_attention_block.9} parent=5 // pred_check_branch
        %223 = sbr.rel (%p220) target = $region12
      $region11: #{multi_head_attention_block.9} parent=5 // pred_region
        %s224 = ssub.s32 %s16, 1
        // Predicated region
        $region13: #{multi_head_attention_block.9} parent=11 // pred_check
          %p225 = pneg %p77
        $region14: #{multi_head_attention_block.9} parent=11 // pred_check_branch
          %227 = sbr.rel (%p225) target = $region16
        $region15: #{multi_head_attention_block.9} parent=11 // pred_region
          _
        $region16: #{multi_head_attention_block.9} parent=11 // pred_fallthru
          _
        // Predicated region
        $region17: #{multi_head_attention_block.9} parent=11 // pred_check
          %p228 = pneg %p98
        $region18: #{multi_head_attention_block.9} parent=11 // pred_check_branch
          %230 = sbr.rel (%p228) target = $region20
        $region19: #{multi_head_attention_block.9} parent=11 // pred_region
          _
        $region20: #{multi_head_attention_block.9} parent=11 // pred_fallthru
          _
        // Predicated region
        $region21: #{multi_head_attention_block.9} parent=11 // pred_check
          %p231 = pneg %p119
        $region22: #{multi_head_attention_block.9} parent=11 // pred_check_branch
          %233 = sbr.rel (%p231) target = $region24
        $region23: #{multi_head_attention_block.9} parent=11 // pred_region
          _
        $region24: #{multi_head_attention_block.9} parent=11 // pred_fallthru
          _
        // Predicated region
        $region25: #{multi_head_attention_block.9} parent=11 // pred_check
          %p234 = pneg %p140
        $region26: #{multi_head_attention_block.9} parent=11 // pred_check_branch
          %236 = sbr.rel (%p234) target = $region28
        $region27: #{multi_head_attention_block.9} parent=11 // pred_region
          _
        $region28: #{multi_head_attention_block.9} parent=11 // pred_fallthru
          _
        // Predicated region
        $region29: #{multi_head_attention_block.9} parent=11 // pred_check
          %p237 = pneg %p161
        $region30: #{multi_head_attention_block.9} parent=11 // pred_check_branch
          %239 = sbr.rel (%p237) target = $region32
        $region31: #{multi_head_attention_block.9} parent=11 // pred_region
          _
        $region32: #{multi_head_attention_block.9} parent=11 // pred_fallthru
          _
        // Predicated region
        $region33: #{multi_head_attention_block.9} parent=11 // pred_check
          %p240 = pneg %p182
        $region34: #{multi_head_attention_block.9} parent=11 // pred_check_branch
          %242 = sbr.rel (%p240) target = $region36
        $region35: #{multi_head_attention_block.9} parent=11 // pred_region
          _
        $region36: #{multi_head_attention_block.9} parent=11 // pred_fallthru
          _
      $region12: #{multi_head_attention_block.9} parent=5 // pred_fallthru
        _
      %p243 = scmp.lt.s32.totalorder %s16, 2
      // Predicated region
      $region37: #{multi_head_attention_block.9} parent=5 // pred_check
        %p244 = pneg %p243
      $region38: #{multi_head_attention_block.9} parent=5 // pred_check_branch
        %246 = sbr.rel (%p244) target = $region40
      $region39: #{multi_head_attention_block.9} parent=5 // pred_region
        // Predicated region
        $region41: #{multi_head_attention_block.9} parent=39 // pred_check
          %p247 = pneg %p50
        $region42: #{multi_head_attention_block.9} parent=39 // pred_check_branch
          %249 = sbr.rel (%p247) target = $region44
        $region43: #{multi_head_attention_block.9} parent=39 // pred_region
          %s250 = smul.u32 32, %s24
          %p251 = scmp.lt.s32.totalorder %s23, 1
          %s252 = scalar_select %p251, %s23, 1
          %p253 = scmp.lt.s32.totalorder %s250, 31
          %s254 = scalar_select %p253, %s250, 31
          %s255 = smul.addr %s252, 32
          %s256 = sadd.s32 %s254, %s255
          %s257 = smul.addr %s256, 8
          %s258 = scalar_lea.vmem %s0, %s257
          %s259 = smul.u32 32, %s24
        $region44: #{multi_head_attention_block.9} parent=39 // pred_fallthru
          _
      $region40: #{multi_head_attention_block.9} parent=5 // pred_fallthru
        _
      %p260 = scmp.le.s32.totalorder 1, %s16
      %p261 = scmp.lt.s32.totalorder %s16, 3
      %p262 = pnand %p260, %p261
      %p263 = pneg %p262
      // Predicated region
      $region45: #{multi_head_attention_block.9} parent=5 // pred_check
        _
      $region46: #{multi_head_attention_block.9} parent=5 // pred_check_branch
        %265 = sbr.rel (%p262) target = $region48
      $region47: #{multi_head_attention_block.9} parent=5 // pred_region
        %s266 = ssub.s32 %s16, 1
        %s267 = smul.u32 32, %s26
        %p268 = scmp.lt.s32.totalorder %s25, 1
        %s269 = scalar_select %p268, %s25, 1
        %p270 = scmp.lt.s32.totalorder %s267, 31
        %s271 = scalar_select %p270, %s267, 31
        %s272 = smul.addr %s269, 32
        %s273 = sadd.s32 %s271, %s272
        %s274 = smul.addr %s273, 8
        %s275 = scalar_lea.vmem %s0, %s274
        %p276 = pneg %p56
        %p277 = pneg %p53
        %p278 = pneg %p77
        %p279 = pneg %p74
        %p280 = pneg %p98
        %p281 = pneg %p95
        %p282 = pneg %p119
        %p283 = pneg %p116
        %p284 = pneg %p140
        %p285 = pneg %p137
        %p286 = pneg %p161
        %p287 = pneg %p158
        %p288 = pneg %p182
        %p289 = pneg %p179
        %p290 = pneg %p210
        %p291 = pneg %p207
        %s292 = sand.u32 %s197, 1
        %s293 = scalar_lea.sflag [#allocation3], %s292
        %s294 = sand.u32 %s197, 1
        %s295 = smul.addr %s294, 256
        %s296 = scalar_lea.vmem [#allocation2], %s295
        %s297 = smul.u32 32, %s26
        %p298 = scmp.lt.s32.totalorder %s25, 1
        %s299 = scalar_select %p298, %s25, 1
        %p300 = scmp.lt.s32.totalorder %s297, 31
        %s301 = scalar_select %p300, %s297, 31
        %s302 = smul.addr %s299, 32
        %s303 = sadd.s32 %s301, %s302
        %s304 = smul.addr %s303, 8
        %s305 = scalar_lea.vmem %s0, %s304
        %s306 = smul.u32 32, %s26
        %s307 = smul.u32 32, %s26
        %v309 = vld [vmem:[%s305] sm:$0xff]
        %v310 = vld [vmem:[%s305 + $0x8] sm:$0xff]
        %v311 = vld [vmem:[%s305 + $0x10] sm:$0xff]
        %v312 = vld [vmem:[%s305 + $0x18] sm:$0xff]
        %v313 = vld [vmem:[%s305 + $0x20] sm:$0xff]
        %v314 = vld [vmem:[%s305 + $0x28] sm:$0xff]
        %v315 = vld [vmem:[%s305 + $0x30] sm:$0xff]
        %v316 = vld [vmem:[%s305 + $0x38] sm:$0xff]
        %v317 = vld [vmem:[%s305 + $0x40] sm:$0xff]
        %v318 = vld [vmem:[%s305 + $0x48] sm:$0xff]
        %v319 = vld [vmem:[%s305 + $0x50] sm:$0xff]
        %v320 = vld [vmem:[%s305 + $0x58] sm:$0xff]
        %v321 = vld [vmem:[%s305 + $0x60] sm:$0xff]
        %v322 = vld [vmem:[%s305 + $0x68] sm:$0xff]
        %v323 = vld [vmem:[%s305 + $0x70] sm:$0xff]
        %v324 = vld [vmem:[%s305 + $0x78] sm:$0xff]
        %v325 = vld [vmem:[%s305 + $0x80] sm:$0xff]
        %v326 = vld [vmem:[%s305 + $0x88] sm:$0xff]
        %v327 = vld [vmem:[%s305 + $0x90] sm:$0xff]
        %v328 = vld [vmem:[%s305 + $0x98] sm:$0xff]
        %v329 = vld [vmem:[%s305 + $0xa0] sm:$0xff]
        %v330 = vld [vmem:[%s305 + $0xa8] sm:$0xff]
        %v331 = vld [vmem:[%s305 + $0xb0] sm:$0xff]
        %v332 = vld [vmem:[%s305 + $0xb8] sm:$0xff]
        %v333 = vld [vmem:[%s305 + $0xc0] sm:$0xff]
        %v334 = vld [vmem:[%s305 + $0xc8] sm:$0xff]
        %v335 = vld [vmem:[%s305 + $0xd0] sm:$0xff]
        %v336 = vld [vmem:[%s305 + $0xd8] sm:$0xff]
        %v337 = vld [vmem:[%s305 + $0xe0] sm:$0xff]
        %v338 = vld [vmem:[%s305 + $0xe8] sm:$0xff]
        %v339 = vld [vmem:[%s305 + $0xf0] sm:$0xff]
        %v340 = vld [vmem:[%s305 + $0xf8] sm:$0xff]
        %v341 = vld [vmem:[%s1] sm:$0x1]
        %v343 = vlaneseq
        %v344 = vshrl.u32 %v343, 7
        %v345 = vsub.s32 0, %v344
        %v346 = vrot.slane %v341, %v345
        %v348 = vmul.f32 %v309, %v346
        %v349 = vmul.f32 %v310, %v346
        %v350 = vmul.f32 %v311, %v346
        %v351 = vmul.f32 %v312, %v346
        %v352 = vmul.f32 %v313, %v346
        %v353 = vmul.f32 %v314, %v346
        %v354 = vmul.f32 %v315, %v346
        %v355 = vmul.f32 %v316, %v346
        %v356 = vmul.f32 %v317, %v346
        %v357 = vmul.f32 %v318, %v346
        %v358 = vmul.f32 %v319, %v346
        %v359 = vmul.f32 %v320, %v346
        %v360 = vmul.f32 %v321, %v346
        %v361 = vmul.f32 %v322, %v346
        %v362 = vmul.f32 %v323, %v346
        %v363 = vmul.f32 %v324, %v346
        %v364 = vmul.f32 %v325, %v346
        %v365 = vmul.f32 %v326, %v346
        %v366 = vmul.f32 %v327, %v346
        %v367 = vmul.f32 %v328, %v346
        %v368 = vmul.f32 %v329, %v346
        %v369 = vmul.f32 %v330, %v346
        %v370 = vmul.f32 %v331, %v346
        %v371 = vmul.f32 %v332, %v346
        %v372 = vmul.f32 %v333, %v346
        %v373 = vmul.f32 %v334, %v346
        %v374 = vmul.f32 %v335, %v346
        %v375 = vmul.f32 %v336, %v346
        %v376 = vmul.f32 %v337, %v346
        %v377 = vmul.f32 %v338, %v346
        %v378 = vmul.f32 %v339, %v346
        %v379 = vmul.f32 %v340, %v346
        %v380 = vld [vmem:[%s2] sm:$0x1]
        %v382 = vlaneseq
        %v383 = vshrl.u32 %v382, 7
        %v384 = vsub.s32 0, %v383
        %v385 = vrot.slane %v380, %v384
        %v387 = vadd.f32 %v348, %v385
        %v388 = vadd.f32 %v349, %v385
        %v389 = vadd.f32 %v350, %v385
        %v390 = vadd.f32 %v351, %v385
        %v391 = vadd.f32 %v352, %v385
        %v392 = vadd.f32 %v353, %v385
        %v393 = vadd.f32 %v354, %v385
        %v394 = vadd.f32 %v355, %v385
        %v395 = vadd.f32 %v356, %v385
        %v396 = vadd.f32 %v357, %v385
        %v397 = vadd.f32 %v358, %v385
        %v398 = vadd.f32 %v359, %v385
        %v399 = vadd.f32 %v360, %v385
        %v400 = vadd.f32 %v361, %v385
        %v401 = vadd.f32 %v362, %v385
        %v402 = vadd.f32 %v363, %v385
        %v403 = vadd.f32 %v364, %v385
        %v404 = vadd.f32 %v365, %v385
        %v405 = vadd.f32 %v366, %v385
        %v406 = vadd.f32 %v367, %v385
        %v407 = vadd.f32 %v368, %v385
        %v408 = vadd.f32 %v369, %v385
        %v409 = vadd.f32 %v370, %v385
        %v410 = vadd.f32 %v371, %v385
        %v411 = vadd.f32 %v372, %v385
        %v412 = vadd.f32 %v373, %v385
        %v413 = vadd.f32 %v374, %v385
        %v414 = vadd.f32 %v375, %v385
        %v415 = vadd.f32 %v376, %v385
        %v416 = vadd.f32 %v377, %v385
        %v417 = vadd.f32 %v378, %v385
        %v418 = vadd.f32 %v379, %v385
        %v419 = vpack.c.bf16 %v388, %v387
        %v420 = vpack.c.bf16 %v390, %v389
        %v421 = vpack.c.bf16 %v392, %v391
        %v422 = vpack.c.bf16 %v394, %v393
        %v423 = vpack.c.bf16 %v396, %v395
        %v424 = vpack.c.bf16 %v398, %v397
        %v425 = vpack.c.bf16 %v400, %v399
        %v426 = vpack.c.bf16 %v402, %v401
        %v427 = vpack.c.bf16 %v404, %v403
        %v428 = vpack.c.bf16 %v406, %v405
        %v429 = vpack.c.bf16 %v408, %v407
        %v430 = vpack.c.bf16 %v410, %v409
        %v431 = vpack.c.bf16 %v412, %v411
        %v432 = vpack.c.bf16 %v414, %v413
        %v433 = vpack.c.bf16 %v416, %v415
        %v434 = vpack.c.bf16 %v418, %v417
        %v435 = vld [vmem:[%s3] sm:$0xf]
        %v436 = vld [vmem:[%s3 + $0x4] sm:$0xf]
        %v437 = vld [vmem:[%s3 + $0x8] sm:$0xf]
        %v438 = vld [vmem:[%s3 + $0xc] sm:$0xf]
        %v439 = vld [vmem:[%s4] sm:$0x1]
        %v441 = vlaneseq
        %v442 = vshrl.u32 %v441, 7
        %v443 = vsub.s32 0, %v442
        %v444 = vrot.slane %v439, %v443
        %v450 = vunpack.c.l.b16 %v435
        %v451 = vunpack.c.l.b16 %v436
        %v452 = vunpack.c.l.b16 %v437
        %v453 = vunpack.c.l.b16 %v438
        %v454 = vpack.c.b16 %v451, %v450
        %v455 = vpack.c.b16 %v453, %v452
        %vm458 = vcmask 261120
        %v460 = vsel %vm458, %v419, 0
        %v463 = vsel %vm458, %v420, 0
        %v466 = vsel %vm458, %v421, 0
        %v469 = vsel %vm458, %v422, 0
        %v472 = vsel %vm458, %v423, 0
        %v475 = vsel %vm458, %v424, 0
        %v478 = vsel %vm458, %v425, 0
        %v481 = vsel %vm458, %v426, 0
        %v484 = vsel %vm458, %v427, 0
        %v487 = vsel %vm458, %v428, 0
        %v490 = vsel %vm458, %v429, 0
        %v493 = vsel %vm458, %v430, 0
        %v496 = vsel %vm458, %v431, 0
        %v499 = vsel %vm458, %v432, 0
        %v502 = vsel %vm458, %v433, 0
        %v505 = vsel %vm458, %v434, 0
        %507 = vmatprep.subr.bf16.mxu0 0
        %508 = vmatpush1.bf16.msra.mxu0 0
        %509 = vmatprep.subr.bf16.mxu0 0
        %510 = vmatpush1.bf16.msra.mxu0 0
        %511 = vmatprep.subr.bf16.mxu0 0
        %512 = vmatpush1.bf16.msra.mxu0 0
        %513 = vmatprep.subr.bf16.mxu0 0
        %514 = vmatpush1.bf16.msra.mxu0 0
        %515 = vmatprep.subr.bf16.mxu0 0
        %516 = vmatpush1.bf16.msra.mxu0 0
        %517 = vmatprep.subr.bf16.mxu0 0
        %518 = vmatpush1.bf16.msra.mxu0 0
        %519 = vmatprep.subr.bf16.mxu0 0
        %520 = vmatpush1.bf16.msra.mxu0 %v455
        %521 = vmatprep.subr.bf16.mxu0 0
        %522 = vmatpush1.bf16.msra.mxu0 %v454
        %523 = vmatprep.subr.bf16.mxu0 0
        %524 = vmatpush2.bf16.msra.mxu0 0
        %525 = vmatprep.subr.bf16.mxu0 0
        %526 = vmatpush2.bf16.msra.mxu0 0
        %527 = vmatprep.subr.bf16.mxu0 0
        %528 = vmatpush2.bf16.msra.mxu0 0
        %529 = vmatprep.subr.bf16.mxu0 0
        %530 = vmatpush2.bf16.msra.mxu0 0
        %531 = vmatprep.subr.bf16.mxu0 0
        %532 = vmatpush2.bf16.msra.mxu0 0
        %533 = vmatprep.subr.bf16.mxu0 0
        %534 = vmatpush2.bf16.msra.mxu0 0
        %535 = vmatprep.subr.bf16.mxu0 0
        %536 = vmatpush2.bf16.msra.mxu0 0
        %537 = vmatprep.subr.bf16.mxu0 0
        %538 = vmatpush2.bf16.msra.mxu0 0
        %539 = vmatprep.mubr.bf16.mxu0 0
        %540 = vmatmul.mubr.bf16.gmra.mxu0 %v460
        %v541 = vpop.f32.mrf.mxu0
        %v542 = vadd.f32 %v444, %v541
        %v543 = vpop.f32.mrf.mxu0
        %v544 = vpop.f32.mrf.mxu0
        %v545 = vadd.f32 %v444, %v544
        %v546 = vpop.f32.mrf.mxu0
        %547 = vmatprep.mubr.bf16.mxu0 0
        %548 = vmatmul.mubr.bf16.gmra.mxu0 %v463
        %v549 = vpop.f32.mrf.mxu0
        %v550 = vadd.f32 %v444, %v549
        %v551 = vpop.f32.mrf.mxu0
        %v552 = vpop.f32.mrf.mxu0
        %v553 = vadd.f32 %v444, %v552
        %v554 = vpop.f32.mrf.mxu0
        %555 = vmatprep.mubr.bf16.mxu0 0
        %556 = vmatmul.mubr.bf16.gmra.mxu0 %v466
        %v557 = vpop.f32.mrf.mxu0
        %v558 = vadd.f32 %v444, %v557
        %v559 = vpop.f32.mrf.mxu0
        %v560 = vpop.f32.mrf.mxu0
        %v561 = vadd.f32 %v444, %v560
        %v562 = vpop.f32.mrf.mxu0
        %563 = vmatprep.mubr.bf16.mxu0 0
        %564 = vmatmul.mubr.bf16.gmra.mxu0 %v469
        %v565 = vpop.f32.mrf.mxu0
        %v566 = vadd.f32 %v444, %v565
        %v567 = vpop.f32.mrf.mxu0
        %v568 = vpop.f32.mrf.mxu0
        %v569 = vadd.f32 %v444, %v568
        %v570 = vpop.f32.mrf.mxu0
        %571 = vmatprep.mubr.bf16.mxu0 0
        %572 = vmatmul.mubr.bf16.gmra.mxu0 %v472
        %v573 = vpop.f32.mrf.mxu0
        %v574 = vadd.f32 %v444, %v573
        %v575 = vpop.f32.mrf.mxu0
        %v576 = vpop.f32.mrf.mxu0
        %v577 = vadd.f32 %v444, %v576
        %v578 = vpop.f32.mrf.mxu0
        %579 = vmatprep.mubr.bf16.mxu0 0
        %580 = vmatmul.mubr.bf16.gmra.mxu0 %v475
        %v581 = vpop.f32.mrf.mxu0
        %v582 = vadd.f32 %v444, %v581
        %v583 = vpop.f32.mrf.mxu0
        %v584 = vpop.f32.mrf.mxu0
        %v585 = vadd.f32 %v444, %v584
        %v586 = vpop.f32.mrf.mxu0
        %587 = vmatprep.mubr.bf16.mxu0 0
        %588 = vmatmul.mubr.bf16.gmra.mxu0 %v478
        %v589 = vpop.f32.mrf.mxu0
        %v590 = vadd.f32 %v444, %v589
        %v591 = vpop.f32.mrf.mxu0
        %v592 = vpop.f32.mrf.mxu0
        %v593 = vadd.f32 %v444, %v592
        %v594 = vpop.f32.mrf.mxu0
        %595 = vmatprep.mubr.bf16.mxu0 0
        %596 = vmatmul.mubr.bf16.gmra.mxu0 %v481
        %v597 = vpop.f32.mrf.mxu0
        %v598 = vadd.f32 %v444, %v597
        %v599 = vpop.f32.mrf.mxu0
        %v600 = vpop.f32.mrf.mxu0
        %v601 = vadd.f32 %v444, %v600
        %v602 = vpop.f32.mrf.mxu0
        %603 = vmatprep.mubr.bf16.mxu0 0
        %604 = vmatmul.mubr.bf16.gmra.mxu0 %v484
        %v605 = vpop.f32.mrf.mxu0
        %v606 = vadd.f32 %v444, %v605
        %v607 = vpop.f32.mrf.mxu0
        %v608 = vpop.f32.mrf.mxu0
        %v609 = vadd.f32 %v444, %v608
        %v610 = vpop.f32.mrf.mxu0
        %611 = vmatprep.mubr.bf16.mxu0 0
        %612 = vmatmul.mubr.bf16.gmra.mxu0 %v487
        %v613 = vpop.f32.mrf.mxu0
        %v614 = vadd.f32 %v444, %v613
        %v615 = vpop.f32.mrf.mxu0
        %v616 = vpop.f32.mrf.mxu0
        %v617 = vadd.f32 %v444, %v616
        %v618 = vpop.f32.mrf.mxu0
        %619 = vmatprep.mubr.bf16.mxu0 0
        %620 = vmatmul.mubr.bf16.gmra.mxu0 %v490
        %v621 = vpop.f32.mrf.mxu0
        %v622 = vadd.f32 %v444, %v621
        %v623 = vpop.f32.mrf.mxu0
        %v624 = vpop.f32.mrf.mxu0
        %v625 = vadd.f32 %v444, %v624
        %v626 = vpop.f32.mrf.mxu0
        %627 = vmatprep.mubr.bf16.mxu0 0
        %628 = vmatmul.mubr.bf16.gmra.mxu0 %v493
        %v629 = vpop.f32.mrf.mxu0
        %v630 = vadd.f32 %v444, %v629
        %v631 = vpop.f32.mrf.mxu0
        %v632 = vpop.f32.mrf.mxu0
        %v633 = vadd.f32 %v444, %v632
        %v634 = vpop.f32.mrf.mxu0
        %635 = vmatprep.mubr.bf16.mxu0 0
        %636 = vmatmul.mubr.bf16.gmra.mxu0 %v496
        %v637 = vpop.f32.mrf.mxu0
        %v638 = vadd.f32 %v444, %v637
        %v639 = vpop.f32.mrf.mxu0
        %v640 = vpop.f32.mrf.mxu0
        %v641 = vadd.f32 %v444, %v640
        %v642 = vpop.f32.mrf.mxu0
        %643 = vmatprep.mubr.bf16.mxu0 0
        %644 = vmatmul.mubr.bf16.gmra.mxu0 %v499
        %v645 = vpop.f32.mrf.mxu0
        %v646 = vadd.f32 %v444, %v645
        %v647 = vpop.f32.mrf.mxu0
        %v648 = vpop.f32.mrf.mxu0
        %v649 = vadd.f32 %v444, %v648
        %v650 = vpop.f32.mrf.mxu0
        %651 = vmatprep.mubr.bf16.mxu0 0
        %652 = vmatmul.mubr.bf16.gmra.mxu0 %v502
        %v653 = vpop.f32.mrf.mxu0
        %v654 = vadd.f32 %v444, %v653
        %v655 = vpop.f32.mrf.mxu0
        %v656 = vpop.f32.mrf.mxu0
        %v657 = vadd.f32 %v444, %v656
        %v658 = vpop.f32.mrf.mxu0
        %659 = vmatprep.mubr.bf16.mxu0 0
        %660 = vmatmul.mubr.bf16.gmra.mxu0 %v505
        %v661 = vpop.f32.mrf.mxu0
        %v662 = vadd.f32 %v444, %v661
        %v663 = vpop.f32.mrf.mxu0
        %v664 = vpop.f32.mrf.mxu0
        %v665 = vadd.f32 %v444, %v664
        %v666 = vpop.f32.mrf.mxu0
        %667 = vdwg.mxu0
        %v668 = vmax.f32 %v542, 0.0
        %v669 = vmax.f32 %v545, 0.0
        %v670 = vmax.f32 %v550, 0.0
        %v671 = vmax.f32 %v553, 0.0
        %v672 = vmax.f32 %v558, 0.0
        %v673 = vmax.f32 %v561, 0.0
        %v674 = vmax.f32 %v566, 0.0
        %v675 = vmax.f32 %v569, 0.0
        %v676 = vmax.f32 %v574, 0.0
        %v677 = vmax.f32 %v577, 0.0
        %v678 = vmax.f32 %v582, 0.0
        %v679 = vmax.f32 %v585, 0.0
        %v680 = vmax.f32 %v590, 0.0
        %v681 = vmax.f32 %v593, 0.0
        %v682 = vmax.f32 %v598, 0.0
        %v683 = vmax.f32 %v601, 0.0
        %v684 = vmax.f32 %v606, 0.0
        %v685 = vmax.f32 %v609, 0.0
        %v686 = vmax.f32 %v614, 0.0
        %v687 = vmax.f32 %v617, 0.0
        %v688 = vmax.f32 %v622, 0.0
        %v689 = vmax.f32 %v625, 0.0
        %v690 = vmax.f32 %v630, 0.0
        %v691 = vmax.f32 %v633, 0.0
        %v692 = vmax.f32 %v638, 0.0
        %v693 = vmax.f32 %v641, 0.0
        %v694 = vmax.f32 %v646, 0.0
        %v695 = vmax.f32 %v649, 0.0
        %v696 = vmax.f32 %v654, 0.0
        %v697 = vmax.f32 %v657, 0.0
        %v698 = vmax.f32 %v662, 0.0
        %v699 = vmax.f32 %v665, 0.0
        %v700 = vpack.c.bf16 %v669, %v668
        %v701 = vpack.c.bf16 %v671, %v670
        %v702 = vpack.c.bf16 %v673, %v672
        %v703 = vpack.c.bf16 %v675, %v674
        %v704 = vpack.c.bf16 %v677, %v676
        %v705 = vpack.c.bf16 %v679, %v678
        %v706 = vpack.c.bf16 %v681, %v680
        %v707 = vpack.c.bf16 %v683, %v682
        %v708 = vpack.c.bf16 %v685, %v684
        %v709 = vpack.c.bf16 %v687, %v686
        %v710 = vpack.c.bf16 %v689, %v688
        %v711 = vpack.c.bf16 %v691, %v690
        %v712 = vpack.c.bf16 %v693, %v692
        %v713 = vpack.c.bf16 %v695, %v694
        %v714 = vpack.c.bf16 %v697, %v696
        %v715 = vpack.c.bf16 %v699, %v698
        %v716 = vld [vmem:[%s5] sm:$0xf]
        %v717 = vld [vmem:[%s5 + $0x4] sm:$0xf]
        %v718 = vld [vmem:[%s5 + $0x8] sm:$0xf]
        %v719 = vld [vmem:[%s5 + $0xc] sm:$0xf]
        %v720 = vld [vmem:[%s5 + $0x10] sm:$0xf]
        %v721 = vld [vmem:[%s5 + $0x14] sm:$0xf]
        %v722 = vld [vmem:[%s5 + $0x18] sm:$0xf]
        %v723 = vld [vmem:[%s5 + $0x1c] sm:$0xf]
        %v724 = vld [vmem:[%s5 + $0x20] sm:$0xf]
        %v725 = vld [vmem:[%s5 + $0x24] sm:$0xf]
        %v726 = vld [vmem:[%s5 + $0x28] sm:$0xf]
        %v727 = vld [vmem:[%s5 + $0x2c] sm:$0xf]
        %v728 = vld [vmem:[%s5 + $0x30] sm:$0xf]
        %v729 = vld [vmem:[%s5 + $0x34] sm:$0xf]
        %v730 = vld [vmem:[%s5 + $0x38] sm:$0xf]
        %v731 = vld [vmem:[%s5 + $0x3c] sm:$0xf]
        %v732 = vld [vmem:[%s6] sm:$0x1]
        %v734 = vlaneseq
        %v735 = vshrl.u32 %v734, 7
        %v736 = vsub.s32 0, %v735
        %v737 = vrot.slane %v732, %v736
        %v755 = vunpack.c.l.b16 %v716
        %v756 = vunpack.c.l.b16 %v717
        %v757 = vunpack.c.l.b16 %v718
        %v758 = vunpack.c.l.b16 %v719
        %v759 = vunpack.c.l.b16 %v720
        %v760 = vunpack.c.l.b16 %v721
        %v761 = vunpack.c.l.b16 %v722
        %v762 = vunpack.c.l.b16 %v723
        %v763 = vunpack.c.l.b16 %v724
        %v764 = vunpack.c.l.b16 %v725
        %v765 = vunpack.c.l.b16 %v726
        %v766 = vunpack.c.l.b16 %v727
        %v767 = vunpack.c.l.b16 %v728
        %v768 = vunpack.c.l.b16 %v729
        %v769 = vunpack.c.l.b16 %v730
        %v770 = vunpack.c.l.b16 %v731
        %v771 = vpack.c.b16 %v756, %v755
        %v772 = vpack.c.b16 %v758, %v757
        %v773 = vpack.c.b16 %v760, %v759
        %v774 = vpack.c.b16 %v762, %v761
        %v775 = vpack.c.b16 %v764, %v763
        %v776 = vpack.c.b16 %v766, %v765
        %v777 = vpack.c.b16 %v768, %v767
        %v778 = vpack.c.b16 %v770, %v769
        %787 = vmatprep.subr.bf16.mxu0 0
        %788 = vmatpush1.bf16.msra.mxu0 %v778
        %789 = vmatprep.subr.bf16.mxu0 0
        %790 = vmatpush1.bf16.msra.mxu0 %v777
        %791 = vmatprep.subr.bf16.mxu0 0
        %792 = vmatpush1.bf16.msra.mxu0 %v776
        %793 = vmatprep.subr.bf16.mxu0 0
        %794 = vmatpush1.bf16.msra.mxu0 %v775
        %795 = vmatprep.subr.bf16.mxu0 0
        %796 = vmatpush1.bf16.msra.mxu0 %v774
        %797 = vmatprep.subr.bf16.mxu0 0
        %798 = vmatpush1.bf16.msra.mxu0 %v773
        %799 = vmatprep.subr.bf16.mxu0 0
        %800 = vmatpush1.bf16.msra.mxu0 %v772
        %801 = vmatprep.subr.bf16.mxu0 0
        %802 = vmatpush1.bf16.msra.mxu0 %v771
        %803 = vmatprep.subr.bf16.mxu0 0
        %804 = vmatpush2.bf16.msra.mxu0 0
        %805 = vmatprep.subr.bf16.mxu0 0
        %806 = vmatpush2.bf16.msra.mxu0 0
        %807 = vmatprep.subr.bf16.mxu0 0
        %808 = vmatpush2.bf16.msra.mxu0 0
        %809 = vmatprep.subr.bf16.mxu0 0
        %810 = vmatpush2.bf16.msra.mxu0 0
        %811 = vmatprep.subr.bf16.mxu0 0
        %812 = vmatpush2.bf16.msra.mxu0 0
        %813 = vmatprep.subr.bf16.mxu0 0
        %814 = vmatpush2.bf16.msra.mxu0 0
        %815 = vmatprep.subr.bf16.mxu0 0
        %816 = vmatpush2.bf16.msra.mxu0 0
        %817 = vmatprep.subr.bf16.mxu0 0
        %818 = vmatpush2.bf16.msra.mxu0 0
        %819 = vmatprep.mubr.bf16.mxu0 0
        %820 = vmatmul.mubr.bf16.gmra.mxu0 %v700
        %v821 = vpop.f32.mrf.mxu0
        %v822 = vadd.f32 %v737, %v821
        %v823 = vpop.f32.mrf.mxu0
        %v824 = vpop.f32.mrf.mxu0
        %v825 = vadd.f32 %v737, %v824
        %v826 = vpop.f32.mrf.mxu0
        %827 = vmatprep.mubr.bf16.mxu0 0
        %828 = vmatmul.mubr.bf16.gmra.mxu0 %v701
        %v829 = vpop.f32.mrf.mxu0
        %v830 = vadd.f32 %v737, %v829
        %v831 = vpop.f32.mrf.mxu0
        %v832 = vpop.f32.mrf.mxu0
        %v833 = vadd.f32 %v737, %v832
        %v834 = vpop.f32.mrf.mxu0
        %835 = vmatprep.mubr.bf16.mxu0 0
        %836 = vmatmul.mubr.bf16.gmra.mxu0 %v702
        %v837 = vpop.f32.mrf.mxu0
        %v838 = vadd.f32 %v737, %v837
        %v839 = vpop.f32.mrf.mxu0
        %v840 = vpop.f32.mrf.mxu0
        %v841 = vadd.f32 %v737, %v840
        %v842 = vpop.f32.mrf.mxu0
        %843 = vmatprep.mubr.bf16.mxu0 0
        %844 = vmatmul.mubr.bf16.gmra.mxu0 %v703
        %v845 = vpop.f32.mrf.mxu0
        %v846 = vadd.f32 %v737, %v845
        %v847 = vpop.f32.mrf.mxu0
        %v848 = vpop.f32.mrf.mxu0
        %v849 = vadd.f32 %v737, %v848
        %v850 = vpop.f32.mrf.mxu0
        %851 = vmatprep.mubr.bf16.mxu0 0
        %852 = vmatmul.mubr.bf16.gmra.mxu0 %v704
        %v853 = vpop.f32.mrf.mxu0
        %v854 = vadd.f32 %v737, %v853
        %v855 = vpop.f32.mrf.mxu0
        %v856 = vpop.f32.mrf.mxu0
        %v857 = vadd.f32 %v737, %v856
        %v858 = vpop.f32.mrf.mxu0
        %859 = vmatprep.mubr.bf16.mxu0 0
        %860 = vmatmul.mubr.bf16.gmra.mxu0 %v705
        %v861 = vpop.f32.mrf.mxu0
        %v862 = vadd.f32 %v737, %v861
        %v863 = vpop.f32.mrf.mxu0
        %v864 = vpop.f32.mrf.mxu0
        %v865 = vadd.f32 %v737, %v864
        %v866 = vpop.f32.mrf.mxu0
        %867 = vmatprep.mubr.bf16.mxu0 0
        %868 = vmatmul.mubr.bf16.gmra.mxu0 %v706
        %v869 = vpop.f32.mrf.mxu0
        %v870 = vadd.f32 %v737, %v869
        %v871 = vpop.f32.mrf.mxu0
        %v872 = vpop.f32.mrf.mxu0
        %v873 = vadd.f32 %v737, %v872
        %v874 = vpop.f32.mrf.mxu0
        %875 = vmatprep.mubr.bf16.mxu0 0
        %876 = vmatmul.mubr.bf16.gmra.mxu0 %v707
        %v877 = vpop.f32.mrf.mxu0
        %v878 = vadd.f32 %v737, %v877
        %v879 = vpop.f32.mrf.mxu0
        %v880 = vpop.f32.mrf.mxu0
        %v881 = vadd.f32 %v737, %v880
        %v882 = vpop.f32.mrf.mxu0
        %883 = vmatprep.mubr.bf16.mxu0 0
        %884 = vmatmul.mubr.bf16.gmra.mxu0 %v708
        %v885 = vpop.f32.mrf.mxu0
        %v886 = vadd.f32 %v737, %v885
        %v887 = vpop.f32.mrf.mxu0
        %v888 = vpop.f32.mrf.mxu0
        %v889 = vadd.f32 %v737, %v888
        %v890 = vpop.f32.mrf.mxu0
        %891 = vmatprep.mubr.bf16.mxu0 0
        %892 = vmatmul.mubr.bf16.gmra.mxu0 %v709
        %v893 = vpop.f32.mrf.mxu0
        %v894 = vadd.f32 %v737, %v893
        %v895 = vpop.f32.mrf.mxu0
        %v896 = vpop.f32.mrf.mxu0
        %v897 = vadd.f32 %v737, %v896
        %v898 = vpop.f32.mrf.mxu0
        %899 = vmatprep.mubr.bf16.mxu0 0
        %900 = vmatmul.mubr.bf16.gmra.mxu0 %v710
        %v901 = vpop.f32.mrf.mxu0
        %v902 = vadd.f32 %v737, %v901
        %v903 = vpop.f32.mrf.mxu0
        %v904 = vpop.f32.mrf.mxu0
        %v905 = vadd.f32 %v737, %v904
        %v906 = vpop.f32.mrf.mxu0
        %907 = vmatprep.mubr.bf16.mxu0 0
        %908 = vmatmul.mubr.bf16.gmra.mxu0 %v711
        %v909 = vpop.f32.mrf.mxu0
        %v910 = vadd.f32 %v737, %v909
        %v911 = vpop.f32.mrf.mxu0
        %v912 = vpop.f32.mrf.mxu0
        %v913 = vadd.f32 %v737, %v912
        %v914 = vpop.f32.mrf.mxu0
        %915 = vmatprep.mubr.bf16.mxu0 0
        %916 = vmatmul.mubr.bf16.gmra.mxu0 %v712
        %v917 = vpop.f32.mrf.mxu0
        %v918 = vadd.f32 %v737, %v917
        %v919 = vpop.f32.mrf.mxu0
        %v920 = vpop.f32.mrf.mxu0
        %v921 = vadd.f32 %v737, %v920
        %v922 = vpop.f32.mrf.mxu0
        %923 = vmatprep.mubr.bf16.mxu0 0
        %924 = vmatmul.mubr.bf16.gmra.mxu0 %v713
        %v925 = vpop.f32.mrf.mxu0
        %v926 = vadd.f32 %v737, %v925
        %v927 = vpop.f32.mrf.mxu0
        %v928 = vpop.f32.mrf.mxu0
        %v929 = vadd.f32 %v737, %v928
        %v930 = vpop.f32.mrf.mxu0
        %931 = vmatprep.mubr.bf16.mxu0 0
        %932 = vmatmul.mubr.bf16.gmra.mxu0 %v714
        %v933 = vpop.f32.mrf.mxu0
        %v934 = vadd.f32 %v737, %v933
        %v935 = vpop.f32.mrf.mxu0
        %v936 = vpop.f32.mrf.mxu0
        %v937 = vadd.f32 %v737, %v936
        %v938 = vpop.f32.mrf.mxu0
        %939 = vmatprep.mubr.bf16.mxu0 0
        %940 = vmatmul.mubr.bf16.gmra.mxu0 %v715
        %v941 = vpop.f32.mrf.mxu0
        %v942 = vadd.f32 %v737, %v941
        %v943 = vpop.f32.mrf.mxu0
        %v944 = vpop.f32.mrf.mxu0
        %v945 = vadd.f32 %v737, %v944
        %v946 = vpop.f32.mrf.mxu0
        %947 = vdwg.mxu0
        %v948 = vadd.f32 %v309, %v822
        %v949 = vadd.f32 %v310, %v825
        %v950 = vadd.f32 %v311, %v830
        %v951 = vadd.f32 %v312, %v833
        %v952 = vadd.f32 %v313, %v838
        %v953 = vadd.f32 %v314, %v841
        %v954 = vadd.f32 %v315, %v846
        %v955 = vadd.f32 %v316, %v849
        %v956 = vadd.f32 %v317, %v854
        %v957 = vadd.f32 %v318, %v857
        %v958 = vadd.f32 %v319, %v862
        %v959 = vadd.f32 %v320, %v865
        %v960 = vadd.f32 %v321, %v870
        %v961 = vadd.f32 %v322, %v873
        %v962 = vadd.f32 %v323, %v878
        %v963 = vadd.f32 %v324, %v881
        %v964 = vadd.f32 %v325, %v886
        %v965 = vadd.f32 %v326, %v889
        %v966 = vadd.f32 %v327, %v894
        %v967 = vadd.f32 %v328, %v897
        %v968 = vadd.f32 %v329, %v902
        %v969 = vadd.f32 %v330, %v905
        %v970 = vadd.f32 %v331, %v910
        %v971 = vadd.f32 %v332, %v913
        %v972 = vadd.f32 %v333, %v918
        %v973 = vadd.f32 %v334, %v921
        %v974 = vadd.f32 %v335, %v926
        %v975 = vadd.f32 %v336, %v929
        %v976 = vadd.f32 %v337, %v934
        %v977 = vadd.f32 %v338, %v937
        %v978 = vadd.f32 %v339, %v942
        %v979 = vadd.f32 %v340, %v945
        %980 = vst.msk [vmem:[%s296] sm:$0xff] %vm458, %v948
        %981 = vst.msk [vmem:[%s296 + $0x8] sm:$0xff] %vm458, %v949
        %982 = vst.msk [vmem:[%s296 + $0x10] sm:$0xff] %vm458, %v950
        %983 = vst.msk [vmem:[%s296 + $0x18] sm:$0xff] %vm458, %v951
        %984 = vst.msk [vmem:[%s296 + $0x20] sm:$0xff] %vm458, %v952
        %985 = vst.msk [vmem:[%s296 + $0x28] sm:$0xff] %vm458, %v953
        %986 = vst.msk [vmem:[%s296 + $0x30] sm:$0xff] %vm458, %v954
        %987 = vst.msk [vmem:[%s296 + $0x38] sm:$0xff] %vm458, %v955
        %988 = vst.msk [vmem:[%s296 + $0x40] sm:$0xff] %vm458, %v956
        %989 = vst.msk [vmem:[%s296 + $0x48] sm:$0xff] %vm458, %v957
        %990 = vst.msk [vmem:[%s296 + $0x50] sm:$0xff] %vm458, %v958
        %991 = vst.msk [vmem:[%s296 + $0x58] sm:$0xff] %vm458, %v959
        %992 = vst.msk [vmem:[%s296 + $0x60] sm:$0xff] %vm458, %v960
        %993 = vst.msk [vmem:[%s296 + $0x68] sm:$0xff] %vm458, %v961
        %994 = vst.msk [vmem:[%s296 + $0x70] sm:$0xff] %vm458, %v962
        %995 = vst.msk [vmem:[%s296 + $0x78] sm:$0xff] %vm458, %v963
        %996 = vst.msk [vmem:[%s296 + $0x80] sm:$0xff] %vm458, %v964
        %997 = vst.msk [vmem:[%s296 + $0x88] sm:$0xff] %vm458, %v965
        %998 = vst.msk [vmem:[%s296 + $0x90] sm:$0xff] %vm458, %v966
        %999 = vst.msk [vmem:[%s296 + $0x98] sm:$0xff] %vm458, %v967
        %1000 = vst.msk [vmem:[%s296 + $0xa0] sm:$0xff] %vm458, %v968
        %1001 = vst.msk [vmem:[%s296 + $0xa8] sm:$0xff] %vm458, %v969
        %1002 = vst.msk [vmem:[%s296 + $0xb0] sm:$0xff] %vm458, %v970
        %1003 = vst.msk [vmem:[%s296 + $0xb8] sm:$0xff] %vm458, %v971
        %1004 = vst.msk [vmem:[%s296 + $0xc0] sm:$0xff] %vm458, %v972
        %1005 = vst.msk [vmem:[%s296 + $0xc8] sm:$0xff] %vm458, %v973
        %1006 = vst.msk [vmem:[%s296 + $0xd0] sm:$0xff] %vm458, %v974
        %1007 = vst.msk [vmem:[%s296 + $0xd8] sm:$0xff] %vm458, %v975
        %1008 = vst.msk [vmem:[%s296 + $0xe0] sm:$0xff] %vm458, %v976
        %1009 = vst.msk [vmem:[%s296 + $0xe8] sm:$0xff] %vm458, %v977
        %1010 = vst.msk [vmem:[%s296 + $0xf0] sm:$0xff] %vm458, %v978
        %1011 = vst.msk [vmem:[%s296 + $0xf8] sm:$0xff] %vm458, %v979
        %s1012 = sand.u32 %s197, 1
        %s1013 = scalar_lea.sflag [#allocation3], %s1012
        %s1014 = sand.u32 %s197, 1
        %s1015 = smul.addr %s1014, 256
        %s1016 = scalar_lea.vmem [#allocation2], %s1015
        // Predicated region
        $region49: #{multi_head_attention_block.9} parent=47 // pred_check
          %p1017 = pneg %p207
        $region50: #{multi_head_attention_block.9} parent=47 // pred_check_branch
          %1019 = sbr.rel (%p1017) target = $region52
        $region51: #{multi_head_attention_block.9} parent=47 // pred_region
          %s1020 = smul.u32 32, %s26
          %s1022 = ssub.s32 4096, 4096
          %1023 = vsyncadd %s1013, %s1022
          %s1024 = smul.addr %s25, 32
          %s1025 = sadd.s32 %s1020, %s1024
          %s1026 = smul.addr %s1025, 128
          %s1027 = scalar_lea.hbm %s7, %s1026
          %s1028 = sshll.u32 %s1016, 4
          %s1029 = int_to_ptr.vmem [resolvable:$true] %s1028
          %1034 = dma.vmem_to_hbm [thread:$0]  %s1029, 4096, %s1027, %s1013, 128, 128, 8
        $region52: #{multi_head_attention_block.9} parent=47 // pred_fallthru
          _
      $region48: #{multi_head_attention_block.9} parent=5 // pred_fallthru
        _
      %p1035 = scmp.le.s32.totalorder 2, %s16
      // Predicated region
      $region53: #{multi_head_attention_block.9} parent=5 // pred_check
        %p1036 = pneg %p1035
      $region54: #{multi_head_attention_block.9} parent=5 // pred_check_branch
        %1038 = sbr.rel (%p1036) target = $region56
      $region55: #{multi_head_attention_block.9} parent=5 // pred_region
        %s1039 = ssub.s32 %s16, 2
        // Predicated region
        $region57: #{multi_head_attention_block.9} parent=55 // pred_check
          %p1040 = pneg %p213
        $region58: #{multi_head_attention_block.9} parent=55 // pred_check_branch
          %1042 = sbr.rel (%p1040) target = $region60
        $region59: #{multi_head_attention_block.9} parent=55 // pred_region
          %s1043 = sand.u32 %s198, 1
          %s1044 = scalar_lea.sflag [#allocation3], %s1043
          %s1045 = sand.u32 %s198, 1
          %s1046 = smul.addr %s1045, 256
          %s1047 = scalar_lea.vmem [#allocation2], %s1046
          %1048 = dma.done %s1044, 4096
        $region60: #{multi_head_attention_block.9} parent=55 // pred_fallthru
          _
      $region56: #{multi_head_attention_block.9} parent=5 // pred_fallthru
        _
    $region6: #{multi_head_attention_block.9} parent=1 // loop_footer
      %s20 = sadd.s32 1, %s16
    $region7: #{multi_head_attention_block.9} parent=1 // loop_footer_branch
      %15 = sbr.rel target = $region3
    $region8: #{multi_head_attention_block.9} parent=1 // loop_exit
      _
    %1049 = vsyncpa [#allocation3], 1
    %s1050 = scalar_lea.sflag [#allocation3], 1
    %1051 = vsyncpa %s1050, 1

</llo_original>
